<compile_context>
chip_gen: v7x
topology: tpu7x:2x2x1
jax: 0.10.0
libtpu: 0.0.40
codegen_flags: <defaults>
</compile_context>

<pallas_src>
import jax
import jax.numpy as jnp
from jax.experimental import pallas as pl
from jax.experimental.pallas import tpu as pltpu


def _round_up(x, m):
    return ((x + m - 1) // m) * m


# ------------------------------ fused kernel ------------------------------- #

def _se_init_block_kernel(x_ref,
                          w1_ref, s1_ref, b1_ref,
                          w2_ref, s2_ref, b2_ref,
                          w3_ref, s3_ref, b3_ref,
                          o_ref,
                          pad1, pad2, pad3, pad4, patch):
    """Whole SEInitBlock for one batch element, entirely in VMEM.

    x_ref : (1, H, W, Cin)        input tile (NHWC)
    w*_ref: (9*CS, Cout) bf16     im2col-packed conv weights (zero pad rows)
    s*/b* : (1, Cout)   f32       folded eval-mode BN scale / bias
    o_ref : (1, H//4, W//4, Cout) output tile
    pad1  : (H+2,  W+2,  CS) f32  zero-padded conv1 input
    pad2/3: (H1+2, W1+2, CS) f32  zero-padded conv2 / conv3 inputs
    pad4  : (H1+2, W1+2, Cout)    zero-padded pool input
    patch : (H1*W1, 9*CS) bf16    im2col patch (reused by all three convs)
    """
    _, H, W, Cin = x_ref.shape
    CS = pad1.shape[-1]                       # channel slot, multiple of 128
    H1, W1 = H // 2, W // 2                   # spatial size after conv1
    H2, W2 = o_ref.shape[1], o_ref.shape[2]   # spatial size after the pool

    def conv3x3_bn_relu(src, Ho, Wo, stride, w_ref, s_ref, b_ref):
        """3x3 conv on a zero-padded VMEM buffer as ONE im2col matmul."""
        for t in range(9):
            kh, kw = t // 3, t % 3
            if stride == 1:
                win = src[kh:kh + Ho, kw:kw + Wo, :]
            else:  # stride 2: strided window reads, no redundant compute
                win = src[pl.ds(kh, Ho, stride=2), pl.ds(kw, Wo, stride=2), :]
            # lane-aligned 128-wide slot per tap -> aligned bf16 store
            patch[:, t * CS:(t + 1) * CS] = (
                win.reshape(Ho * Wo, CS).astype(jnp.bfloat16))
        acc = jnp.dot(patch[...], w_ref[...],
                      preferred_element_type=jnp.float32)   # MXU, bf16 x bf16
        y = acc * s_ref[...] + b_ref[...]                    # folded BN (f32)
        return jnp.maximum(y, 0.0)                           # ReLU (f32)

    # ---- conv1: 3x3, stride 2, pad 1 -------------------------------------
    pad1[...] = jnp.zeros_like(pad1)
    pad1[1:H + 1, 1:W + 1, :Cin] = x_ref[0]
    y1 = conv3x3_bn_relu(pad1, H1, W1, 2, w1_ref, s1_ref, b1_ref)
    mid = y1.shape[-1]

    # ---- conv2: 3x3, stride 1, pad 1 -------------------------------------
    pad2[...] = jnp.zeros_like(pad2)
    pad2[1:H1 + 1, 1:W1 + 1, :mid] = y1.reshape(H1, W1, mid)
    y2 = conv3x3_bn_relu(pad2, H1, W1, 1, w2_ref, s2_ref, b2_ref)

    # ---- conv3: 3x3, stride 1, pad 1 -------------------------------------
    pad3[...] = jnp.zeros_like(pad3)
    pad3[1:H1 + 1, 1:W1 + 1, :mid] = y2.reshape(H1, W1, mid)
    y3 = conv3x3_bn_relu(pad3, H1, W1, 1, w3_ref, s3_ref, b3_ref)
    cout = y3.shape[-1]

    # ---- MaxPool2d(kernel=3, stride=2, padding=1) -------------------------
    # Zero padding is exact here: the pool input is post-ReLU (>= 0).
    pad4[...] = jnp.zeros_like(pad4)
    pad4[1:H1 + 1, 1:W1 + 1, :] = y3.reshape(H1, W1, cout)
    pooled = pad4[pl.ds(0, H2, stride=2), pl.ds(0, W2, stride=2), :]
    for t in range(1, 9):
        kh, kw = t // 3, t % 3
        win = pad4[pl.ds(kh, H2, stride=2), pl.ds(kw, W2, stride=2), :]
        pooled = jnp.maximum(pooled, win)
    o_ref[0] = pooled.astype(o_ref.dtype)


# --------------------------------- wrapper --------------------------------- #

def _pack_conv_weight(w_dense, cin, cs):
    """(9*cin, cout) f32, K ordered (kh*3+kw)*cin+c -> (9*cs, cout) bf16."""
    cout = w_dense.shape[-1]
    w = w_dense.reshape(9, cin, cout)
    w = jnp.pad(w, ((0, 0), (0, cs - cin), (0, 0)))   # zero rows in pad lanes
    return w.reshape(9 * cs, cout).astype(jnp.bfloat16)


@jax.jit
def se_init_block(x_nchw, params):
    """Forward pass of SEInitBlock. Input/output NCHW, like PyTorch."""
    x = jnp.transpose(x_nchw, (0, 2, 3, 1))                    # NCHW -> NHWC
    N, H, W, cin = x.shape
    assert H % 4 == 0 and W % 4 == 0, (H, W)
    w1d, s1, b1 = params["conv1"]
    w2d, s2, b2 = params["conv2"]
    w3d, s3, b3 = params["conv3"]
    mid, cout = w1d.shape[-1], w3d.shape[-1]
    H1, W1, H2, W2 = H // 2, W // 2, H // 4, W // 4
    cs = _round_up(max(cin, mid), 128)        # lane-aligned channel slot

    w1 = _pack_conv_weight(w1d, cin, cs)
    w2 = _pack_conv_weight(w2d, mid, cs)
    w3 = _pack_conv_weight(w3d, mid, cs)

    flops = 2 * N * H1 * W1 * 9 * (cin * mid + mid * mid + mid * cout)
    bytes_accessed = (4 * (x.size + N * H2 * W2 * cout)
                      + 2 * (w1.size + w2.size + w3.size)
                      + 4 * 2 * (mid + mid + cout))

    out = pl.pallas_call(
        _se_init_block_kernel,
        out_shape=jax.ShapeDtypeStruct((N, H2, W2, cout), x.dtype),
        grid=(N,),
        in_specs=[
            pl.BlockSpec((1, H, W, cin), lambda n: (n, 0, 0, 0)),
            pl.BlockSpec((9 * cs, mid), lambda n: (0, 0)),
            pl.BlockSpec((1, mid), lambda n: (0, 0)),
            pl.BlockSpec((1, mid), lambda n: (0, 0)),
            pl.BlockSpec((9 * cs, mid), lambda n: (0, 0)),
            pl.BlockSpec((1, mid), lambda n: (0, 0)),
            pl.BlockSpec((1, mid), lambda n: (0, 0)),
            pl.BlockSpec((9 * cs, cout), lambda n: (0, 0)),
            pl.BlockSpec((1, cout), lambda n: (0, 0)),
            pl.BlockSpec((1, cout), lambda n: (0, 0)),
        ],
        out_specs=pl.BlockSpec((1, H2, W2, cout), lambda n: (n, 0, 0, 0)),
        scratch_shapes=[
            pltpu.VMEM((H + 2, W + 2, cs), jnp.float32),       # padded conv1 in
            pltpu.VMEM((H1 + 2, W1 + 2, cs), jnp.float32),     # padded conv2 in
            pltpu.VMEM((H1 + 2, W1 + 2, cs), jnp.float32),     # padded conv3 in
            pltpu.VMEM((H1 + 2, W1 + 2, cout), jnp.float32),   # padded pool in
            pltpu.VMEM((H1 * W1, 9 * cs), jnp.bfloat16),       # im2col patch
        ],
        compiler_params=pltpu.CompilerParams(
            dimension_semantics=("parallel",)),
        cost_estimate=pl.CostEstimate(flops=flops, transcendentals=0,
                                      bytes_accessed=bytes_accessed),
    )(x, w1, s1, b1, w2, s2, b2, w3, s3, b3)

    return jnp.transpose(out, (0, 3, 1, 2))                     # NHWC -> NCHW


# --------------------------- parameter creation ----------------------------- #

def init_params(key, in_channels, out_channels):
    """Synthetic weights + folded eval-mode BN scale/bias for each conv3x3_block."""
    mid = out_channels // 2
    layer_io = [(in_channels, mid), (mid, mid), (mid, out_channels)]
    params = {}
    for i, (cin, cout) in enumerate(layer_io, start=1):
        key, kw_, kg, kb, km, kv = jax.random.split(key, 6)
        w_oihw = 0.2 * jax.random.normal(kw_, (cout, cin, 3, 3), jnp.float32)
        gamma = 1.0 + 0.1 * jax.random.normal(kg, (cout,), jnp.float32)
        beta = 0.1 * jax.random.normal(kb, (cout,), jnp.float32)
        mean = 0.1 * jax.random.normal(km, (cout,), jnp.float32)
        var = jax.random.uniform(kv, (cout,), jnp.float32, 0.5, 1.5)
        eps = 1e-5
        scale = gamma / jnp.sqrt(var + eps)
        bias = beta - mean * scale
        # (O,I,Kh,Kw) -> (Kh,Kw,I,O) -> (9*I, O); K index = (kh*3+kw)*I + c
        w9 = jnp.transpose(w_oihw, (2, 3, 1, 0)).reshape(9 * cin, cout)
        params[f"conv{i}"] = (w9, scale.reshape(1, cout), bias.reshape(1, cout))
    return params


# ------------------------------ JAX reference ------------------------------- #

def se_init_block_ref(x_nchw, params):
    x = x_nchw
    for i, stride in [(1, 2), (2, 1), (3, 1)]:
        w9, s, b = params[f"conv{i}"]
        cin, cout = w9.shape[0] // 9, w9.shape[1]
        w_oihw = jnp.transpose(w9.reshape(3, 3, cin, cout), (3, 2, 0, 1))
        x = jax.lax.conv_general_dilated(
            x, w_oihw, (stride, stride), ((1, 1), (1, 1)),
            dimension_numbers=("NCHW", "OIHW", "NCHW"),
            precision=jax.lax.Precision.HIGHEST)
        x = x * s.reshape(1, cout, 1, 1) + b.reshape(1, cout, 1, 1)
        x = jnp.maximum(x, 0.0)
    x = jax.lax.reduce_window(
        x, -jnp.inf, jax.lax.max,
        (1, 1, 3, 3), (1, 1, 2, 2), ((0, 0), (0, 0), (1, 1), (1, 1)))
    return x


# ---------------------------------- main ------------------------------------ #

if __name__ == "__main__":
    key = jax.random.PRNGKey(0)
    kx, kp = jax.random.split(key)

    in_channels, out_channels = 4, 8
    x = jax.random.normal(kx, (2, in_channels, 16, 16), jnp.float32)  # NCHW
    params = init_params(kp, in_channels, out_channels)

    out = jax.block_until_ready(se_init_block(x, params))
    assert out.shape == (2, out_channels, 4, 4), out.shape

    ref = jax.block_until_ready(se_init_block_ref(x, params))
    max_diff = float(jnp.max(jnp.abs(out - ref)))
    # bf16 MXU operands (f32 accumulation) vs. an all-f32 HIGHEST-precision
    # reference across three stacked convs -> allow a slightly looser bound.
    assert max_diff < 5e-2, f"mismatch vs reference: max abs diff {max_diff}"

    print("KERNEL_OK")
</pallas_src>

<mosaic_0001>
module attributes {stable_mosaic.version = 11 : i64} {
  func.func @_se_init_block_kernel(%arg0: i32, %arg1: memref<1x16x16x4xf32, #tpu.memory_space<vmem>>, %arg2: memref<1152x4xbf16, #tpu.memory_space<vmem>>, %arg3: memref<1x4xf32, #tpu.memory_space<vmem>>, %arg4: memref<1x4xf32, #tpu.memory_space<vmem>>, %arg5: memref<1152x4xbf16, #tpu.memory_space<vmem>>, %arg6: memref<1x4xf32, #tpu.memory_space<vmem>>, %arg7: memref<1x4xf32, #tpu.memory_space<vmem>>, %arg8: memref<1152x8xbf16, #tpu.memory_space<vmem>>, %arg9: memref<1x8xf32, #tpu.memory_space<vmem>>, %arg10: memref<1x8xf32, #tpu.memory_space<vmem>>, %arg11: memref<1x4x4x8xf32, #tpu.memory_space<vmem>>, %arg12: memref<18x18x128xf32, #tpu.memory_space<vmem>>, %arg13: memref<10x10x128xf32, #tpu.memory_space<vmem>>, %arg14: memref<10x10x128xf32, #tpu.memory_space<vmem>>, %arg15: memref<10x10x8xf32, #tpu.memory_space<vmem>>, %arg16: memref<64x1152xbf16, #tpu.memory_space<vmem>>) attributes {dimension_semantics = [#tpu.dimension_semantics<parallel>], iteration_bounds = array<i64: 2>, scalar_prefetch = 0 : i64, scratch_operands = 5 : i64, tpu.core_type = #tpu.core_type<tc>, window_params = [{transform_indices = @transform_0, window_bounds = array<i64: 1, 16, 16, 4>}, {pipeline_mode = #tpu.pipeline_mode<synchronous>, transform_indices = @transform_1, window_bounds = array<i64: 1152, 4>}, {pipeline_mode = #tpu.pipeline_mode<synchronous>, transform_indices = @transform_2, window_bounds = array<i64: 1, 4>}, {pipeline_mode = #tpu.pipeline_mode<synchronous>, transform_indices = @transform_3, window_bounds = array<i64: 1, 4>}, {pipeline_mode = #tpu.pipeline_mode<synchronous>, transform_indices = @transform_4, window_bounds = array<i64: 1152, 4>}, {pipeline_mode = #tpu.pipeline_mode<synchronous>, transform_indices = @transform_5, window_bounds = array<i64: 1, 4>}, {pipeline_mode = #tpu.pipeline_mode<synchronous>, transform_indices = @transform_6, window_bounds = array<i64: 1, 4>}, {pipeline_mode = #tpu.pipeline_mode<synchronous>, transform_indices = @transform_7, window_bounds = array<i64: 1152, 8>}, {pipeline_mode = #tpu.pipeline_mode<synchronous>, transform_indices = @transform_8, window_bounds = array<i64: 1, 8>}, {pipeline_mode = #tpu.pipeline_mode<synchronous>, transform_indices = @transform_9, window_bounds = array<i64: 1, 8>}, {transform_indices = @transform_10, window_bounds = array<i64: 1, 4, 4, 8>}]} {
    %cst = arith.constant 0.000000e+00 : f32
    %0 = vector.broadcast %cst : f32 to vector<18x18x128xf32>
    %c0 = arith.constant 0 : index
    %c0_0 = arith.constant 0 : index
    %c0_1 = arith.constant 0 : index
    %1 = vector.load %arg12[%c0, %c0_0, %c0_1] : memref<18x18x128xf32, #tpu.memory_space<vmem>>, vector<18x18x128xf32>
    tpu.vector_store %arg12[%c0, %c0_0, %c0_1], %0 {strides = array<i32>} : memref<18x18x128xf32, #tpu.memory_space<vmem>>, vector<18x18x128xf32>,
    %c0_2 = arith.constant 0 : index
    %c0_3 = arith.constant 0 : index
    %c0_4 = arith.constant 0 : index
    %c0_5 = arith.constant 0 : index
    %2 = vector.load %arg1[%c0_2, %c0_3, %c0_4, %c0_5] : memref<1x16x16x4xf32, #tpu.memory_space<vmem>>, vector<1x16x16x4xf32>
    %3 = vector.shape_cast %2 : vector<1x16x16x4xf32> to vector<16x16x4xf32>
    %c1 = arith.constant 1 : index
    %c1_6 = arith.constant 1 : index
    %c0_7 = arith.constant 0 : index
    %4 = vector.load %arg12[%c1, %c1_6, %c0_7] : memref<18x18x128xf32, #tpu.memory_space<vmem>>, vector<16x16x4xf32>
    tpu.vector_store %arg12[%c1, %c1_6, %c0_7], %3 {strides = array<i32>} : memref<18x18x128xf32, #tpu.memory_space<vmem>>, vector<16x16x4xf32>,
    %c0_8 = arith.constant 0 : index
    %c0_9 = arith.constant 0 : index
    %c0_10 = arith.constant 0 : index
    %5 = tpu.strided_load %arg12[%c0_8, %c0_9, %c0_10] {strides = array<i32: 2, 2, 1>} : memref<18x18x128xf32, #tpu.memory_space<vmem>>, vector<8x8x128xf32>
    %6 = vector.shape_cast %5 : vector<8x8x128xf32> to vector<64x128xf32>
    %7 = arith.truncf %6 : vector<64x128xf32> to vector<64x128xbf16>
    %c0_11 = arith.constant 0 : index
    %c0_12 = arith.constant 0 : index
    %8 = vector.load %arg16[%c0_11, %c0_12] : memref<64x1152xbf16, #tpu.memory_space<vmem>>, vector<64x128xbf16>
    tpu.vector_store %arg16[%c0_11, %c0_12], %7 {strides = array<i32>} : memref<64x1152xbf16, #tpu.memory_space<vmem>>, vector<64x128xbf16>,
    %c0_13 = arith.constant 0 : index
    %c1_14 = arith.constant 1 : index
    %c0_15 = arith.constant 0 : index
    %9 = tpu.strided_load %arg12[%c0_13, %c1_14, %c0_15] {strides = array<i32: 2, 2, 1>} : memref<18x18x128xf32, #tpu.memory_space<vmem>>, vector<8x8x128xf32>
    %10 = vector.shape_cast %9 : vector<8x8x128xf32> to vector<64x128xf32>
    %11 = arith.truncf %10 : vector<64x128xf32> to vector<64x128xbf16>
    %c0_16 = arith.constant 0 : index
    %c128 = arith.constant 128 : index
    %12 = vector.load %arg16[%c0_16, %c128] : memref<64x1152xbf16, #tpu.memory_space<vmem>>, vector<64x128xbf16>
    tpu.vector_store %arg16[%c0_16, %c128], %11 {strides = array<i32>} : memref<64x1152xbf16, #tpu.memory_space<vmem>>, vector<64x128xbf16>,
    %c0_17 = arith.constant 0 : index
    %c2 = arith.constant 2 : index
    %c0_18 = arith.constant 0 : index
    %13 = tpu.strided_load %arg12[%c0_17, %c2, %c0_18] {strides = array<i32: 2, 2, 1>} : memref<18x18x128xf32, #tpu.memory_space<vmem>>, vector<8x8x128xf32>
    %14 = vector.shape_cast %13 : vector<8x8x128xf32> to vector<64x128xf32>
    %15 = arith.truncf %14 : vector<64x128xf32> to vector<64x128xbf16>
    %c0_19 = arith.constant 0 : index
    %c256 = arith.constant 256 : index
    %16 = vector.load %arg16[%c0_19, %c256] : memref<64x1152xbf16, #tpu.memory_space<vmem>>, vector<64x128xbf16>
    tpu.vector_store %arg16[%c0_19, %c256], %15 {strides = array<i32>} : memref<64x1152xbf16, #tpu.memory_space<vmem>>, vector<64x128xbf16>,
    %c1_20 = arith.constant 1 : index
    %c0_21 = arith.constant 0 : index
    %c0_22 = arith.constant 0 : index
    %17 = tpu.strided_load %arg12[%c1_20, %c0_21, %c0_22] {strides = array<i32: 2, 2, 1>} : memref<18x18x128xf32, #tpu.memory_space<vmem>>, vector<8x8x128xf32>
    %18 = vector.shape_cast %17 : vector<8x8x128xf32> to vector<64x128xf32>
    %19 = arith.truncf %18 : vector<64x128xf32> to vector<64x128xbf16>
    %c0_23 = arith.constant 0 : index
    %c384 = arith.constant 384 : index
    %20 = vector.load %arg16[%c0_23, %c384] : memref<64x1152xbf16, #tpu.memory_space<vmem>>, vector<64x128xbf16>
    tpu.vector_store %arg16[%c0_23, %c384], %19 {strides = array<i32>} : memref<64x1152xbf16, #tpu.memory_space<vmem>>, vector<64x128xbf16>,
    %c1_24 = arith.constant 1 : index
    %c1_25 = arith.constant 1 : index
    %c0_26 = arith.constant 0 : index
    %21 = tpu.strided_load %arg12[%c1_24, %c1_25, %c0_26] {strides = array<i32: 2, 2, 1>} : memref<18x18x128xf32, #tpu.memory_space<vmem>>, vector<8x8x128xf32>
    %22 = vector.shape_cast %21 : vector<8x8x128xf32> to vector<64x128xf32>
    %23 = arith.truncf %22 : vector<64x128xf32> to vector<64x128xbf16>
    %c0_27 = arith.constant 0 : index
    %c512 = arith.constant 512 : index
    %24 = vector.load %arg16[%c0_27, %c512] : memref<64x1152xbf16, #tpu.memory_space<vmem>>, vector<64x128xbf16>
    tpu.vector_store %arg16[%c0_27, %c512], %23 {strides = array<i32>} : memref<64x1152xbf16, #tpu.memory_space<vmem>>, vector<64x128xbf16>,
    %c1_28 = arith.constant 1 : index
    %c2_29 = arith.constant 2 : index
    %c0_30 = arith.constant 0 : index
    %25 = tpu.strided_load %arg12[%c1_28, %c2_29, %c0_30] {strides = array<i32: 2, 2, 1>} : memref<18x18x128xf32, #tpu.memory_space<vmem>>, vector<8x8x128xf32>
    %26 = vector.shape_cast %25 : vector<8x8x128xf32> to vector<64x128xf32>
    %27 = arith.truncf %26 : vector<64x128xf32> to vector<64x128xbf16>
    %c0_31 = arith.constant 0 : index
    %c640 = arith.constant 640 : index
    %28 = vector.load %arg16[%c0_31, %c640] : memref<64x1152xbf16, #tpu.memory_space<vmem>>, vector<64x128xbf16>
    tpu.vector_store %arg16[%c0_31, %c640], %27 {strides = array<i32>} : memref<64x1152xbf16, #tpu.memory_space<vmem>>, vector<64x128xbf16>,
    %c2_32 = arith.constant 2 : index
    %c0_33 = arith.constant 0 : index
    %c0_34 = arith.constant 0 : index
    %29 = tpu.strided_load %arg12[%c2_32, %c0_33, %c0_34] {strides = array<i32: 2, 2, 1>} : memref<18x18x128xf32, #tpu.memory_space<vmem>>, vector<8x8x128xf32>
    %30 = vector.shape_cast %29 : vector<8x8x128xf32> to vector<64x128xf32>
    %31 = arith.truncf %30 : vector<64x128xf32> to vector<64x128xbf16>
    %c0_35 = arith.constant 0 : index
    %c768 = arith.constant 768 : index
    %32 = vector.load %arg16[%c0_35, %c768] : memref<64x1152xbf16, #tpu.memory_space<vmem>>, vector<64x128xbf16>
    tpu.vector_store %arg16[%c0_35, %c768], %31 {strides = array<i32>} : memref<64x1152xbf16, #tpu.memory_space<vmem>>, vector<64x128xbf16>,
    %c2_36 = arith.constant 2 : index
    %c1_37 = arith.constant 1 : index
    %c0_38 = arith.constant 0 : index
    %33 = tpu.strided_load %arg12[%c2_36, %c1_37, %c0_38] {strides = array<i32: 2, 2, 1>} : memref<18x18x128xf32, #tpu.memory_space<vmem>>, vector<8x8x128xf32>
    %34 = vector.shape_cast %33 : vector<8x8x128xf32> to vector<64x128xf32>
    %35 = arith.truncf %34 : vector<64x128xf32> to vector<64x128xbf16>
    %c0_39 = arith.constant 0 : index
    %c896 = arith.constant 896 : index
    %36 = vector.load %arg16[%c0_39, %c896] : memref<64x1152xbf16, #tpu.memory_space<vmem>>, vector<64x128xbf16>
    tpu.vector_store %arg16[%c0_39, %c896], %35 {strides = array<i32>} : memref<64x1152xbf16, #tpu.memory_space<vmem>>, vector<64x128xbf16>,
    %c2_40 = arith.constant 2 : index
    %c2_41 = arith.constant 2 : index
    %c0_42 = arith.constant 0 : index
    %37 = tpu.strided_load %arg12[%c2_40, %c2_41, %c0_42] {strides = array<i32: 2, 2, 1>} : memref<18x18x128xf32, #tpu.memory_space<vmem>>, vector<8x8x128xf32>
    %38 = vector.shape_cast %37 : vector<8x8x128xf32> to vector<64x128xf32>
    %39 = arith.truncf %38 : vector<64x128xf32> to vector<64x128xbf16>
    %c0_43 = arith.constant 0 : index
    %c1024 = arith.constant 1024 : index
    %40 = vector.load %arg16[%c0_43, %c1024] : memref<64x1152xbf16, #tpu.memory_space<vmem>>, vector<64x128xbf16>
    tpu.vector_store %arg16[%c0_43, %c1024], %39 {strides = array<i32>} : memref<64x1152xbf16, #tpu.memory_space<vmem>>, vector<64x128xbf16>,
    %c0_44 = arith.constant 0 : index
    %c0_45 = arith.constant 0 : index
    %41 = vector.load %arg16[%c0_44, %c0_45] : memref<64x1152xbf16, #tpu.memory_space<vmem>>, vector<64x1152xbf16>
    %c0_46 = arith.constant 0 : index
    %c0_47 = arith.constant 0 : index
    %42 = vector.load %arg2[%c0_46, %c0_47] : memref<1152x4xbf16, #tpu.memory_space<vmem>>, vector<1152x4xbf16>
    %cst_48 = arith.constant dense<0.000000e+00> : vector<64x4xf32>
    %43 = tpu.matmul %41, %42, %cst_48 {dimension_numbers = #tpu.dot_dimension_numbers<[1], [0], [0], [1], [0, 0, 1, 1], [], []>} : vector<64x1152xbf16>, vector<1152x4xbf16>, vector<64x4xf32> -> vector<64x4xf32>
    %c0_49 = arith.constant 0 : index
    %c0_50 = arith.constant 0 : index
    %44 = vector.load %arg3[%c0_49, %c0_50] : memref<1x4xf32, #tpu.memory_space<vmem>>, vector<1x4xf32>
    %45 = vector.broadcast %44 : vector<1x4xf32> to vector<64x4xf32>
    %46 = arith.mulf %43, %45 : vector<64x4xf32>
    %c0_51 = arith.constant 0 : index
    %c0_52 = arith.constant 0 : index
    %47 = vector.load %arg4[%c0_51, %c0_52] : memref<1x4xf32, #tpu.memory_space<vmem>>, vector<1x4xf32>
    %48 = vector.broadcast %47 : vector<1x4xf32> to vector<64x4xf32>
    %49 = arith.addf %46, %48 : vector<64x4xf32>
    %cst_53 = arith.constant 0.000000e+00 : f32
    %50 = vector.broadcast %cst_53 : f32 to vector<64x4xf32>
    %51 = arith.maximumf %49, %50 : vector<64x4xf32>
    %cst_54 = arith.constant 0.000000e+00 : f32
    %52 = vector.broadcast %cst_54 : f32 to vector<10x10x128xf32>
    %c0_55 = arith.constant 0 : index
    %c0_56 = arith.constant 0 : index
    %c0_57 = arith.constant 0 : index
    %53 = vector.load %arg13[%c0_55, %c0_56, %c0_57] : memref<10x10x128xf32, #tpu.memory_space<vmem>>, vector<10x10x128xf32>
    tpu.vector_store %arg13[%c0_55, %c0_56, %c0_57], %52 {strides = array<i32>} : memref<10x10x128xf32, #tpu.memory_space<vmem>>, vector<10x10x128xf32>,
    %54 = vector.shape_cast %51 : vector<64x4xf32> to vector<8x8x4xf32>
    %c1_58 = arith.constant 1 : index
    %c1_59 = arith.constant 1 : index
    %c0_60 = arith.constant 0 : index
    %55 = vector.load %arg13[%c1_58, %c1_59, %c0_60] : memref<10x10x128xf32, #tpu.memory_space<vmem>>, vector<8x8x4xf32>
    tpu.vector_store %arg13[%c1_58, %c1_59, %c0_60], %54 {strides = array<i32>} : memref<10x10x128xf32, #tpu.memory_space<vmem>>, vector<8x8x4xf32>,
    %c0_61 = arith.constant 0 : index
    %c0_62 = arith.constant 0 : index
    %c0_63 = arith.constant 0 : index
    %56 = vector.load %arg13[%c0_61, %c0_62, %c0_63] : memref<10x10x128xf32, #tpu.memory_space<vmem>>, vector<8x8x128xf32>
    %57 = vector.shape_cast %56 : vector<8x8x128xf32> to vector<64x128xf32>
    %58 = arith.truncf %57 : vector<64x128xf32> to vector<64x128xbf16>
    %c0_64 = arith.constant 0 : index
    %c0_65 = arith.constant 0 : index
    %59 = vector.load %arg16[%c0_64, %c0_65] : memref<64x1152xbf16, #tpu.memory_space<vmem>>, vector<64x128xbf16>
    tpu.vector_store %arg16[%c0_64, %c0_65], %58 {strides = array<i32>} : memref<64x1152xbf16, #tpu.memory_space<vmem>>, vector<64x128xbf16>,
    %c0_66 = arith.constant 0 : index
    %c1_67 = arith.constant 1 : index
    %c0_68 = arith.constant 0 : index
    %60 = vector.load %arg13[%c0_66, %c1_67, %c0_68] : memref<10x10x128xf32, #tpu.memory_space<vmem>>, vector<8x8x128xf32>
    %61 = vector.shape_cast %60 : vector<8x8x128xf32> to vector<64x128xf32>
    %62 = arith.truncf %61 : vector<64x128xf32> to vector<64x128xbf16>
    %c0_69 = arith.constant 0 : index
    %c128_70 = arith.constant 128 : index
    %63 = vector.load %arg16[%c0_69, %c128_70] : memref<64x1152xbf16, #tpu.memory_space<vmem>>, vector<64x128xbf16>
    tpu.vector_store %arg16[%c0_69, %c128_70], %62 {strides = array<i32>} : memref<64x1152xbf16, #tpu.memory_space<vmem>>, vector<64x128xbf16>,
    %c0_71 = arith.constant 0 : index
    %c2_72 = arith.constant 2 : index
    %c0_73 = arith.constant 0 : index
    %64 = vector.load %arg13[%c0_71, %c2_72, %c0_73] : memref<10x10x128xf32, #tpu.memory_space<vmem>>, vector<8x8x128xf32>
    %65 = vector.shape_cast %64 : vector<8x8x128xf32> to vector<64x128xf32>
    %66 = arith.truncf %65 : vector<64x128xf32> to vector<64x128xbf16>
    %c0_74 = arith.constant 0 : index
    %c256_75 = arith.constant 256 : index
    %67 = vector.load %arg16[%c0_74, %c256_75] : memref<64x1152xbf16, #tpu.memory_space<vmem>>, vector<64x128xbf16>
    tpu.vector_store %arg16[%c0_74, %c256_75], %66 {strides = array<i32>} : memref<64x1152xbf16, #tpu.memory_space<vmem>>, vector<64x128xbf16>,
    %c1_76 = arith.constant 1 : index
    %c0_77 = arith.constant 0 : index
    %c0_78 = arith.constant 0 : index
    %68 = vector.load %arg13[%c1_76, %c0_77, %c0_78] : memref<10x10x128xf32, #tpu.memory_space<vmem>>, vector<8x8x128xf32>
    %69 = vector.shape_cast %68 : vector<8x8x128xf32> to vector<64x128xf32>
    %70 = arith.truncf %69 : vector<64x128xf32> to vector<64x128xbf16>
    %c0_79 = arith.constant 0 : index
    %c384_80 = arith.constant 384 : index
    %71 = vector.load %arg16[%c0_79, %c384_80] : memref<64x1152xbf16, #tpu.memory_space<vmem>>, vector<64x128xbf16>
    tpu.vector_store %arg16[%c0_79, %c384_80], %70 {strides = array<i32>} : memref<64x1152xbf16, #tpu.memory_space<vmem>>, vector<64x128xbf16>,
    %c1_81 = arith.constant 1 : index
    %c1_82 = arith.constant 1 : index
    %c0_83 = arith.constant 0 : index
    %72 = vector.load %arg13[%c1_81, %c1_82, %c0_83] : memref<10x10x128xf32, #tpu.memory_space<vmem>>, vector<8x8x128xf32>
    %73 = vector.shape_cast %72 : vector<8x8x128xf32> to vector<64x128xf32>
    %74 = arith.truncf %73 : vector<64x128xf32> to vector<64x128xbf16>
    %c0_84 = arith.constant 0 : index
    %c512_85 = arith.constant 512 : index
    %75 = vector.load %arg16[%c0_84, %c512_85] : memref<64x1152xbf16, #tpu.memory_space<vmem>>, vector<64x128xbf16>
    tpu.vector_store %arg16[%c0_84, %c512_85], %74 {strides = array<i32>} : memref<64x1152xbf16, #tpu.memory_space<vmem>>, vector<64x128xbf16>,
    %c1_86 = arith.constant 1 : index
    %c2_87 = arith.constant 2 : index
    %c0_88 = arith.constant 0 : index
    %76 = vector.load %arg13[%c1_86, %c2_87, %c0_88] : memref<10x10x128xf32, #tpu.memory_space<vmem>>, vector<8x8x128xf32>
    %77 = vector.shape_cast %76 : vector<8x8x128xf32> to vector<64x128xf32>
    %78 = arith.truncf %77 : vector<64x128xf32> to vector<64x128xbf16>
    %c0_89 = arith.constant 0 : index
    %c640_90 = arith.constant 640 : index
    %79 = vector.load %arg16[%c0_89, %c640_90] : memref<64x1152xbf16, #tpu.memory_space<vmem>>, vector<64x128xbf16>
    tpu.vector_store %arg16[%c0_89, %c640_90], %78 {strides = array<i32>} : memref<64x1152xbf16, #tpu.memory_space<vmem>>, vector<64x128xbf16>,
    %c2_91 = arith.constant 2 : index
    %c0_92 = arith.constant 0 : index
    %c0_93 = arith.constant 0 : index
    %80 = vector.load %arg13[%c2_91, %c0_92, %c0_93] : memref<10x10x128xf32, #tpu.memory_space<vmem>>, vector<8x8x128xf32>
    %81 = vector.shape_cast %80 : vector<8x8x128xf32> to vector<64x128xf32>
    %82 = arith.truncf %81 : vector<64x128xf32> to vector<64x128xbf16>
    %c0_94 = arith.constant 0 : index
    %c768_95 = arith.constant 768 : index
    %83 = vector.load %arg16[%c0_94, %c768_95] : memref<64x1152xbf16, #tpu.memory_space<vmem>>, vector<64x128xbf16>
    tpu.vector_store %arg16[%c0_94, %c768_95], %82 {strides = array<i32>} : memref<64x1152xbf16, #tpu.memory_space<vmem>>, vector<64x128xbf16>,
    %c2_96 = arith.constant 2 : index
    %c1_97 = arith.constant 1 : index
    %c0_98 = arith.constant 0 : index
    %84 = vector.load %arg13[%c2_96, %c1_97, %c0_98] : memref<10x10x128xf32, #tpu.memory_space<vmem>>, vector<8x8x128xf32>
    %85 = vector.shape_cast %84 : vector<8x8x128xf32> to vector<64x128xf32>
    %86 = arith.truncf %85 : vector<64x128xf32> to vector<64x128xbf16>
    %c0_99 = arith.constant 0 : index
    %c896_100 = arith.constant 896 : index
    %87 = vector.load %arg16[%c0_99, %c896_100] : memref<64x1152xbf16, #tpu.memory_space<vmem>>, vector<64x128xbf16>
    tpu.vector_store %arg16[%c0_99, %c896_100], %86 {strides = array<i32>} : memref<64x1152xbf16, #tpu.memory_space<vmem>>, vector<64x128xbf16>,
    %c2_101 = arith.constant 2 : index
    %c2_102 = arith.constant 2 : index
    %c0_103 = arith.constant 0 : index
    %88 = vector.load %arg13[%c2_101, %c2_102, %c0_103] : memref<10x10x128xf32, #tpu.memory_space<vmem>>, vector<8x8x128xf32>
    %89 = vector.shape_cast %88 : vector<8x8x128xf32> to vector<64x128xf32>
    %90 = arith.truncf %89 : vector<64x128xf32> to vector<64x128xbf16>
    %c0_104 = arith.constant 0 : index
    %c1024_105 = arith.constant 1024 : index
    %91 = vector.load %arg16[%c0_104, %c1024_105] : memref<64x1152xbf16, #tpu.memory_space<vmem>>, vector<64x128xbf16>
    tpu.vector_store %arg16[%c0_104, %c1024_105], %90 {strides = array<i32>} : memref<64x1152xbf16, #tpu.memory_space<vmem>>, vector<64x128xbf16>,
    %c0_106 = arith.constant 0 : index
    %c0_107 = arith.constant 0 : index
    %92 = vector.load %arg16[%c0_106, %c0_107] : memref<64x1152xbf16, #tpu.memory_space<vmem>>, vector<64x1152xbf16>
    %c0_108 = arith.constant 0 : index
    %c0_109 = arith.constant 0 : index
    %93 = vector.load %arg5[%c0_108, %c0_109] : memref<1152x4xbf16, #tpu.memory_space<vmem>>, vector<1152x4xbf16>
    %cst_110 = arith.constant dense<0.000000e+00> : vector<64x4xf32>
    %94 = tpu.matmul %92, %93, %cst_110 {dimension_numbers = #tpu.dot_dimension_numbers<[1], [0], [0], [1], [0, 0, 1, 1], [], []>} : vector<64x1152xbf16>, vector<1152x4xbf16>, vector<64x4xf32> -> vector<64x4xf32>
    %c0_111 = arith.constant 0 : index
    %c0_112 = arith.constant 0 : index
    %95 = vector.load %arg6[%c0_111, %c0_112] : memref<1x4xf32, #tpu.memory_space<vmem>>, vector<1x4xf32>
    %96 = vector.broadcast %95 : vector<1x4xf32> to vector<64x4xf32>
    %97 = arith.mulf %94, %96 : vector<64x4xf32>
    %c0_113 = arith.constant 0 : index
    %c0_114 = arith.constant 0 : index
    %98 = vector.load %arg7[%c0_113, %c0_114] : memref<1x4xf32, #tpu.memory_space<vmem>>, vector<1x4xf32>
    %99 = vector.broadcast %98 : vector<1x4xf32> to vector<64x4xf32>
    %100 = arith.addf %97, %99 : vector<64x4xf32>
    %cst_115 = arith.constant 0.000000e+00 : f32
    %101 = vector.broadcast %cst_115 : f32 to vector<64x4xf32>
    %102 = arith.maximumf %100, %101 : vector<64x4xf32>
    %cst_116 = arith.constant 0.000000e+00 : f32
    %103 = vector.broadcast %cst_116 : f32 to vector<10x10x128xf32>
    %c0_117 = arith.constant 0 : index
    %c0_118 = arith.constant 0 : index
    %c0_119 = arith.constant 0 : index
    %104 = vector.load %arg14[%c0_117, %c0_118, %c0_119] : memref<10x10x128xf32, #tpu.memory_space<vmem>>, vector<10x10x128xf32>
    tpu.vector_store %arg14[%c0_117, %c0_118, %c0_119], %103 {strides = array<i32>} : memref<10x10x128xf32, #tpu.memory_space<vmem>>, vector<10x10x128xf32>,
    %105 = vector.shape_cast %102 : vector<64x4xf32> to vector<8x8x4xf32>
    %c1_120 = arith.constant 1 : index
    %c1_121 = arith.constant 1 : index
    %c0_122 = arith.constant 0 : index
    %106 = vector.load %arg14[%c1_120, %c1_121, %c0_122] : memref<10x10x128xf32, #tpu.memory_space<vmem>>, vector<8x8x4xf32>
    tpu.vector_store %arg14[%c1_120, %c1_121, %c0_122], %105 {strides = array<i32>} : memref<10x10x128xf32, #tpu.memory_space<vmem>>, vector<8x8x4xf32>,
    %c0_123 = arith.constant 0 : index
    %c0_124 = arith.constant 0 : index
    %c0_125 = arith.constant 0 : index
    %107 = vector.load %arg14[%c0_123, %c0_124, %c0_125] : memref<10x10x128xf32, #tpu.memory_space<vmem>>, vector<8x8x128xf32>
    %108 = vector.shape_cast %107 : vector<8x8x128xf32> to vector<64x128xf32>
    %109 = arith.truncf %108 : vector<64x128xf32> to vector<64x128xbf16>
    %c0_126 = arith.constant 0 : index
    %c0_127 = arith.constant 0 : index
    %110 = vector.load %arg16[%c0_126, %c0_127] : memref<64x1152xbf16, #tpu.memory_space<vmem>>, vector<64x128xbf16>
    tpu.vector_store %arg16[%c0_126, %c0_127], %109 {strides = array<i32>} : memref<64x1152xbf16, #tpu.memory_space<vmem>>, vector<64x128xbf16>,
    %c0_128 = arith.constant 0 : index
    %c1_129 = arith.constant 1 : index
    %c0_130 = arith.constant 0 : index
    %111 = vector.load %arg14[%c0_128, %c1_129, %c0_130] : memref<10x10x128xf32, #tpu.memory_space<vmem>>, vector<8x8x128xf32>
    %112 = vector.shape_cast %111 : vector<8x8x128xf32> to vector<64x128xf32>
    %113 = arith.truncf %112 : vector<64x128xf32> to vector<64x128xbf16>
    %c0_131 = arith.constant 0 : index
    %c128_132 = arith.constant 128 : index
    %114 = vector.load %arg16[%c0_131, %c128_132] : memref<64x1152xbf16, #tpu.memory_space<vmem>>, vector<64x128xbf16>
    tpu.vector_store %arg16[%c0_131, %c128_132], %113 {strides = array<i32>} : memref<64x1152xbf16, #tpu.memory_space<vmem>>, vector<64x128xbf16>,
    %c0_133 = arith.constant 0 : index
    %c2_134 = arith.constant 2 : index
    %c0_135 = arith.constant 0 : index
    %115 = vector.load %arg14[%c0_133, %c2_134, %c0_135] : memref<10x10x128xf32, #tpu.memory_space<vmem>>, vector<8x8x128xf32>
    %116 = vector.shape_cast %115 : vector<8x8x128xf32> to vector<64x128xf32>
    %117 = arith.truncf %116 : vector<64x128xf32> to vector<64x128xbf16>
    %c0_136 = arith.constant 0 : index
    %c256_137 = arith.constant 256 : index
    %118 = vector.load %arg16[%c0_136, %c256_137] : memref<64x1152xbf16, #tpu.memory_space<vmem>>, vector<64x128xbf16>
    tpu.vector_store %arg16[%c0_136, %c256_137], %117 {strides = array<i32>} : memref<64x1152xbf16, #tpu.memory_space<vmem>>, vector<64x128xbf16>,
    %c1_138 = arith.constant 1 : index
    %c0_139 = arith.constant 0 : index
    %c0_140 = arith.constant 0 : index
    %119 = vector.load %arg14[%c1_138, %c0_139, %c0_140] : memref<10x10x128xf32, #tpu.memory_space<vmem>>, vector<8x8x128xf32>
    %120 = vector.shape_cast %119 : vector<8x8x128xf32> to vector<64x128xf32>
    %121 = arith.truncf %120 : vector<64x128xf32> to vector<64x128xbf16>
    %c0_141 = arith.constant 0 : index
    %c384_142 = arith.constant 384 : index
    %122 = vector.load %arg16[%c0_141, %c384_142] : memref<64x1152xbf16, #tpu.memory_space<vmem>>, vector<64x128xbf16>
    tpu.vector_store %arg16[%c0_141, %c384_142], %121 {strides = array<i32>} : memref<64x1152xbf16, #tpu.memory_space<vmem>>, vector<64x128xbf16>,
    %c1_143 = arith.constant 1 : index
    %c1_144 = arith.constant 1 : index
    %c0_145 = arith.constant 0 : index
    %123 = vector.load %arg14[%c1_143, %c1_144, %c0_145] : memref<10x10x128xf32, #tpu.memory_space<vmem>>, vector<8x8x128xf32>
    %124 = vector.shape_cast %123 : vector<8x8x128xf32> to vector<64x128xf32>
    %125 = arith.truncf %124 : vector<64x128xf32> to vector<64x128xbf16>
    %c0_146 = arith.constant 0 : index
    %c512_147 = arith.constant 512 : index
    %126 = vector.load %arg16[%c0_146, %c512_147] : memref<64x1152xbf16, #tpu.memory_space<vmem>>, vector<64x128xbf16>
    tpu.vector_store %arg16[%c0_146, %c512_147], %125 {strides = array<i32>} : memref<64x1152xbf16, #tpu.memory_space<vmem>>, vector<64x128xbf16>,
    %c1_148 = arith.constant 1 : index
    %c2_149 = arith.constant 2 : index
    %c0_150 = arith.constant 0 : index
    %127 = vector.load %arg14[%c1_148, %c2_149, %c0_150] : memref<10x10x128xf32, #tpu.memory_space<vmem>>, vector<8x8x128xf32>
    %128 = vector.shape_cast %127 : vector<8x8x128xf32> to vector<64x128xf32>
    %129 = arith.truncf %128 : vector<64x128xf32> to vector<64x128xbf16>
    %c0_151 = arith.constant 0 : index
    %c640_152 = arith.constant 640 : index
    %130 = vector.load %arg16[%c0_151, %c640_152] : memref<64x1152xbf16, #tpu.memory_space<vmem>>, vector<64x128xbf16>
    tpu.vector_store %arg16[%c0_151, %c640_152], %129 {strides = array<i32>} : memref<64x1152xbf16, #tpu.memory_space<vmem>>, vector<64x128xbf16>,
    %c2_153 = arith.constant 2 : index
    %c0_154 = arith.constant 0 : index
    %c0_155 = arith.constant 0 : index
    %131 = vector.load %arg14[%c2_153, %c0_154, %c0_155] : memref<10x10x128xf32, #tpu.memory_space<vmem>>, vector<8x8x128xf32>
    %132 = vector.shape_cast %131 : vector<8x8x128xf32> to vector<64x128xf32>
    %133 = arith.truncf %132 : vector<64x128xf32> to vector<64x128xbf16>
    %c0_156 = arith.constant 0 : index
    %c768_157 = arith.constant 768 : index
    %134 = vector.load %arg16[%c0_156, %c768_157] : memref<64x1152xbf16, #tpu.memory_space<vmem>>, vector<64x128xbf16>
    tpu.vector_store %arg16[%c0_156, %c768_157], %133 {strides = array<i32>} : memref<64x1152xbf16, #tpu.memory_space<vmem>>, vector<64x128xbf16>,
    %c2_158 = arith.constant 2 : index
    %c1_159 = arith.constant 1 : index
    %c0_160 = arith.constant 0 : index
    %135 = vector.load %arg14[%c2_158, %c1_159, %c0_160] : memref<10x10x128xf32, #tpu.memory_space<vmem>>, vector<8x8x128xf32>
    %136 = vector.shape_cast %135 : vector<8x8x128xf32> to vector<64x128xf32>
    %137 = arith.truncf %136 : vector<64x128xf32> to vector<64x128xbf16>
    %c0_161 = arith.constant 0 : index
    %c896_162 = arith.constant 896 : index
    %138 = vector.load %arg16[%c0_161, %c896_162] : memref<64x1152xbf16, #tpu.memory_space<vmem>>, vector<64x128xbf16>
    tpu.vector_store %arg16[%c0_161, %c896_162], %137 {strides = array<i32>} : memref<64x1152xbf16, #tpu.memory_space<vmem>>, vector<64x128xbf16>,
    %c2_163 = arith.constant 2 : index
    %c2_164 = arith.constant 2 : index
    %c0_165 = arith.constant 0 : index
    %139 = vector.load %arg14[%c2_163, %c2_164, %c0_165] : memref<10x10x128xf32, #tpu.memory_space<vmem>>, vector<8x8x128xf32>
    %140 = vector.shape_cast %139 : vector<8x8x128xf32> to vector<64x128xf32>
    %141 = arith.truncf %140 : vector<64x128xf32> to vector<64x128xbf16>
    %c0_166 = arith.constant 0 : index
    %c1024_167 = arith.constant 1024 : index
    %142 = vector.load %arg16[%c0_166, %c1024_167] : memref<64x1152xbf16, #tpu.memory_space<vmem>>, vector<64x128xbf16>
    tpu.vector_store %arg16[%c0_166, %c1024_167], %141 {strides = array<i32>} : memref<64x1152xbf16, #tpu.memory_space<vmem>>, vector<64x128xbf16>,
    %c0_168 = arith.constant 0 : index
    %c0_169 = arith.constant 0 : index
    %143 = vector.load %arg16[%c0_168, %c0_169] : memref<64x1152xbf16, #tpu.memory_space<vmem>>, vector<64x1152xbf16>
    %c0_170 = arith.constant 0 : index
    %c0_171 = arith.constant 0 : index
    %144 = vector.load %arg8[%c0_170, %c0_171] : memref<1152x8xbf16, #tpu.memory_space<vmem>>, vector<1152x8xbf16>
    %cst_172 = arith.constant dense<0.000000e+00> : vector<64x8xf32>
    %145 = tpu.matmul %143, %144, %cst_172 {dimension_numbers = #tpu.dot_dimension_numbers<[1], [0], [0], [1], [0, 0, 1, 1], [], []>} : vector<64x1152xbf16>, vector<1152x8xbf16>, vector<64x8xf32> -> vector<64x8xf32>
    %c0_173 = arith.constant 0 : index
    %c0_174 = arith.constant 0 : index
    %146 = vector.load %arg9[%c0_173, %c0_174] : memref<1x8xf32, #tpu.memory_space<vmem>>, vector<1x8xf32>
    %147 = vector.broadcast %146 : vector<1x8xf32> to vector<64x8xf32>
    %148 = arith.mulf %145, %147 : vector<64x8xf32>
    %c0_175 = arith.constant 0 : index
    %c0_176 = arith.constant 0 : index
    %149 = vector.load %arg10[%c0_175, %c0_176] : memref<1x8xf32, #tpu.memory_space<vmem>>, vector<1x8xf32>
    %150 = vector.broadcast %149 : vector<1x8xf32> to vector<64x8xf32>
    %151 = arith.addf %148, %150 : vector<64x8xf32>
    %cst_177 = arith.constant 0.000000e+00 : f32
    %152 = vector.broadcast %cst_177 : f32 to vector<64x8xf32>
    %153 = arith.maximumf %151, %152 : vector<64x8xf32>
    %cst_178 = arith.constant 0.000000e+00 : f32
    %154 = vector.broadcast %cst_178 : f32 to vector<10x10x8xf32>
    %c0_179 = arith.constant 0 : index
    %c0_180 = arith.constant 0 : index
    %c0_181 = arith.constant 0 : index
    %155 = vector.load %arg15[%c0_179, %c0_180, %c0_181] : memref<10x10x8xf32, #tpu.memory_space<vmem>>, vector<10x10x8xf32>
    tpu.vector_store %arg15[%c0_179, %c0_180, %c0_181], %154 {strides = array<i32>} : memref<10x10x8xf32, #tpu.memory_space<vmem>>, vector<10x10x8xf32>,
    %156 = vector.shape_cast %153 : vector<64x8xf32> to vector<8x8x8xf32>
    %c1_182 = arith.constant 1 : index
    %c1_183 = arith.constant 1 : index
    %c0_184 = arith.constant 0 : index
    %157 = vector.load %arg15[%c1_182, %c1_183, %c0_184] : memref<10x10x8xf32, #tpu.memory_space<vmem>>, vector<8x8x8xf32>
    tpu.vector_store %arg15[%c1_182, %c1_183, %c0_184], %156 {strides = array<i32>} : memref<10x10x8xf32, #tpu.memory_space<vmem>>, vector<8x8x8xf32>,
    %c0_185 = arith.constant 0 : index
    %c0_186 = arith.constant 0 : index
    %c0_187 = arith.constant 0 : index
    %158 = tpu.strided_load %arg15[%c0_185, %c0_186, %c0_187] {strides = array<i32: 2, 2, 1>} : memref<10x10x8xf32, #tpu.memory_space<vmem>>, vector<4x4x8xf32>
    %c0_188 = arith.constant 0 : index
    %c1_189 = arith.constant 1 : index
    %c0_190 = arith.constant 0 : index
    %159 = tpu.strided_load %arg15[%c0_188, %c1_189, %c0_190] {strides = array<i32: 2, 2, 1>} : memref<10x10x8xf32, #tpu.memory_space<vmem>>, vector<4x4x8xf32>
    %160 = arith.maximumf %158, %159 : vector<4x4x8xf32>
    %c0_191 = arith.constant 0 : index
    %c2_192 = arith.constant 2 : index
    %c0_193 = arith.constant 0 : index
    %161 = tpu.strided_load %arg15[%c0_191, %c2_192, %c0_193] {strides = array<i32: 2, 2, 1>} : memref<10x10x8xf32, #tpu.memory_space<vmem>>, vector<4x4x8xf32>
    %162 = arith.maximumf %160, %161 : vector<4x4x8xf32>
    %c1_194 = arith.constant 1 : index
    %c0_195 = arith.constant 0 : index
    %c0_196 = arith.constant 0 : index
    %163 = tpu.strided_load %arg15[%c1_194, %c0_195, %c0_196] {strides = array<i32: 2, 2, 1>} : memref<10x10x8xf32, #tpu.memory_space<vmem>>, vector<4x4x8xf32>
    %164 = arith.maximumf %162, %163 : vector<4x4x8xf32>
    %c1_197 = arith.constant 1 : index
    %c1_198 = arith.constant 1 : index
    %c0_199 = arith.constant 0 : index
    %165 = tpu.strided_load %arg15[%c1_197, %c1_198, %c0_199] {strides = array<i32: 2, 2, 1>} : memref<10x10x8xf32, #tpu.memory_space<vmem>>, vector<4x4x8xf32>
    %166 = arith.maximumf %164, %165 : vector<4x4x8xf32>
    %c1_200 = arith.constant 1 : index
    %c2_201 = arith.constant 2 : index
    %c0_202 = arith.constant 0 : index
    %167 = tpu.strided_load %arg15[%c1_200, %c2_201, %c0_202] {strides = array<i32: 2, 2, 1>} : memref<10x10x8xf32, #tpu.memory_space<vmem>>, vector<4x4x8xf32>
    %168 = arith.maximumf %166, %167 : vector<4x4x8xf32>
    %c2_203 = arith.constant 2 : index
    %c0_204 = arith.constant 0 : index
    %c0_205 = arith.constant 0 : index
    %169 = tpu.strided_load %arg15[%c2_203, %c0_204, %c0_205] {strides = array<i32: 2, 2, 1>} : memref<10x10x8xf32, #tpu.memory_space<vmem>>, vector<4x4x8xf32>
    %170 = arith.maximumf %168, %169 : vector<4x4x8xf32>
    %c2_206 = arith.constant 2 : index
    %c1_207 = arith.constant 1 : index
    %c0_208 = arith.constant 0 : index
    %171 = tpu.strided_load %arg15[%c2_206, %c1_207, %c0_208] {strides = array<i32: 2, 2, 1>} : memref<10x10x8xf32, #tpu.memory_space<vmem>>, vector<4x4x8xf32>
    %172 = arith.maximumf %170, %171 : vector<4x4x8xf32>
    %c2_209 = arith.constant 2 : index
    %c2_210 = arith.constant 2 : index
    %c0_211 = arith.constant 0 : index
    %173 = tpu.strided_load %arg15[%c2_209, %c2_210, %c0_211] {strides = array<i32: 2, 2, 1>} : memref<10x10x8xf32, #tpu.memory_space<vmem>>, vector<4x4x8xf32>
    %174 = arith.maximumf %172, %173 : vector<4x4x8xf32>
    %c0_212 = arith.constant 0 : index
    %c0_213 = arith.constant 0 : index
    %c0_214 = arith.constant 0 : index
    %c0_215 = arith.constant 0 : index
    %175 = vector.load %arg11[%c0_212, %c0_213, %c0_214, %c0_215] : memref<1x4x4x8xf32, #tpu.memory_space<vmem>>, vector<1x4x4x8xf32>
    %176 = vector.shape_cast %175 : vector<1x4x4x8xf32> to vector<4x4x8xf32>
    %177 = vector.shape_cast %174 : vector<4x4x8xf32> to vector<1x4x4x8xf32>
    tpu.vector_store %arg11[%c0_212, %c0_213, %c0_214, %c0_215], %177 {strides = array<i32>} : memref<1x4x4x8xf32, #tpu.memory_space<vmem>>, vector<1x4x4x8xf32>,
    return
  }
  func.func @transform_0(%arg0: i32) -> (i32, i32, i32, i32) {
    %c0_i32 = arith.constant 0 : i32
    %c0_i32_0 = arith.constant 0 : i32
    %c0_i32_1 = arith.constant 0 : i32
    %c0_i32_2 = arith.constant 0 : i32
    return %arg0, %c0_i32, %c0_i32_0, %c0_i32_1 : i32, i32, i32, i32
  }
  func.func @transform_1(%arg0: i32) -> (i32, i32) {
    %c0_i32 = arith.constant 0 : i32
    %c0_i32_0 = arith.constant 0 : i32
    %c0_i32_1 = arith.constant 0 : i32
    return %c0_i32, %c0_i32_0 : i32, i32
  }
  func.func @transform_2(%arg0: i32) -> (i32, i32) {
    %c0_i32 = arith.constant 0 : i32
    %c0_i32_0 = arith.constant 0 : i32
    %c0_i32_1 = arith.constant 0 : i32
    return %c0_i32, %c0_i32_0 : i32, i32
  }
  func.func @transform_3(%arg0: i32) -> (i32, i32) {
    %c0_i32 = arith.constant 0 : i32
    %c0_i32_0 = arith.constant 0 : i32
    %c0_i32_1 = arith.constant 0 : i32
    return %c0_i32, %c0_i32_0 : i32, i32
  }
  func.func @transform_4(%arg0: i32) -> (i32, i32) {
    %c0_i32 = arith.constant 0 : i32
    %c0_i32_0 = arith.constant 0 : i32
    %c0_i32_1 = arith.constant 0 : i32
    return %c0_i32, %c0_i32_0 : i32, i32
  }
  func.func @transform_5(%arg0: i32) -> (i32, i32) {
    %c0_i32 = arith.constant 0 : i32
    %c0_i32_0 = arith.constant 0 : i32
    %c0_i32_1 = arith.constant 0 : i32
    return %c0_i32, %c0_i32_0 : i32, i32
  }
  func.func @transform_6(%arg0: i32) -> (i32, i32) {
    %c0_i32 = arith.constant 0 : i32
    %c0_i32_0 = arith.constant 0 : i32
    %c0_i32_1 = arith.constant 0 : i32
    return %c0_i32, %c0_i32_0 : i32, i32
  }
  func.func @transform_7(%arg0: i32) -> (i32, i32) {
    %c0_i32 = arith.constant 0 : i32
    %c0_i32_0 = arith.constant 0 : i32
    %c0_i32_1 = arith.constant 0 : i32
    return %c0_i32, %c0_i32_0 : i32, i32
  }
  func.func @transform_8(%arg0: i32) -> (i32, i32) {
    %c0_i32 = arith.constant 0 : i32
    %c0_i32_0 = arith.constant 0 : i32
    %c0_i32_1 = arith.constant 0 : i32
    return %c0_i32, %c0_i32_0 : i32, i32
  }
  func.func @transform_9(%arg0: i32) -> (i32, i32) {
    %c0_i32 = arith.constant 0 : i32
    %c0_i32_0 = arith.constant 0 : i32
    %c0_i32_1 = arith.constant 0 : i32
    return %c0_i32, %c0_i32_0 : i32, i32
  }
  func.func @transform_10(%arg0: i32) -> (i32, i32, i32, i32) {
    %c0_i32 = arith.constant 0 : i32
    %c0_i32_0 = arith.constant 0 : i32
    %c0_i32_1 = arith.constant 0 : i32
    %c0_i32_2 = arith.constant 0 : i32
    return %arg0, %c0_i32, %c0_i32_0, %c0_i32_1 : i32, i32, i32, i32
  }
}

</mosaic_0001>

<llo_original>
// kernel: se_init_block.1
$region0: #{se_init_block.1}
  #allocation0 [shape = 'u32[]', space=smem, size = 0x4, offset = 0x4, fixed_abs, tag = 'smem constant byte address 0x4 - core index']
  #allocation1 [shape = 'u32[144,128]{1,0:T(1,128)}', space=vmem, size = 0x12000, scoped, tag = 'internal scratch']
  #allocation2 [shape = 'f32[18,18,128]{2,1,0:T(8,128)}', space=vmem, size = 0x36000, scoped, tag = 'scratch operand']
  #allocation3 [shape = 'f32[10,10,128]{2,1,0:T(8,128)}', space=vmem, size = 0x14000, scoped, tag = 'scratch operand']
  #allocation4 [shape = 'f32[10,10,128]{2,1,0:T(8,128)}', space=vmem, size = 0x14000, scoped, tag = 'scratch operand']
  #allocation5 [shape = 'f32[10,10,8]{2,1,0:T(8,128)}', space=vmem, size = 0x14000, scoped, tag = 'scratch operand']
  #allocation6 [shape = 'bf16[64,1152]{1,0:T(16,128)(2,1)}', space=vmem, size = 0x24000, scoped, tag = 'scratch operand']
  %s0 = inlined_call_operand.vmem [shape: f32[2,16,16,4], index: 0, kind: input, shape index: {}]
  %s1 = inlined_call_operand.vmem [shape: bf16[1152,4], index: 1, kind: input, shape index: {}]
  %s2 = inlined_call_operand.vmem [shape: f32[1,4], index: 2, kind: input, shape index: {}]
  %s3 = inlined_call_operand.vmem [shape: f32[1,4], index: 3, kind: input, shape index: {}]
  %s4 = inlined_call_operand.vmem [shape: bf16[1152,4], index: 4, kind: input, shape index: {}]
  %s5 = inlined_call_operand.vmem [shape: f32[1,4], index: 5, kind: input, shape index: {}]
  %s6 = inlined_call_operand.vmem [shape: f32[1,4], index: 6, kind: input, shape index: {}]
  %s7 = inlined_call_operand.vmem [shape: bf16[1152,8], index: 7, kind: input, shape index: {}]
  %s8 = inlined_call_operand.vmem [shape: f32[1,8], index: 8, kind: input, shape index: {}]
  %s9 = inlined_call_operand.vmem [shape: f32[1,8], index: 9, kind: input, shape index: {}]
  %s10 = inlined_call_operand.hbm [shape: f32[2,4,4,8], index: 10, kind: output, shape index: {}]
  %s11 = sld [smem:[#allocation0]]
  $region73: #{se_init_block.1} parent=0
    _
  %s13 = ssub.s32 1, %s11
  %s14 = scalar_select 0, %s13, %s11
  $region1: #{se_init_block.1} parent=0
    #allocation7 [shape = 'u8[16384]{0}', space=vmem, size = 0x4000, scoped, tag = 'output window, operand 0']
    #allocation8 [shape = 's32[2]{0}', space=sflag, size = 0x8, scoped, tag = 'scoped memory for se_init_block.1']
    %15 = vsyncpa [#allocation8], 0
    %s16 = scalar_lea.sflag [#allocation8], 1
    %17 = vsyncpa %s16, 0
    loop: start=0, step=1, limit=4
    $region2: #{se_init_block.1} parent=1 // loop_pre_header
      _
    $region3: #{se_init_block.1} parent=1 // loop_header
      %s19 = sphi 0, %s23
      %p20 = scmp.ge.s32.totalorder %s19, 4
      %s29 = sphi 0, %s31
      %s32 = sphi 0, %s29
      %s33 = sphi 0, %s32
      %s49 = sphi 0, %s33
      %s53 = sphi 0, %s53
      %s55 = sphi 0, %s53
      %s56 = sphi 0, %s55
      %s70 = sphi 0, %s56
      %s74 = sphi 0, %s74
      %s76 = sphi 0, %s74
      %s77 = sphi 0, %s76
      %s91 = sphi 0, %s77
      %s95 = sphi 0, %s95
      %s97 = sphi 0, %s95
      %s98 = sphi 0, %s97
      %s112 = sphi 0, %s98
      %s116 = sphi 0, %s116
      %s118 = sphi 0, %s116
      %s119 = sphi 0, %s118
      %s133 = sphi 0, %s119
      %s137 = sphi 0, %s137
      %s139 = sphi 0, %s137
      %s140 = sphi 0, %s139
      %s154 = sphi 0, %s140
      %s158 = sphi 0, %s158
      %s160 = sphi 0, %s158
      %s161 = sphi 0, %s160
      %s175 = sphi 0, %s161
      %s179 = sphi 0, %s179
      %s181 = sphi 0, %s179
      %s182 = sphi 0, %s181
      %s196 = sphi 0, %s182
      %s200 = sphi 0, %s200
      %s202 = sphi 0, %s200
      %s203 = sphi 0, %s202
      %s217 = sphi 0, %s203
      %s221 = sphi 0, %s221
      %s223 = sphi 0, %s221
      %s224 = sphi 0, %s223
      %s238 = sphi 0, %s224
      %s244 = sphi 0, %s246
      %s247 = sphi 0, %s244
      %s248 = sphi 0, %s247
      %s264 = sphi 0, %s248
    $region4: #{se_init_block.1} parent=1 // loop_header_branch
      %22 = sbr.rel (%p20) target = $region8
    $region5: #{se_init_block.1} parent=1 // loop_body
      %s24 = ssub.s32 %s19, 1
      %s25 = ssub.s32 %s19, 2
      %s26 = sadd.s32 %s19, 1
      %s27 = ssub.s32 %s19, %s26
      %p28 = scmp.eq.s32.totalorder %s27, 0
      %s30 = sadd.s32 %s29, 1
      %s31 = scalar_select %p28, %s29, %s30
      %p34 = pneg %p28
      %p35 = scmp.eq.s32.totalorder %s19, 1
      %p36 = por %p34, %p35
      %p37 = scmp.ne.s32.totalorder %s29, %s32
      %p38 = scmp.eq.s32.totalorder %s19, 0
      %p39 = por %p37, %p38
      %p40 = scmp.ne.s32.totalorder %s29, %s32
      %p41 = scmp.eq.s32.totalorder %s24, 1
      %p42 = por %p40, %p41
      %p43 = scmp.ne.s32.totalorder %s32, %s33
      %p44 = scmp.eq.s32.totalorder %s24, 0
      %p45 = por %p43, %p44
      %p46 = scmp.ne.s32.totalorder %s32, %s33
      %p47 = scmp.eq.s32.totalorder %s25, 1
      %p48 = por %p46, %p47
      %p50 = scmp.ne.s32.totalorder %s33, %s49
      %p51 = scmp.eq.s32.totalorder %s25, 0
      %p52 = por %p50, %p51
      %s54 = sadd.s32 %s53, 1
      %p57 = scmp.eq.s32.totalorder %s19, 1
      %p58 = scmp.ne.s32.totalorder %s53, %s55
      %p59 = scmp.eq.s32.totalorder %s19, 0
      %p60 = por %p58, %p59
      %p61 = scmp.ne.s32.totalorder %s53, %s55
      %p62 = scmp.eq.s32.totalorder %s24, 1
      %p63 = por %p61, %p62
      %p64 = scmp.ne.s32.totalorder %s55, %s56
      %p65 = scmp.eq.s32.totalorder %s24, 0
      %p66 = por %p64, %p65
      %p67 = scmp.ne.s32.totalorder %s55, %s56
      %p68 = scmp.eq.s32.totalorder %s25, 1
      %p69 = por %p67, %p68
      %p71 = scmp.ne.s32.totalorder %s56, %s70
      %p72 = scmp.eq.s32.totalorder %s25, 0
      %p73 = por %p71, %p72
      %s75 = sadd.s32 %s74, 1
      %p78 = scmp.eq.s32.totalorder %s19, 1
      %p79 = scmp.ne.s32.totalorder %s74, %s76
      %p80 = scmp.eq.s32.totalorder %s19, 0
      %p81 = por %p79, %p80
      %p82 = scmp.ne.s32.totalorder %s74, %s76
      %p83 = scmp.eq.s32.totalorder %s24, 1
      %p84 = por %p82, %p83
      %p85 = scmp.ne.s32.totalorder %s76, %s77
      %p86 = scmp.eq.s32.totalorder %s24, 0
      %p87 = por %p85, %p86
      %p88 = scmp.ne.s32.totalorder %s76, %s77
      %p89 = scmp.eq.s32.totalorder %s25, 1
      %p90 = por %p88, %p89
      %p92 = scmp.ne.s32.totalorder %s77, %s91
      %p93 = scmp.eq.s32.totalorder %s25, 0
      %p94 = por %p92, %p93
      %s96 = sadd.s32 %s95, 1
      %p99 = scmp.eq.s32.totalorder %s19, 1
      %p100 = scmp.ne.s32.totalorder %s95, %s97
      %p101 = scmp.eq.s32.totalorder %s19, 0
      %p102 = por %p100, %p101
      %p103 = scmp.ne.s32.totalorder %s95, %s97
      %p104 = scmp.eq.s32.totalorder %s24, 1
      %p105 = por %p103, %p104
      %p106 = scmp.ne.s32.totalorder %s97, %s98
      %p107 = scmp.eq.s32.totalorder %s24, 0
      %p108 = por %p106, %p107
      %p109 = scmp.ne.s32.totalorder %s97, %s98
      %p110 = scmp.eq.s32.totalorder %s25, 1
      %p111 = por %p109, %p110
      %p113 = scmp.ne.s32.totalorder %s98, %s112
      %p114 = scmp.eq.s32.totalorder %s25, 0
      %p115 = por %p113, %p114
      %s117 = sadd.s32 %s116, 1
      %p120 = scmp.eq.s32.totalorder %s19, 1
      %p121 = scmp.ne.s32.totalorder %s116, %s118
      %p122 = scmp.eq.s32.totalorder %s19, 0
      %p123 = por %p121, %p122
      %p124 = scmp.ne.s32.totalorder %s116, %s118
      %p125 = scmp.eq.s32.totalorder %s24, 1
      %p126 = por %p124, %p125
      %p127 = scmp.ne.s32.totalorder %s118, %s119
      %p128 = scmp.eq.s32.totalorder %s24, 0
      %p129 = por %p127, %p128
      %p130 = scmp.ne.s32.totalorder %s118, %s119
      %p131 = scmp.eq.s32.totalorder %s25, 1
      %p132 = por %p130, %p131
      %p134 = scmp.ne.s32.totalorder %s119, %s133
      %p135 = scmp.eq.s32.totalorder %s25, 0
      %p136 = por %p134, %p135
      %s138 = sadd.s32 %s137, 1
      %p141 = scmp.eq.s32.totalorder %s19, 1
      %p142 = scmp.ne.s32.totalorder %s137, %s139
      %p143 = scmp.eq.s32.totalorder %s19, 0
      %p144 = por %p142, %p143
      %p145 = scmp.ne.s32.totalorder %s137, %s139
      %p146 = scmp.eq.s32.totalorder %s24, 1
      %p147 = por %p145, %p146
      %p148 = scmp.ne.s32.totalorder %s139, %s140
      %p149 = scmp.eq.s32.totalorder %s24, 0
      %p150 = por %p148, %p149
      %p151 = scmp.ne.s32.totalorder %s139, %s140
      %p152 = scmp.eq.s32.totalorder %s25, 1
      %p153 = por %p151, %p152
      %p155 = scmp.ne.s32.totalorder %s140, %s154
      %p156 = scmp.eq.s32.totalorder %s25, 0
      %p157 = por %p155, %p156
      %s159 = sadd.s32 %s158, 1
      %p162 = scmp.eq.s32.totalorder %s19, 1
      %p163 = scmp.ne.s32.totalorder %s158, %s160
      %p164 = scmp.eq.s32.totalorder %s19, 0
      %p165 = por %p163, %p164
      %p166 = scmp.ne.s32.totalorder %s158, %s160
      %p167 = scmp.eq.s32.totalorder %s24, 1
      %p168 = por %p166, %p167
      %p169 = scmp.ne.s32.totalorder %s160, %s161
      %p170 = scmp.eq.s32.totalorder %s24, 0
      %p171 = por %p169, %p170
      %p172 = scmp.ne.s32.totalorder %s160, %s161
      %p173 = scmp.eq.s32.totalorder %s25, 1
      %p174 = por %p172, %p173
      %p176 = scmp.ne.s32.totalorder %s161, %s175
      %p177 = scmp.eq.s32.totalorder %s25, 0
      %p178 = por %p176, %p177
      %s180 = sadd.s32 %s179, 1
      %p183 = scmp.eq.s32.totalorder %s19, 1
      %p184 = scmp.ne.s32.totalorder %s179, %s181
      %p185 = scmp.eq.s32.totalorder %s19, 0
      %p186 = por %p184, %p185
      %p187 = scmp.ne.s32.totalorder %s179, %s181
      %p188 = scmp.eq.s32.totalorder %s24, 1
      %p189 = por %p187, %p188
      %p190 = scmp.ne.s32.totalorder %s181, %s182
      %p191 = scmp.eq.s32.totalorder %s24, 0
      %p192 = por %p190, %p191
      %p193 = scmp.ne.s32.totalorder %s181, %s182
      %p194 = scmp.eq.s32.totalorder %s25, 1
      %p195 = por %p193, %p194
      %p197 = scmp.ne.s32.totalorder %s182, %s196
      %p198 = scmp.eq.s32.totalorder %s25, 0
      %p199 = por %p197, %p198
      %s201 = sadd.s32 %s200, 1
      %p204 = scmp.eq.s32.totalorder %s19, 1
      %p205 = scmp.ne.s32.totalorder %s200, %s202
      %p206 = scmp.eq.s32.totalorder %s19, 0
      %p207 = por %p205, %p206
      %p208 = scmp.ne.s32.totalorder %s200, %s202
      %p209 = scmp.eq.s32.totalorder %s24, 1
      %p210 = por %p208, %p209
      %p211 = scmp.ne.s32.totalorder %s202, %s203
      %p212 = scmp.eq.s32.totalorder %s24, 0
      %p213 = por %p211, %p212
      %p214 = scmp.ne.s32.totalorder %s202, %s203
      %p215 = scmp.eq.s32.totalorder %s25, 1
      %p216 = por %p214, %p215
      %p218 = scmp.ne.s32.totalorder %s203, %s217
      %p219 = scmp.eq.s32.totalorder %s25, 0
      %p220 = por %p218, %p219
      %s222 = sadd.s32 %s221, 1
      %p225 = scmp.eq.s32.totalorder %s19, 1
      %p226 = scmp.ne.s32.totalorder %s221, %s223
      %p227 = scmp.eq.s32.totalorder %s19, 0
      %p228 = por %p226, %p227
      %p229 = scmp.ne.s32.totalorder %s221, %s223
      %p230 = scmp.eq.s32.totalorder %s24, 1
      %p231 = por %p229, %p230
      %p232 = scmp.ne.s32.totalorder %s223, %s224
      %p233 = scmp.eq.s32.totalorder %s24, 0
      %p234 = por %p232, %p233
      %p235 = scmp.ne.s32.totalorder %s223, %s224
      %p236 = scmp.eq.s32.totalorder %s25, 1
      %p237 = por %p235, %p236
      %p239 = scmp.ne.s32.totalorder %s224, %s238
      %p240 = scmp.eq.s32.totalorder %s25, 0
      %p241 = por %p239, %p240
      %s242 = ssub.s32 %s19, %s26
      %p243 = scmp.eq.s32.totalorder %s242, 0
      %s245 = sadd.s32 %s244, 1
      %s246 = scalar_select %p243, %s244, %s245
      %p249 = pneg %p243
      %p250 = scmp.eq.s32.totalorder %s19, 1
      %p251 = por %p249, %p250
      %p252 = scmp.ne.s32.totalorder %s244, %s247
      %p253 = scmp.eq.s32.totalorder %s19, 0
      %p254 = por %p252, %p253
      %p255 = scmp.ne.s32.totalorder %s244, %s247
      %p256 = scmp.eq.s32.totalorder %s24, 1
      %p257 = por %p255, %p256
      %p258 = scmp.ne.s32.totalorder %s247, %s248
      %p259 = scmp.eq.s32.totalorder %s24, 0
      %p260 = por %p258, %p259
      %p261 = scmp.ne.s32.totalorder %s247, %s248
      %p262 = scmp.eq.s32.totalorder %s25, 1
      %p263 = por %p261, %p262
      %p265 = scmp.ne.s32.totalorder %s248, %s264
      %p266 = scmp.eq.s32.totalorder %s25, 0
      %p267 = por %p265, %p266
      %p268 = scmp.le.s32.totalorder 1, %s19
      %p269 = scmp.lt.s32.totalorder %s19, 3
      %p270 = pnand %p268, %p269
      %p271 = pneg %p270
      // Predicated region
      $region9: #{se_init_block.1} parent=5 // pred_check
        _
      $region10: #{se_init_block.1} parent=5 // pred_check_branch
        %273 = sbr.rel (%p270) target = $region12
      $region11: #{se_init_block.1} parent=5 // pred_region
        %s274 = ssub.s32 %s19, 1
        // Predicated region
        $region13: #{se_init_block.1} parent=11 // pred_check
          %p275 = pneg %p66
        $region14: #{se_init_block.1} parent=11 // pred_check_branch
          %277 = sbr.rel (%p275) target = $region16
        $region15: #{se_init_block.1} parent=11 // pred_region
          _
        $region16: #{se_init_block.1} parent=11 // pred_fallthru
          _
        // Predicated region
        $region17: #{se_init_block.1} parent=11 // pred_check
          %p278 = pneg %p87
        $region18: #{se_init_block.1} parent=11 // pred_check_branch
          %280 = sbr.rel (%p278) target = $region20
        $region19: #{se_init_block.1} parent=11 // pred_region
          _
        $region20: #{se_init_block.1} parent=11 // pred_fallthru
          _
        // Predicated region
        $region21: #{se_init_block.1} parent=11 // pred_check
          %p281 = pneg %p108
        $region22: #{se_init_block.1} parent=11 // pred_check_branch
          %283 = sbr.rel (%p281) target = $region24
        $region23: #{se_init_block.1} parent=11 // pred_region
          _
        $region24: #{se_init_block.1} parent=11 // pred_fallthru
          _
        // Predicated region
        $region25: #{se_init_block.1} parent=11 // pred_check
          %p284 = pneg %p129
        $region26: #{se_init_block.1} parent=11 // pred_check_branch
          %286 = sbr.rel (%p284) target = $region28
        $region27: #{se_init_block.1} parent=11 // pred_region
          _
        $region28: #{se_init_block.1} parent=11 // pred_fallthru
          _
        // Predicated region
        $region29: #{se_init_block.1} parent=11 // pred_check
          %p287 = pneg %p150
        $region30: #{se_init_block.1} parent=11 // pred_check_branch
          %289 = sbr.rel (%p287) target = $region32
        $region31: #{se_init_block.1} parent=11 // pred_region
          _
        $region32: #{se_init_block.1} parent=11 // pred_fallthru
          _
        // Predicated region
        $region33: #{se_init_block.1} parent=11 // pred_check
          %p290 = pneg %p171
        $region34: #{se_init_block.1} parent=11 // pred_check_branch
          %292 = sbr.rel (%p290) target = $region36
        $region35: #{se_init_block.1} parent=11 // pred_region
          _
        $region36: #{se_init_block.1} parent=11 // pred_fallthru
          _
        // Predicated region
        $region37: #{se_init_block.1} parent=11 // pred_check
          %p293 = pneg %p192
        $region38: #{se_init_block.1} parent=11 // pred_check_branch
          %295 = sbr.rel (%p293) target = $region40
        $region39: #{se_init_block.1} parent=11 // pred_region
          _
        $region40: #{se_init_block.1} parent=11 // pred_fallthru
          _
        // Predicated region
        $region41: #{se_init_block.1} parent=11 // pred_check
          %p296 = pneg %p213
        $region42: #{se_init_block.1} parent=11 // pred_check_branch
          %298 = sbr.rel (%p296) target = $region44
        $region43: #{se_init_block.1} parent=11 // pred_region
          _
        $region44: #{se_init_block.1} parent=11 // pred_fallthru
          _
        // Predicated region
        $region45: #{se_init_block.1} parent=11 // pred_check
          %p299 = pneg %p234
        $region46: #{se_init_block.1} parent=11 // pred_check_branch
          %301 = sbr.rel (%p299) target = $region48
        $region47: #{se_init_block.1} parent=11 // pred_region
          _
        $region48: #{se_init_block.1} parent=11 // pred_fallthru
          _
      $region12: #{se_init_block.1} parent=5 // pred_fallthru
        _
      %p302 = scmp.lt.s32.totalorder %s19, 2
      // Predicated region
      $region49: #{se_init_block.1} parent=5 // pred_check
        %p303 = pneg %p302
      $region50: #{se_init_block.1} parent=5 // pred_check_branch
        %305 = sbr.rel (%p303) target = $region52
      $region51: #{se_init_block.1} parent=5 // pred_region
        // Predicated region
        $region53: #{se_init_block.1} parent=51 // pred_check
          %p306 = pneg %p39
        $region54: #{se_init_block.1} parent=51 // pred_check_branch
          %308 = sbr.rel (%p306) target = $region56
        $region55: #{se_init_block.1} parent=51 // pred_region
          %p309 = scmp.lt.s32.totalorder %s19, 1
          %s310 = scalar_select %p309, %s19, 1
          %s311 = smul.addr %s310, 32
          %s312 = smul.addr %s311, 8
          %s313 = scalar_lea.vmem %s0, %s312
        $region56: #{se_init_block.1} parent=51 // pred_fallthru
          _
      $region52: #{se_init_block.1} parent=5 // pred_fallthru
        _
      %p314 = scmp.le.s32.totalorder 1, %s19
      %p315 = scmp.lt.s32.totalorder %s19, 3
      %p316 = pnand %p314, %p315
      %p317 = pneg %p316
      // Predicated region
      $region57: #{se_init_block.1} parent=5 // pred_check
        _
      $region58: #{se_init_block.1} parent=5 // pred_check_branch
        %319 = sbr.rel (%p316) target = $region60
      $region59: #{se_init_block.1} parent=5 // pred_region
        %s320 = ssub.s32 %s19, 1
        %p321 = scmp.lt.s32.totalorder %s24, 1
        %s322 = scalar_select %p321, %s24, 1
        %s323 = smul.addr %s322, 32
        %s324 = smul.addr %s323, 8
        %s325 = scalar_lea.vmem %s0, %s324
        %p326 = pneg %p45
        %p327 = pneg %p42
        %p328 = pneg %p66
        %p329 = pneg %p63
        %p330 = pneg %p87
        %p331 = pneg %p84
        %p332 = pneg %p108
        %p333 = pneg %p105
        %p334 = pneg %p129
        %p335 = pneg %p126
        %p336 = pneg %p150
        %p337 = pneg %p147
        %p338 = pneg %p171
        %p339 = pneg %p168
        %p340 = pneg %p192
        %p341 = pneg %p189
        %p342 = pneg %p213
        %p343 = pneg %p210
        %p344 = pneg %p234
        %p345 = pneg %p231
        %p346 = pneg %p260
        %p347 = pneg %p257
        %s348 = sand.u32 %s247, 1
        %s349 = scalar_lea.sflag [#allocation8], %s348
        %s350 = sand.u32 %s247, 1
        %s351 = smul.addr %s350, 16
        %s352 = scalar_lea.vmem [#allocation7], %s351
        %p353 = scmp.lt.s32.totalorder %s24, 1
        %s354 = scalar_select %p353, %s24, 1
        %s355 = smul.addr %s354, 32
        %s356 = smul.addr %s355, 8
        %s357 = scalar_lea.vmem %s0, %s356
        %359 = vst [vmem:[#allocation2] sm:$0xff] 0.0
        %360 = vst [vmem:[#allocation2 + $0x8] sm:$0xff] 0.0
        %361 = vst [vmem:[#allocation2 + $0x10] sm:$0x3] 0.0
        %362 = vst [vmem:[#allocation2 + $0x18] sm:$0xff] 0.0
        %363 = vst [vmem:[#allocation2 + $0x20] sm:$0xff] 0.0
        %364 = vst [vmem:[#allocation2 + $0x28] sm:$0x3] 0.0
        %365 = vst [vmem:[#allocation2 + $0x30] sm:$0xff] 0.0
        %366 = vst [vmem:[#allocation2 + $0x38] sm:$0xff] 0.0
        %367 = vst [vmem:[#allocation2 + $0x40] sm:$0x3] 0.0
        %368 = vst [vmem:[#allocation2 + $0x48] sm:$0xff] 0.0
        %369 = vst [vmem:[#allocation2 + $0x50] sm:$0xff] 0.0
        %370 = vst [vmem:[#allocation2 + $0x58] sm:$0x3] 0.0
        %371 = vst [vmem:[#allocation2 + $0x60] sm:$0xff] 0.0
        %372 = vst [vmem:[#allocation2 + $0x68] sm:$0xff] 0.0
        %373 = vst [vmem:[#allocation2 + $0x70] sm:$0x3] 0.0
        %374 = vst [vmem:[#allocation2 + $0x78] sm:$0xff] 0.0
        %375 = vst [vmem:[#allocation2 + $0x80] sm:$0xff] 0.0
        %376 = vst [vmem:[#allocation2 + $0x88] sm:$0x3] 0.0
        %377 = vst [vmem:[#allocation2 + $0x90] sm:$0xff] 0.0
        %378 = vst [vmem:[#allocation2 + $0x98] sm:$0xff] 0.0
        %379 = vst [vmem:[#allocation2 + $0xa0] sm:$0x3] 0.0
        %380 = vst [vmem:[#allocation2 + $0xa8] sm:$0xff] 0.0
        %381 = vst [vmem:[#allocation2 + $0xb0] sm:$0xff] 0.0
        %382 = vst [vmem:[#allocation2 + $0xb8] sm:$0x3] 0.0
        %383 = vst [vmem:[#allocation2 + $0xc0] sm:$0xff] 0.0
        %384 = vst [vmem:[#allocation2 + $0xc8] sm:$0xff] 0.0
        %385 = vst [vmem:[#allocation2 + $0xd0] sm:$0x3] 0.0
        %386 = vst [vmem:[#allocation2 + $0xd8] sm:$0xff] 0.0
        %387 = vst [vmem:[#allocation2 + $0xe0] sm:$0xff] 0.0
        %388 = vst [vmem:[#allocation2 + $0xe8] sm:$0x3] 0.0
        %389 = vst [vmem:[#allocation2 + $0xf0] sm:$0xff] 0.0
        %390 = vst [vmem:[#allocation2 + $0xf8] sm:$0xff] 0.0
        %391 = vst [vmem:[#allocation2 + $0x100] sm:$0x3] 0.0
        %392 = vst [vmem:[#allocation2 + $0x108] sm:$0xff] 0.0
        %393 = vst [vmem:[#allocation2 + $0x110] sm:$0xff] 0.0
        %394 = vst [vmem:[#allocation2 + $0x118] sm:$0x3] 0.0
        %395 = vst [vmem:[#allocation2 + $0x120] sm:$0xff] 0.0
        %396 = vst [vmem:[#allocation2 + $0x128] sm:$0xff] 0.0
        %397 = vst [vmem:[#allocation2 + $0x130] sm:$0x3] 0.0
        %398 = vst [vmem:[#allocation2 + $0x138] sm:$0xff] 0.0
        %399 = vst [vmem:[#allocation2 + $0x140] sm:$0xff] 0.0
        %400 = vst [vmem:[#allocation2 + $0x148] sm:$0x3] 0.0
        %401 = vst [vmem:[#allocation2 + $0x150] sm:$0xff] 0.0
        %402 = vst [vmem:[#allocation2 + $0x158] sm:$0xff] 0.0
        %403 = vst [vmem:[#allocation2 + $0x160] sm:$0x3] 0.0
        %404 = vst [vmem:[#allocation2 + $0x168] sm:$0xff] 0.0
        %405 = vst [vmem:[#allocation2 + $0x170] sm:$0xff] 0.0
        %406 = vst [vmem:[#allocation2 + $0x178] sm:$0x3] 0.0
        %407 = vst [vmem:[#allocation2 + $0x180] sm:$0xff] 0.0
        %408 = vst [vmem:[#allocation2 + $0x188] sm:$0xff] 0.0
        %409 = vst [vmem:[#allocation2 + $0x190] sm:$0x3] 0.0
        %410 = vst [vmem:[#allocation2 + $0x198] sm:$0xff] 0.0
        %411 = vst [vmem:[#allocation2 + $0x1a0] sm:$0xff] 0.0
        %412 = vst [vmem:[#allocation2 + $0x1a8] sm:$0x3] 0.0
        %v413 = vld [vmem:[%s357] sm:$0xff]
        %v414 = vld [vmem:[%s357 + $0x8] sm:$0xff]
        %v415 = vld [vmem:[%s357 + $0x10] sm:$0xff]
        %v416 = vld [vmem:[%s357 + $0x18] sm:$0xff]
        %v417 = vld [vmem:[%s357 + $0x20] sm:$0xff]
        %v418 = vld [vmem:[%s357 + $0x28] sm:$0xff]
        %v419 = vld [vmem:[%s357 + $0x30] sm:$0xff]
        %v420 = vld [vmem:[%s357 + $0x38] sm:$0xff]
        %v421 = vld [vmem:[%s357 + $0x40] sm:$0xff]
        %v422 = vld [vmem:[%s357 + $0x48] sm:$0xff]
        %v423 = vld [vmem:[%s357 + $0x50] sm:$0xff]
        %v424 = vld [vmem:[%s357 + $0x58] sm:$0xff]
        %v425 = vld [vmem:[%s357 + $0x60] sm:$0xff]
        %v426 = vld [vmem:[%s357 + $0x68] sm:$0xff]
        %v427 = vld [vmem:[%s357 + $0x70] sm:$0xff]
        %v428 = vld [vmem:[%s357 + $0x78] sm:$0xff]
        %v429 = vld [vmem:[%s357 + $0x80] sm:$0xff]
        %v430 = vld [vmem:[%s357 + $0x88] sm:$0xff]
        %v431 = vld [vmem:[%s357 + $0x90] sm:$0xff]
        %v432 = vld [vmem:[%s357 + $0x98] sm:$0xff]
        %v433 = vld [vmem:[%s357 + $0xa0] sm:$0xff]
        %v434 = vld [vmem:[%s357 + $0xa8] sm:$0xff]
        %v435 = vld [vmem:[%s357 + $0xb0] sm:$0xff]
        %v436 = vld [vmem:[%s357 + $0xb8] sm:$0xff]
        %v437 = vld [vmem:[%s357 + $0xc0] sm:$0xff]
        %v438 = vld [vmem:[%s357 + $0xc8] sm:$0xff]
        %v439 = vld [vmem:[%s357 + $0xd0] sm:$0xff]
        %v440 = vld [vmem:[%s357 + $0xd8] sm:$0xff]
        %v441 = vld [vmem:[%s357 + $0xe0] sm:$0xff]
        %v442 = vld [vmem:[%s357 + $0xe8] sm:$0xff]
        %v443 = vld [vmem:[%s357 + $0xf0] sm:$0xff]
        %v444 = vld [vmem:[%s357 + $0xf8] sm:$0xff]
        %s445 = scalar_lea.vmem [#allocation2], 24
        %vm446 = vcmask 31744
        %447 = vst.msk [vmem:[%s445 + $0x1] sm:$0xff] %vm446, %v413
        %448 = vst.msk [vmem:[%s445 + $0x9] sm:$0xff] %vm446, %v414
        %449 = vst.msk [vmem:[%s445 + $0x19] sm:$0xff] %vm446, %v415
        %450 = vst.msk [vmem:[%s445 + $0x21] sm:$0xff] %vm446, %v416
        %451 = vst.msk [vmem:[%s445 + $0x31] sm:$0xff] %vm446, %v417
        %452 = vst.msk [vmem:[%s445 + $0x39] sm:$0xff] %vm446, %v418
        %453 = vst.msk [vmem:[%s445 + $0x49] sm:$0xff] %vm446, %v419
        %454 = vst.msk [vmem:[%s445 + $0x51] sm:$0xff] %vm446, %v420
        %455 = vst.msk [vmem:[%s445 + $0x61] sm:$0xff] %vm446, %v421
        %456 = vst.msk [vmem:[%s445 + $0x69] sm:$0xff] %vm446, %v422
        %457 = vst.msk [vmem:[%s445 + $0x79] sm:$0xff] %vm446, %v423
        %458 = vst.msk [vmem:[%s445 + $0x81] sm:$0xff] %vm446, %v424
        %459 = vst.msk [vmem:[%s445 + $0x91] sm:$0xff] %vm446, %v425
        %460 = vst.msk [vmem:[%s445 + $0x99] sm:$0xff] %vm446, %v426
        %461 = vst.msk [vmem:[%s445 + $0xa9] sm:$0xff] %vm446, %v427
        %462 = vst.msk [vmem:[%s445 + $0xb1] sm:$0xff] %vm446, %v428
        %463 = vst.msk [vmem:[%s445 + $0xc1] sm:$0xff] %vm446, %v429
        %464 = vst.msk [vmem:[%s445 + $0xc9] sm:$0xff] %vm446, %v430
        %465 = vst.msk [vmem:[%s445 + $0xd9] sm:$0xff] %vm446, %v431
        %466 = vst.msk [vmem:[%s445 + $0xe1] sm:$0xff] %vm446, %v432
        %467 = vst.msk [vmem:[%s445 + $0xf1] sm:$0xff] %vm446, %v433
        %468 = vst.msk [vmem:[%s445 + $0xf9] sm:$0xff] %vm446, %v434
        %469 = vst.msk [vmem:[%s445 + $0x109] sm:$0xff] %vm446, %v435
        %470 = vst.msk [vmem:[%s445 + $0x111] sm:$0xff] %vm446, %v436
        %471 = vst.msk [vmem:[%s445 + $0x121] sm:$0xff] %vm446, %v437
        %472 = vst.msk [vmem:[%s445 + $0x129] sm:$0xff] %vm446, %v438
        %473 = vst.msk [vmem:[%s445 + $0x139] sm:$0xff] %vm446, %v439
        %474 = vst.msk [vmem:[%s445 + $0x141] sm:$0xff] %vm446, %v440
        %475 = vst.msk [vmem:[%s445 + $0x151] sm:$0xff] %vm446, %v441
        %476 = vst.msk [vmem:[%s445 + $0x159] sm:$0xff] %vm446, %v442
        %477 = vst.msk [vmem:[%s445 + $0x169] sm:$0xff] %vm446, %v443
        %478 = vst.msk [vmem:[%s445 + $0x171] sm:$0xff] %vm446, %v444
        %v479 = vld [vmem:[#allocation2] ss:$2 sm:$0xff]
        %s480 = scalar_lea.vmem [#allocation2], 48
        %v481 = vld [vmem:[%s480] ss:$2 sm:$0xff]
        %s482 = scalar_lea.vmem [#allocation2], 96
        %v483 = vld [vmem:[%s482] ss:$2 sm:$0xff]
        %s484 = scalar_lea.vmem [#allocation2], 144
        %v485 = vld [vmem:[%s484] ss:$2 sm:$0xff]
        %s486 = scalar_lea.vmem [#allocation2], 192
        %v487 = vld [vmem:[%s486] ss:$2 sm:$0xff]
        %s488 = scalar_lea.vmem [#allocation2], 240
        %v489 = vld [vmem:[%s488] ss:$2 sm:$0xff]
        %s490 = scalar_lea.vmem [#allocation2], 288
        %v491 = vld [vmem:[%s490] ss:$2 sm:$0xff]
        %s492 = scalar_lea.vmem [#allocation2], 336
        %v493 = vld [vmem:[%s492] ss:$2 sm:$0xff]
        %v494 = vpack.c.bf16 %v481, %v479
        %v495 = vpack.c.bf16 %v485, %v483
        %v496 = vpack.c.bf16 %v489, %v487
        %v497 = vpack.c.bf16 %v493, %v491
        %498 = vst [vmem:[#allocation6] sm:$0xff] %v494
        %499 = vst [vmem:[#allocation6 + $0x48] sm:$0xff] %v495
        %500 = vst [vmem:[#allocation6 + $0x90] sm:$0xff] %v496
        %501 = vst [vmem:[#allocation6 + $0xd8] sm:$0xff] %v497
        %s502 = scalar_lea.vmem [#allocation2], 1
        %v503 = vld [vmem:[%s502] ss:$2 sm:$0xff]
        %s504 = scalar_lea.vmem [#allocation2], 49
        %v505 = vld [vmem:[%s504] ss:$2 sm:$0xff]
        %s506 = scalar_lea.vmem [#allocation2], 97
        %v507 = vld [vmem:[%s506] ss:$2 sm:$0xff]
        %s508 = scalar_lea.vmem [#allocation2], 145
        %v509 = vld [vmem:[%s508] ss:$2 sm:$0xff]
        %s510 = scalar_lea.vmem [#allocation2], 193
        %v511 = vld [vmem:[%s510] ss:$2 sm:$0xff]
        %s512 = scalar_lea.vmem [#allocation2], 241
        %v513 = vld [vmem:[%s512] ss:$2 sm:$0xff]
        %s514 = scalar_lea.vmem [#allocation2], 289
        %v515 = vld [vmem:[%s514] ss:$2 sm:$0xff]
        %s516 = scalar_lea.vmem [#allocation2], 337
        %v517 = vld [vmem:[%s516] ss:$2 sm:$0xff]
        %v518 = vpack.c.bf16 %v505, %v503
        %v519 = vpack.c.bf16 %v509, %v507
        %v520 = vpack.c.bf16 %v513, %v511
        %v521 = vpack.c.bf16 %v517, %v515
        %522 = vst [vmem:[#allocation6 + $0x8] sm:$0xff] %v518
        %523 = vst [vmem:[#allocation6 + $0x50] sm:$0xff] %v519
        %524 = vst [vmem:[#allocation6 + $0x98] sm:$0xff] %v520
        %525 = vst [vmem:[#allocation6 + $0xe0] sm:$0xff] %v521
        %s526 = scalar_lea.vmem [#allocation2], 2
        %v527 = vld [vmem:[%s526] ss:$2 sm:$0xff]
        %s528 = scalar_lea.vmem [#allocation2], 50
        %v529 = vld [vmem:[%s528] ss:$2 sm:$0xff]
        %s530 = scalar_lea.vmem [#allocation2], 98
        %v531 = vld [vmem:[%s530] ss:$2 sm:$0xff]
        %s532 = scalar_lea.vmem [#allocation2], 146
        %v533 = vld [vmem:[%s532] ss:$2 sm:$0xff]
        %s534 = scalar_lea.vmem [#allocation2], 194
        %v535 = vld [vmem:[%s534] ss:$2 sm:$0xff]
        %s536 = scalar_lea.vmem [#allocation2], 242
        %v537 = vld [vmem:[%s536] ss:$2 sm:$0xff]
        %s538 = scalar_lea.vmem [#allocation2], 290
        %v539 = vld [vmem:[%s538] ss:$2 sm:$0xff]
        %s540 = scalar_lea.vmem [#allocation2], 338
        %v541 = vld [vmem:[%s540] ss:$2 sm:$0xff]
        %v542 = vpack.c.bf16 %v529, %v527
        %v543 = vpack.c.bf16 %v533, %v531
        %v544 = vpack.c.bf16 %v537, %v535
        %v545 = vpack.c.bf16 %v541, %v539
        %546 = vst [vmem:[#allocation6 + $0x10] sm:$0xff] %v542
        %547 = vst [vmem:[#allocation6 + $0x58] sm:$0xff] %v543
        %548 = vst [vmem:[#allocation6 + $0xa0] sm:$0xff] %v544
        %549 = vst [vmem:[#allocation6 + $0xe8] sm:$0xff] %v545
        %v550 = vld [vmem:[%s445] ss:$2 sm:$0xff]
        %s551 = scalar_lea.vmem %s445, 48 [#allocation2]
        %v552 = vld [vmem:[%s551] ss:$2 sm:$0xff]
        %s553 = scalar_lea.vmem %s445, 96 [#allocation2]
        %v554 = vld [vmem:[%s553] ss:$2 sm:$0xff]
        %s555 = scalar_lea.vmem %s445, 144 [#allocation2]
        %v556 = vld [vmem:[%s555] ss:$2 sm:$0xff]
        %s557 = scalar_lea.vmem %s445, 192 [#allocation2]
        %v558 = vld [vmem:[%s557] ss:$2 sm:$0xff]
        %s559 = scalar_lea.vmem %s445, 240 [#allocation2]
        %v560 = vld [vmem:[%s559] ss:$2 sm:$0xff]
        %s561 = scalar_lea.vmem %s445, 288 [#allocation2]
        %v562 = vld [vmem:[%s561] ss:$2 sm:$0xff]
        %s563 = scalar_lea.vmem %s445, 336 [#allocation2]
        %v564 = vld [vmem:[%s563] ss:$2 sm:$0xff]
        %v565 = vpack.c.bf16 %v552, %v550
        %v566 = vpack.c.bf16 %v556, %v554
        %v567 = vpack.c.bf16 %v560, %v558
        %v568 = vpack.c.bf16 %v564, %v562
        %569 = vst [vmem:[#allocation6 + $0x18] sm:$0xff] %v565
        %570 = vst [vmem:[#allocation6 + $0x60] sm:$0xff] %v566
        %571 = vst [vmem:[#allocation6 + $0xa8] sm:$0xff] %v567
        %572 = vst [vmem:[#allocation6 + $0xf0] sm:$0xff] %v568
        %s573 = scalar_lea.vmem %s445, 1 [#allocation2]
        %v574 = vld [vmem:[%s573] ss:$2 sm:$0xff]
        %s575 = scalar_lea.vmem %s445, 49 [#allocation2]
        %v576 = vld [vmem:[%s575] ss:$2 sm:$0xff]
        %s577 = scalar_lea.vmem %s445, 97 [#allocation2]
        %v578 = vld [vmem:[%s577] ss:$2 sm:$0xff]
        %s579 = scalar_lea.vmem %s445, 145 [#allocation2]
        %v580 = vld [vmem:[%s579] ss:$2 sm:$0xff]
        %s581 = scalar_lea.vmem %s445, 193 [#allocation2]
        %v582 = vld [vmem:[%s581] ss:$2 sm:$0xff]
        %s583 = scalar_lea.vmem %s445, 241 [#allocation2]
        %v584 = vld [vmem:[%s583] ss:$2 sm:$0xff]
        %s585 = scalar_lea.vmem %s445, 289 [#allocation2]
        %v586 = vld [vmem:[%s585] ss:$2 sm:$0xff]
        %s587 = scalar_lea.vmem %s445, 337 [#allocation2]
        %v588 = vld [vmem:[%s587] ss:$2 sm:$0xff]
        %v589 = vpack.c.bf16 %v576, %v574
        %v590 = vpack.c.bf16 %v580, %v578
        %v591 = vpack.c.bf16 %v584, %v582
        %v592 = vpack.c.bf16 %v588, %v586
        %593 = vst [vmem:[#allocation6 + $0x20] sm:$0xff] %v589
        %594 = vst [vmem:[#allocation6 + $0x68] sm:$0xff] %v590
        %595 = vst [vmem:[#allocation6 + $0xb0] sm:$0xff] %v591
        %596 = vst [vmem:[#allocation6 + $0xf8] sm:$0xff] %v592
        %s597 = scalar_lea.vmem %s445, 2 [#allocation2]
        %v598 = vld [vmem:[%s597] ss:$2 sm:$0xff]
        %s599 = scalar_lea.vmem %s445, 50 [#allocation2]
        %v600 = vld [vmem:[%s599] ss:$2 sm:$0xff]
        %s601 = scalar_lea.vmem %s445, 98 [#allocation2]
        %v602 = vld [vmem:[%s601] ss:$2 sm:$0xff]
        %s603 = scalar_lea.vmem %s445, 146 [#allocation2]
        %v604 = vld [vmem:[%s603] ss:$2 sm:$0xff]
        %s605 = scalar_lea.vmem %s445, 194 [#allocation2]
        %v606 = vld [vmem:[%s605] ss:$2 sm:$0xff]
        %s607 = scalar_lea.vmem %s445, 242 [#allocation2]
        %v608 = vld [vmem:[%s607] ss:$2 sm:$0xff]
        %s609 = scalar_lea.vmem %s445, 290 [#allocation2]
        %v610 = vld [vmem:[%s609] ss:$2 sm:$0xff]
        %s611 = scalar_lea.vmem %s445, 338 [#allocation2]
        %v612 = vld [vmem:[%s611] ss:$2 sm:$0xff]
        %v613 = vpack.c.bf16 %v600, %v598
        %v614 = vpack.c.bf16 %v604, %v602
        %v615 = vpack.c.bf16 %v608, %v606
        %v616 = vpack.c.bf16 %v612, %v610
        %617 = vst [vmem:[#allocation6 + $0x28] sm:$0xff] %v613
        %618 = vst [vmem:[#allocation6 + $0x70] sm:$0xff] %v614
        %619 = vst [vmem:[#allocation6 + $0xb8] sm:$0xff] %v615
        %620 = vst [vmem:[#allocation6 + $0x100] sm:$0xff] %v616
        %s621 = scalar_lea.vmem [#allocation2], 48
        %v622 = vld [vmem:[%s621] ss:$2 sm:$0xff]
        %s623 = scalar_lea.vmem %s621, 48 [#allocation2]
        %v624 = vld [vmem:[%s623] ss:$2 sm:$0xff]
        %s625 = scalar_lea.vmem %s621, 96 [#allocation2]
        %v626 = vld [vmem:[%s625] ss:$2 sm:$0xff]
        %s627 = scalar_lea.vmem %s621, 144 [#allocation2]
        %v628 = vld [vmem:[%s627] ss:$2 sm:$0xff]
        %s629 = scalar_lea.vmem %s621, 192 [#allocation2]
        %v630 = vld [vmem:[%s629] ss:$2 sm:$0xff]
        %s631 = scalar_lea.vmem %s621, 240 [#allocation2]
        %v632 = vld [vmem:[%s631] ss:$2 sm:$0xff]
        %s633 = scalar_lea.vmem %s621, 288 [#allocation2]
        %v634 = vld [vmem:[%s633] ss:$2 sm:$0xff]
        %s635 = scalar_lea.vmem %s621, 336 [#allocation2]
        %v636 = vld [vmem:[%s635] ss:$2 sm:$0xff]
        %v637 = vpack.c.bf16 %v624, %v622
        %v638 = vpack.c.bf16 %v628, %v626
        %v639 = vpack.c.bf16 %v632, %v630
        %v640 = vpack.c.bf16 %v636, %v634
        %641 = vst [vmem:[#allocation6 + $0x30] sm:$0xff] %v637
        %642 = vst [vmem:[#allocation6 + $0x78] sm:$0xff] %v638
        %643 = vst [vmem:[#allocation6 + $0xc0] sm:$0xff] %v639
        %644 = vst [vmem:[#allocation6 + $0x108] sm:$0xff] %v640
        %s645 = scalar_lea.vmem %s621, 1 [#allocation2]
        %v646 = vld [vmem:[%s645] ss:$2 sm:$0xff]
        %s647 = scalar_lea.vmem %s621, 49 [#allocation2]
        %v648 = vld [vmem:[%s647] ss:$2 sm:$0xff]
        %s649 = scalar_lea.vmem %s621, 97 [#allocation2]
        %v650 = vld [vmem:[%s649] ss:$2 sm:$0xff]
        %s651 = scalar_lea.vmem %s621, 145 [#allocation2]
        %v652 = vld [vmem:[%s651] ss:$2 sm:$0xff]
        %s653 = scalar_lea.vmem %s621, 193 [#allocation2]
        %v654 = vld [vmem:[%s653] ss:$2 sm:$0xff]
        %s655 = scalar_lea.vmem %s621, 241 [#allocation2]
        %v656 = vld [vmem:[%s655] ss:$2 sm:$0xff]
        %s657 = scalar_lea.vmem %s621, 289 [#allocation2]
        %v658 = vld [vmem:[%s657] ss:$2 sm:$0xff]
        %s659 = scalar_lea.vmem %s621, 337 [#allocation2]
        %v660 = vld [vmem:[%s659] ss:$2 sm:$0xff]
        %v661 = vpack.c.bf16 %v648, %v646
        %v662 = vpack.c.bf16 %v652, %v650
        %v663 = vpack.c.bf16 %v656, %v654
        %v664 = vpack.c.bf16 %v660, %v658
        %665 = vst [vmem:[#allocation6 + $0x38] sm:$0xff] %v661
        %666 = vst [vmem:[#allocation6 + $0x80] sm:$0xff] %v662
        %667 = vst [vmem:[#allocation6 + $0xc8] sm:$0xff] %v663
        %668 = vst [vmem:[#allocation6 + $0x110] sm:$0xff] %v664
        %s669 = scalar_lea.vmem %s621, 2 [#allocation2]
        %v670 = vld [vmem:[%s669] ss:$2 sm:$0xff]
        %s671 = scalar_lea.vmem %s621, 50 [#allocation2]
        %v672 = vld [vmem:[%s671] ss:$2 sm:$0xff]
        %s673 = scalar_lea.vmem %s621, 98 [#allocation2]
        %v674 = vld [vmem:[%s673] ss:$2 sm:$0xff]
        %s675 = scalar_lea.vmem %s621, 146 [#allocation2]
        %v676 = vld [vmem:[%s675] ss:$2 sm:$0xff]
        %s677 = scalar_lea.vmem %s621, 194 [#allocation2]
        %v678 = vld [vmem:[%s677] ss:$2 sm:$0xff]
        %s679 = scalar_lea.vmem %s621, 242 [#allocation2]
        %v680 = vld [vmem:[%s679] ss:$2 sm:$0xff]
        %s681 = scalar_lea.vmem %s621, 290 [#allocation2]
        %v682 = vld [vmem:[%s681] ss:$2 sm:$0xff]
        %s683 = scalar_lea.vmem %s621, 338 [#allocation2]
        %v684 = vld [vmem:[%s683] ss:$2 sm:$0xff]
        %v685 = vpack.c.bf16 %v672, %v670
        %v686 = vpack.c.bf16 %v676, %v674
        %v687 = vpack.c.bf16 %v680, %v678
        %v688 = vpack.c.bf16 %v684, %v682
        %689 = vst [vmem:[#allocation6 + $0x40] sm:$0xff] %v685
        %690 = vst [vmem:[#allocation6 + $0x88] sm:$0xff] %v686
        %691 = vst [vmem:[#allocation6 + $0xd0] sm:$0xff] %v687
        %692 = vst [vmem:[#allocation6 + $0x118] sm:$0xff] %v688
        %v693 = vld [vmem:[#allocation6] sm:$0xff]
        %v694 = vld [vmem:[#allocation6 + $0x8] sm:$0xff]
        %v695 = vld [vmem:[#allocation6 + $0x10] sm:$0xff]
        %v696 = vld [vmem:[#allocation6 + $0x18] sm:$0xff]
        %v697 = vld [vmem:[#allocation6 + $0x20] sm:$0xff]
        %v698 = vld [vmem:[#allocation6 + $0x28] sm:$0xff]
        %v699 = vld [vmem:[#allocation6 + $0x30] sm:$0xff]
        %v700 = vld [vmem:[#allocation6 + $0x38] sm:$0xff]
        %v701 = vld [vmem:[#allocation6 + $0x40] sm:$0xff]
        %v702 = vld [vmem:[#allocation6 + $0x48] sm:$0xff]
        %v703 = vld [vmem:[#allocation6 + $0x50] sm:$0xff]
        %v704 = vld [vmem:[#allocation6 + $0x58] sm:$0xff]
        %v705 = vld [vmem:[#allocation6 + $0x60] sm:$0xff]
        %v706 = vld [vmem:[#allocation6 + $0x68] sm:$0xff]
        %v707 = vld [vmem:[#allocation6 + $0x70] sm:$0xff]
        %v708 = vld [vmem:[#allocation6 + $0x78] sm:$0xff]
        %v709 = vld [vmem:[#allocation6 + $0x80] sm:$0xff]
        %v710 = vld [vmem:[#allocation6 + $0x88] sm:$0xff]
        %v711 = vld [vmem:[#allocation6 + $0x90] sm:$0xff]
        %v712 = vld [vmem:[#allocation6 + $0x98] sm:$0xff]
        %v713 = vld [vmem:[#allocation6 + $0xa0] sm:$0xff]
        %v714 = vld [vmem:[#allocation6 + $0xa8] sm:$0xff]
        %v715 = vld [vmem:[#allocation6 + $0xb0] sm:$0xff]
        %v716 = vld [vmem:[#allocation6 + $0xb8] sm:$0xff]
        %v717 = vld [vmem:[#allocation6 + $0xc0] sm:$0xff]
        %v718 = vld [vmem:[#allocation6 + $0xc8] sm:$0xff]
        %v719 = vld [vmem:[#allocation6 + $0xd0] sm:$0xff]
        %v720 = vld [vmem:[#allocation6 + $0xd8] sm:$0xff]
        %v721 = vld [vmem:[#allocation6 + $0xe0] sm:$0xff]
        %v722 = vld [vmem:[#allocation6 + $0xe8] sm:$0xff]
        %v723 = vld [vmem:[#allocation6 + $0xf0] sm:$0xff]
        %v724 = vld [vmem:[#allocation6 + $0xf8] sm:$0xff]
        %v725 = vld [vmem:[#allocation6 + $0x100] sm:$0xff]
        %v726 = vld [vmem:[#allocation6 + $0x108] sm:$0xff]
        %v727 = vld [vmem:[#allocation6 + $0x110] sm:$0xff]
        %v728 = vld [vmem:[#allocation6 + $0x118] sm:$0xff]
        %v729 = vld [vmem:[%s1] sm:$0xf]
        %v730 = vld [vmem:[%s1 + $0x4] sm:$0xf]
        %v731 = vld [vmem:[%s1 + $0x8] sm:$0xf]
        %v732 = vld [vmem:[%s1 + $0xc] sm:$0xf]
        %v733 = vld [vmem:[%s1 + $0x10] sm:$0xf]
        %v734 = vld [vmem:[%s1 + $0x14] sm:$0xf]
        %v735 = vld [vmem:[%s1 + $0x18] sm:$0xf]
        %v736 = vld [vmem:[%s1 + $0x1c] sm:$0xf]
        %v737 = vld [vmem:[%s1 + $0x20] sm:$0xf]
        %v738 = vld [vmem:[%s1 + $0x24] sm:$0xf]
        %v739 = vld [vmem:[%s1 + $0x28] sm:$0xf]
        %v740 = vld [vmem:[%s1 + $0x2c] sm:$0xf]
        %v741 = vld [vmem:[%s1 + $0x30] sm:$0xf]
        %v742 = vld [vmem:[%s1 + $0x34] sm:$0xf]
        %v743 = vld [vmem:[%s1 + $0x38] sm:$0xf]
        %v744 = vld [vmem:[%s1 + $0x3c] sm:$0xf]
        %v745 = vld [vmem:[%s1 + $0x40] sm:$0xf]
        %v746 = vld [vmem:[%s1 + $0x44] sm:$0xf]
        %v747 = vld [vmem:[%s1 + $0x48] sm:$0xf]
        %v748 = vld [vmem:[%s1 + $0x4c] sm:$0xf]
        %v749 = vld [vmem:[%s1 + $0x50] sm:$0xf]
        %v750 = vld [vmem:[%s1 + $0x54] sm:$0xf]
        %v751 = vld [vmem:[%s1 + $0x58] sm:$0xf]
        %v752 = vld [vmem:[%s1 + $0x5c] sm:$0xf]
        %v753 = vld [vmem:[%s1 + $0x60] sm:$0xf]
        %v754 = vld [vmem:[%s1 + $0x64] sm:$0xf]
        %v755 = vld [vmem:[%s1 + $0x68] sm:$0xf]
        %v756 = vld [vmem:[%s1 + $0x6c] sm:$0xf]
        %v757 = vld [vmem:[%s1 + $0x70] sm:$0xf]
        %v758 = vld [vmem:[%s1 + $0x74] sm:$0xf]
        %v759 = vld [vmem:[%s1 + $0x78] sm:$0xf]
        %v760 = vld [vmem:[%s1 + $0x7c] sm:$0xf]
        %v761 = vld [vmem:[%s1 + $0x80] sm:$0xf]
        %v762 = vld [vmem:[%s1 + $0x84] sm:$0xf]
        %v763 = vld [vmem:[%s1 + $0x88] sm:$0xf]
        %v764 = vld [vmem:[%s1 + $0x8c] sm:$0xf]
        %v765 = vld [vmem:[%s1 + $0x90] sm:$0xf]
        %v766 = vld [vmem:[%s1 + $0x94] sm:$0xf]
        %v767 = vld [vmem:[%s1 + $0x98] sm:$0xf]
        %v768 = vld [vmem:[%s1 + $0x9c] sm:$0xf]
        %v769 = vld [vmem:[%s1 + $0xa0] sm:$0xf]
        %v770 = vld [vmem:[%s1 + $0xa4] sm:$0xf]
        %v771 = vld [vmem:[%s1 + $0xa8] sm:$0xf]
        %v772 = vld [vmem:[%s1 + $0xac] sm:$0xf]
        %v773 = vld [vmem:[%s1 + $0xb0] sm:$0xf]
        %v774 = vld [vmem:[%s1 + $0xb4] sm:$0xf]
        %v775 = vld [vmem:[%s1 + $0xb8] sm:$0xf]
        %v776 = vld [vmem:[%s1 + $0xbc] sm:$0xf]
        %v777 = vld [vmem:[%s1 + $0xc0] sm:$0xf]
        %v778 = vld [vmem:[%s1 + $0xc4] sm:$0xf]
        %v779 = vld [vmem:[%s1 + $0xc8] sm:$0xf]
        %v780 = vld [vmem:[%s1 + $0xcc] sm:$0xf]
        %v781 = vld [vmem:[%s1 + $0xd0] sm:$0xf]
        %v782 = vld [vmem:[%s1 + $0xd4] sm:$0xf]
        %v783 = vld [vmem:[%s1 + $0xd8] sm:$0xf]
        %v784 = vld [vmem:[%s1 + $0xdc] sm:$0xf]
        %v785 = vld [vmem:[%s1 + $0xe0] sm:$0xf]
        %v786 = vld [vmem:[%s1 + $0xe4] sm:$0xf]
        %v787 = vld [vmem:[%s1 + $0xe8] sm:$0xf]
        %v788 = vld [vmem:[%s1 + $0xec] sm:$0xf]
        %v789 = vld [vmem:[%s1 + $0xf0] sm:$0xf]
        %v790 = vld [vmem:[%s1 + $0xf4] sm:$0xf]
        %v791 = vld [vmem:[%s1 + $0xf8] sm:$0xf]
        %v792 = vld [vmem:[%s1 + $0xfc] sm:$0xf]
        %v793 = vld [vmem:[%s1 + $0x100] sm:$0xf]
        %v794 = vld [vmem:[%s1 + $0x104] sm:$0xf]
        %v795 = vld [vmem:[%s1 + $0x108] sm:$0xf]
        %v796 = vld [vmem:[%s1 + $0x10c] sm:$0xf]
        %v797 = vld [vmem:[%s1 + $0x110] sm:$0xf]
        %v798 = vld [vmem:[%s1 + $0x114] sm:$0xf]
        %v799 = vld [vmem:[%s1 + $0x118] sm:$0xf]
        %v800 = vld [vmem:[%s1 + $0x11c] sm:$0xf]
        %v801 = vld [vmem:[%s1 + $0x120] sm:$0xf]
        %v802 = vld [vmem:[%s1 + $0x124] sm:$0xf]
        %v803 = vld [vmem:[%s1 + $0x128] sm:$0xf]
        %v804 = vld [vmem:[%s1 + $0x12c] sm:$0xf]
        %v805 = vld [vmem:[%s1 + $0x130] sm:$0xf]
        %v806 = vld [vmem:[%s1 + $0x134] sm:$0xf]
        %v807 = vld [vmem:[%s1 + $0x138] sm:$0xf]
        %v808 = vld [vmem:[%s1 + $0x13c] sm:$0xf]
        %v809 = vld [vmem:[%s1 + $0x140] sm:$0xf]
        %v810 = vld [vmem:[%s1 + $0x144] sm:$0xf]
        %v811 = vld [vmem:[%s1 + $0x148] sm:$0xf]
        %v812 = vld [vmem:[%s1 + $0x14c] sm:$0xf]
        %v813 = vld [vmem:[%s1 + $0x150] sm:$0xf]
        %v814 = vld [vmem:[%s1 + $0x154] sm:$0xf]
        %v815 = vld [vmem:[%s1 + $0x158] sm:$0xf]
        %v816 = vld [vmem:[%s1 + $0x15c] sm:$0xf]
        %v817 = vld [vmem:[%s1 + $0x160] sm:$0xf]
        %v818 = vld [vmem:[%s1 + $0x164] sm:$0xf]
        %v819 = vld [vmem:[%s1 + $0x168] sm:$0xf]
        %v820 = vld [vmem:[%s1 + $0x16c] sm:$0xf]
        %v821 = vld [vmem:[%s1 + $0x170] sm:$0xf]
        %v822 = vld [vmem:[%s1 + $0x174] sm:$0xf]
        %v823 = vld [vmem:[%s1 + $0x178] sm:$0xf]
        %v824 = vld [vmem:[%s1 + $0x17c] sm:$0xf]
        %v825 = vld [vmem:[%s1 + $0x180] sm:$0xf]
        %v826 = vld [vmem:[%s1 + $0x184] sm:$0xf]
        %v827 = vld [vmem:[%s1 + $0x188] sm:$0xf]
        %v828 = vld [vmem:[%s1 + $0x18c] sm:$0xf]
        %v829 = vld [vmem:[%s1 + $0x190] sm:$0xf]
        %v830 = vld [vmem:[%s1 + $0x194] sm:$0xf]
        %v831 = vld [vmem:[%s1 + $0x198] sm:$0xf]
        %v832 = vld [vmem:[%s1 + $0x19c] sm:$0xf]
        %v833 = vld [vmem:[%s1 + $0x1a0] sm:$0xf]
        %v834 = vld [vmem:[%s1 + $0x1a4] sm:$0xf]
        %v835 = vld [vmem:[%s1 + $0x1a8] sm:$0xf]
        %v836 = vld [vmem:[%s1 + $0x1ac] sm:$0xf]
        %v837 = vld [vmem:[%s1 + $0x1b0] sm:$0xf]
        %v838 = vld [vmem:[%s1 + $0x1b4] sm:$0xf]
        %v839 = vld [vmem:[%s1 + $0x1b8] sm:$0xf]
        %v840 = vld [vmem:[%s1 + $0x1bc] sm:$0xf]
        %v841 = vld [vmem:[%s1 + $0x1c0] sm:$0xf]
        %v842 = vld [vmem:[%s1 + $0x1c4] sm:$0xf]
        %v843 = vld [vmem:[%s1 + $0x1c8] sm:$0xf]
        %v844 = vld [vmem:[%s1 + $0x1cc] sm:$0xf]
        %v845 = vld [vmem:[%s1 + $0x1d0] sm:$0xf]
        %v846 = vld [vmem:[%s1 + $0x1d4] sm:$0xf]
        %v847 = vld [vmem:[%s1 + $0x1d8] sm:$0xf]
        %v848 = vld [vmem:[%s1 + $0x1dc] sm:$0xf]
        %v849 = vld [vmem:[%s1 + $0x1e0] sm:$0xf]
        %v850 = vld [vmem:[%s1 + $0x1e4] sm:$0xf]
        %v851 = vld [vmem:[%s1 + $0x1e8] sm:$0xf]
        %v852 = vld [vmem:[%s1 + $0x1ec] sm:$0xf]
        %v853 = vld [vmem:[%s1 + $0x1f0] sm:$0xf]
        %v854 = vld [vmem:[%s1 + $0x1f4] sm:$0xf]
        %v855 = vld [vmem:[%s1 + $0x1f8] sm:$0xf]
        %v856 = vld [vmem:[%s1 + $0x1fc] sm:$0xf]
        %v857 = vld [vmem:[%s1 + $0x200] sm:$0xf]
        %v858 = vld [vmem:[%s1 + $0x204] sm:$0xf]
        %v859 = vld [vmem:[%s1 + $0x208] sm:$0xf]
        %v860 = vld [vmem:[%s1 + $0x20c] sm:$0xf]
        %v861 = vld [vmem:[%s1 + $0x210] sm:$0xf]
        %v862 = vld [vmem:[%s1 + $0x214] sm:$0xf]
        %v863 = vld [vmem:[%s1 + $0x218] sm:$0xf]
        %v864 = vld [vmem:[%s1 + $0x21c] sm:$0xf]
        %v865 = vld [vmem:[%s1 + $0x220] sm:$0xf]
        %v866 = vld [vmem:[%s1 + $0x224] sm:$0xf]
        %v867 = vld [vmem:[%s1 + $0x228] sm:$0xf]
        %v868 = vld [vmem:[%s1 + $0x22c] sm:$0xf]
        %v869 = vld [vmem:[%s1 + $0x230] sm:$0xf]
        %v870 = vld [vmem:[%s1 + $0x234] sm:$0xf]
        %v871 = vld [vmem:[%s1 + $0x238] sm:$0xf]
        %v872 = vld [vmem:[%s1 + $0x23c] sm:$0xf]
        %v1017 = vunpack.c.l.b16 %v729
        %v1018 = vunpack.c.l.b16 %v730
        %v1019 = vunpack.c.l.b16 %v731
        %v1020 = vunpack.c.l.b16 %v732
        %v1021 = vunpack.c.l.b16 %v733
        %v1022 = vunpack.c.l.b16 %v734
        %v1023 = vunpack.c.l.b16 %v735
        %v1024 = vunpack.c.l.b16 %v736
        %v1025 = vunpack.c.l.b16 %v737
        %v1026 = vunpack.c.l.b16 %v738
        %v1027 = vunpack.c.l.b16 %v739
        %v1028 = vunpack.c.l.b16 %v740
        %v1029 = vunpack.c.l.b16 %v741
        %v1030 = vunpack.c.l.b16 %v742
        %v1031 = vunpack.c.l.b16 %v743
        %v1032 = vunpack.c.l.b16 %v744
        %v1033 = vunpack.c.l.b16 %v745
        %v1034 = vunpack.c.l.b16 %v746
        %v1035 = vunpack.c.l.b16 %v747
        %v1036 = vunpack.c.l.b16 %v748
        %v1037 = vunpack.c.l.b16 %v749
        %v1038 = vunpack.c.l.b16 %v750
        %v1039 = vunpack.c.l.b16 %v751
        %v1040 = vunpack.c.l.b16 %v752
        %v1041 = vunpack.c.l.b16 %v753
        %v1042 = vunpack.c.l.b16 %v754
        %v1043 = vunpack.c.l.b16 %v755
        %v1044 = vunpack.c.l.b16 %v756
        %v1045 = vunpack.c.l.b16 %v757
        %v1046 = vunpack.c.l.b16 %v758
        %v1047 = vunpack.c.l.b16 %v759
        %v1048 = vunpack.c.l.b16 %v760
        %v1049 = vunpack.c.l.b16 %v761
        %v1050 = vunpack.c.l.b16 %v762
        %v1051 = vunpack.c.l.b16 %v763
        %v1052 = vunpack.c.l.b16 %v764
        %v1053 = vunpack.c.l.b16 %v765
        %v1054 = vunpack.c.l.b16 %v766
        %v1055 = vunpack.c.l.b16 %v767
        %v1056 = vunpack.c.l.b16 %v768
        %v1057 = vunpack.c.l.b16 %v769
        %v1058 = vunpack.c.l.b16 %v770
        %v1059 = vunpack.c.l.b16 %v771
        %v1060 = vunpack.c.l.b16 %v772
        %v1061 = vunpack.c.l.b16 %v773
        %v1062 = vunpack.c.l.b16 %v774
        %v1063 = vunpack.c.l.b16 %v775
        %v1064 = vunpack.c.l.b16 %v776
        %v1065 = vunpack.c.l.b16 %v777
        %v1066 = vunpack.c.l.b16 %v778
        %v1067 = vunpack.c.l.b16 %v779
        %v1068 = vunpack.c.l.b16 %v780
        %v1069 = vunpack.c.l.b16 %v781
        %v1070 = vunpack.c.l.b16 %v782
        %v1071 = vunpack.c.l.b16 %v783
        %v1072 = vunpack.c.l.b16 %v784
        %v1073 = vunpack.c.l.b16 %v785
        %v1074 = vunpack.c.l.b16 %v786
        %v1075 = vunpack.c.l.b16 %v787
        %v1076 = vunpack.c.l.b16 %v788
        %v1077 = vunpack.c.l.b16 %v789
        %v1078 = vunpack.c.l.b16 %v790
        %v1079 = vunpack.c.l.b16 %v791
        %v1080 = vunpack.c.l.b16 %v792
        %v1081 = vunpack.c.l.b16 %v793
        %v1082 = vunpack.c.l.b16 %v794
        %v1083 = vunpack.c.l.b16 %v795
        %v1084 = vunpack.c.l.b16 %v796
        %v1085 = vunpack.c.l.b16 %v797
        %v1086 = vunpack.c.l.b16 %v798
        %v1087 = vunpack.c.l.b16 %v799
        %v1088 = vunpack.c.l.b16 %v800
        %v1089 = vunpack.c.l.b16 %v801
        %v1090 = vunpack.c.l.b16 %v802
        %v1091 = vunpack.c.l.b16 %v803
        %v1092 = vunpack.c.l.b16 %v804
        %v1093 = vunpack.c.l.b16 %v805
        %v1094 = vunpack.c.l.b16 %v806
        %v1095 = vunpack.c.l.b16 %v807
        %v1096 = vunpack.c.l.b16 %v808
        %v1097 = vunpack.c.l.b16 %v809
        %v1098 = vunpack.c.l.b16 %v810
        %v1099 = vunpack.c.l.b16 %v811
        %v1100 = vunpack.c.l.b16 %v812
        %v1101 = vunpack.c.l.b16 %v813
        %v1102 = vunpack.c.l.b16 %v814
        %v1103 = vunpack.c.l.b16 %v815
        %v1104 = vunpack.c.l.b16 %v816
        %v1105 = vunpack.c.l.b16 %v817
        %v1106 = vunpack.c.l.b16 %v818
        %v1107 = vunpack.c.l.b16 %v819
        %v1108 = vunpack.c.l.b16 %v820
        %v1109 = vunpack.c.l.b16 %v821
        %v1110 = vunpack.c.l.b16 %v822
        %v1111 = vunpack.c.l.b16 %v823
        %v1112 = vunpack.c.l.b16 %v824
        %v1113 = vunpack.c.l.b16 %v825
        %v1114 = vunpack.c.l.b16 %v826
        %v1115 = vunpack.c.l.b16 %v827
        %v1116 = vunpack.c.l.b16 %v828
        %v1117 = vunpack.c.l.b16 %v829
        %v1118 = vunpack.c.l.b16 %v830
        %v1119 = vunpack.c.l.b16 %v831
        %v1120 = vunpack.c.l.b16 %v832
        %v1121 = vunpack.c.l.b16 %v833
        %v1122 = vunpack.c.l.b16 %v834
        %v1123 = vunpack.c.l.b16 %v835
        %v1124 = vunpack.c.l.b16 %v836
        %v1125 = vunpack.c.l.b16 %v837
        %v1126 = vunpack.c.l.b16 %v838
        %v1127 = vunpack.c.l.b16 %v839
        %v1128 = vunpack.c.l.b16 %v840
        %v1129 = vunpack.c.l.b16 %v841
        %v1130 = vunpack.c.l.b16 %v842
        %v1131 = vunpack.c.l.b16 %v843
        %v1132 = vunpack.c.l.b16 %v844
        %v1133 = vunpack.c.l.b16 %v845
        %v1134 = vunpack.c.l.b16 %v846
        %v1135 = vunpack.c.l.b16 %v847
        %v1136 = vunpack.c.l.b16 %v848
        %v1137 = vunpack.c.l.b16 %v849
        %v1138 = vunpack.c.l.b16 %v850
        %v1139 = vunpack.c.l.b16 %v851
        %v1140 = vunpack.c.l.b16 %v852
        %v1141 = vunpack.c.l.b16 %v853
        %v1142 = vunpack.c.l.b16 %v854
        %v1143 = vunpack.c.l.b16 %v855
        %v1144 = vunpack.c.l.b16 %v856
        %v1145 = vunpack.c.l.b16 %v857
        %v1146 = vunpack.c.l.b16 %v858
        %v1147 = vunpack.c.l.b16 %v859
        %v1148 = vunpack.c.l.b16 %v860
        %v1149 = vunpack.c.l.b16 %v861
        %v1150 = vunpack.c.l.b16 %v862
        %v1151 = vunpack.c.l.b16 %v863
        %v1152 = vunpack.c.l.b16 %v864
        %v1153 = vunpack.c.l.b16 %v865
        %v1154 = vunpack.c.l.b16 %v866
        %v1155 = vunpack.c.l.b16 %v867
        %v1156 = vunpack.c.l.b16 %v868
        %v1157 = vunpack.c.l.b16 %v869
        %v1158 = vunpack.c.l.b16 %v870
        %v1159 = vunpack.c.l.b16 %v871
        %v1160 = vunpack.c.l.b16 %v872
        %v1161 = vpack.c.b16 %v1018, %v1017
        %v1162 = vpack.c.b16 %v1020, %v1019
        %v1163 = vpack.c.b16 %v1022, %v1021
        %v1164 = vpack.c.b16 %v1024, %v1023
        %v1165 = vpack.c.b16 %v1026, %v1025
        %v1166 = vpack.c.b16 %v1028, %v1027
        %v1167 = vpack.c.b16 %v1030, %v1029
        %v1168 = vpack.c.b16 %v1032, %v1031
        %v1169 = vpack.c.b16 %v1034, %v1033
        %v1170 = vpack.c.b16 %v1036, %v1035
        %v1171 = vpack.c.b16 %v1038, %v1037
        %v1172 = vpack.c.b16 %v1040, %v1039
        %v1173 = vpack.c.b16 %v1042, %v1041
        %v1174 = vpack.c.b16 %v1044, %v1043
        %v1175 = vpack.c.b16 %v1046, %v1045
        %v1176 = vpack.c.b16 %v1048, %v1047
        %v1177 = vpack.c.b16 %v1050, %v1049
        %v1178 = vpack.c.b16 %v1052, %v1051
        %v1179 = vpack.c.b16 %v1054, %v1053
        %v1180 = vpack.c.b16 %v1056, %v1055
        %v1181 = vpack.c.b16 %v1058, %v1057
        %v1182 = vpack.c.b16 %v1060, %v1059
        %v1183 = vpack.c.b16 %v1062, %v1061
        %v1184 = vpack.c.b16 %v1064, %v1063
        %v1185 = vpack.c.b16 %v1066, %v1065
        %v1186 = vpack.c.b16 %v1068, %v1067
        %v1187 = vpack.c.b16 %v1070, %v1069
        %v1188 = vpack.c.b16 %v1072, %v1071
        %v1189 = vpack.c.b16 %v1074, %v1073
        %v1190 = vpack.c.b16 %v1076, %v1075
        %v1191 = vpack.c.b16 %v1078, %v1077
        %v1192 = vpack.c.b16 %v1080, %v1079
        %v1193 = vpack.c.b16 %v1082, %v1081
        %v1194 = vpack.c.b16 %v1084, %v1083
        %v1195 = vpack.c.b16 %v1086, %v1085
        %v1196 = vpack.c.b16 %v1088, %v1087
        %v1197 = vpack.c.b16 %v1090, %v1089
        %v1198 = vpack.c.b16 %v1092, %v1091
        %v1199 = vpack.c.b16 %v1094, %v1093
        %v1200 = vpack.c.b16 %v1096, %v1095
        %v1201 = vpack.c.b16 %v1098, %v1097
        %v1202 = vpack.c.b16 %v1100, %v1099
        %v1203 = vpack.c.b16 %v1102, %v1101
        %v1204 = vpack.c.b16 %v1104, %v1103
        %v1205 = vpack.c.b16 %v1106, %v1105
        %v1206 = vpack.c.b16 %v1108, %v1107
        %v1207 = vpack.c.b16 %v1110, %v1109
        %v1208 = vpack.c.b16 %v1112, %v1111
        %v1209 = vpack.c.b16 %v1114, %v1113
        %v1210 = vpack.c.b16 %v1116, %v1115
        %v1211 = vpack.c.b16 %v1118, %v1117
        %v1212 = vpack.c.b16 %v1120, %v1119
        %v1213 = vpack.c.b16 %v1122, %v1121
        %v1214 = vpack.c.b16 %v1124, %v1123
        %v1215 = vpack.c.b16 %v1126, %v1125
        %v1216 = vpack.c.b16 %v1128, %v1127
        %v1217 = vpack.c.b16 %v1130, %v1129
        %v1218 = vpack.c.b16 %v1132, %v1131
        %v1219 = vpack.c.b16 %v1134, %v1133
        %v1220 = vpack.c.b16 %v1136, %v1135
        %v1221 = vpack.c.b16 %v1138, %v1137
        %v1222 = vpack.c.b16 %v1140, %v1139
        %v1223 = vpack.c.b16 %v1142, %v1141
        %v1224 = vpack.c.b16 %v1144, %v1143
        %v1225 = vpack.c.b16 %v1146, %v1145
        %v1226 = vpack.c.b16 %v1148, %v1147
        %v1227 = vpack.c.b16 %v1150, %v1149
        %v1228 = vpack.c.b16 %v1152, %v1151
        %v1229 = vpack.c.b16 %v1154, %v1153
        %v1230 = vpack.c.b16 %v1156, %v1155
        %v1231 = vpack.c.b16 %v1158, %v1157
        %v1232 = vpack.c.b16 %v1160, %v1159
        %1305 = vmatprep.subr.bf16.mxu0 0
        %1306 = vmatpush1.bf16.msra.mxu0 %v1161
        %1307 = vmatprep.subr.bf16.mxu0 0
        %1308 = vmatpush1.bf16.msra.mxu0 %v1162
        %1309 = vmatprep.subr.bf16.mxu0 0
        %1310 = vmatpush1.bf16.msra.mxu0 %v1163
        %1311 = vmatprep.subr.bf16.mxu0 0
        %1312 = vmatpush1.bf16.msra.mxu0 %v1164
        %1313 = vmatprep.subr.bf16.mxu0 0
        %1314 = vmatpush1.bf16.msra.mxu0 %v1165
        %1315 = vmatprep.subr.bf16.mxu0 0
        %1316 = vmatpush1.bf16.msra.mxu0 %v1166
        %1317 = vmatprep.subr.bf16.mxu0 0
        %1318 = vmatpush1.bf16.msra.mxu0 %v1167
        %1319 = vmatprep.subr.bf16.mxu0 0
        %1320 = vmatpush1.bf16.msra.mxu0 %v1168
        %1321 = vmatprep.subr.bf16.mxu0 0
        %1322 = vmatpush1.bf16.msra.mxu0 %v1169
        %1323 = vmatprep.subr.bf16.mxu0 0
        %1324 = vmatpush1.bf16.msra.mxu0 %v1170
        %1325 = vmatprep.subr.bf16.mxu0 0
        %1326 = vmatpush1.bf16.msra.mxu0 %v1171
        %1327 = vmatprep.subr.bf16.mxu0 0
        %1328 = vmatpush1.bf16.msra.mxu0 %v1172
        %1329 = vmatprep.subr.bf16.mxu0 0
        %1330 = vmatpush1.bf16.msra.mxu0 %v1173
        %1331 = vmatprep.subr.bf16.mxu0 0
        %1332 = vmatpush1.bf16.msra.mxu0 %v1174
        %1333 = vmatprep.subr.bf16.mxu0 0
        %1334 = vmatpush1.bf16.msra.mxu0 %v1175
        %1335 = vmatprep.subr.bf16.mxu0 0
        %1336 = vmatpush1.bf16.msra.mxu0 %v1176
        %1337 = vmatprep.mubr.bf16.mxu0 %v694
        %1338 = vmatmul.mubr.bf16.gmra.mrb[0].mxu0 %v693
        %v1339 = vpop.f32.mrb[0].mxu0
        %v1340 = vadd.f32 0.0, %v1339
        %v1341 = vpop.f32.mrb[0].mxu0
        %v1342 = vpop.f32.mrb[0].mxu0
        %v1343 = vadd.f32 0.0, %v1342
        %v1344 = vpop.f32.mrb[0].mxu0
        %1345 = vmatprep.mubr.bf16.mxu0 %v703
        %1346 = vmatmul.mubr.bf16.gmra.mrb[0].mxu0 %v702
        %v1347 = vpop.f32.mrb[0].mxu0
        %v1348 = vadd.f32 0.0, %v1347
        %v1349 = vpop.f32.mrb[0].mxu0
        %v1350 = vpop.f32.mrb[0].mxu0
        %v1351 = vadd.f32 0.0, %v1350
        %v1352 = vpop.f32.mrb[0].mxu0
        %1353 = vmatprep.mubr.bf16.mxu0 %v712
        %1354 = vmatmul.mubr.bf16.gmra.mrb[0].mxu0 %v711
        %v1355 = vpop.f32.mrb[0].mxu0
        %v1356 = vadd.f32 0.0, %v1355
        %v1357 = vpop.f32.mrb[0].mxu0
        %v1358 = vpop.f32.mrb[0].mxu0
        %v1359 = vadd.f32 0.0, %v1358
        %v1360 = vpop.f32.mrb[0].mxu0
        %1361 = vmatprep.mubr.bf16.mxu0 %v721
        %1362 = vmatmul.mubr.bf16.gmra.mrb[0].mxu0 %v720
        %v1363 = vpop.f32.mrb[0].mxu0
        %v1364 = vadd.f32 0.0, %v1363
        %v1365 = vpop.f32.mrb[0].mxu0
        %v1366 = vpop.f32.mrb[0].mxu0
        %v1367 = vadd.f32 0.0, %v1366
        %v1368 = vpop.f32.mrb[0].mxu0
        %1369 = vdwg.mxu0
        %1370 = vmatprep.subr.bf16.mxu0 0
        %1371 = vmatpush1.bf16.msra.mxu0 %v1177
        %1372 = vmatprep.subr.bf16.mxu0 0
        %1373 = vmatpush1.bf16.msra.mxu0 %v1178
        %1374 = vmatprep.subr.bf16.mxu0 0
        %1375 = vmatpush1.bf16.msra.mxu0 %v1179
        %1376 = vmatprep.subr.bf16.mxu0 0
        %1377 = vmatpush1.bf16.msra.mxu0 %v1180
        %1378 = vmatprep.subr.bf16.mxu0 0
        %1379 = vmatpush1.bf16.msra.mxu0 %v1181
        %1380 = vmatprep.subr.bf16.mxu0 0
        %1381 = vmatpush1.bf16.msra.mxu0 %v1182
        %1382 = vmatprep.subr.bf16.mxu0 0
        %1383 = vmatpush1.bf16.msra.mxu0 %v1183
        %1384 = vmatprep.subr.bf16.mxu0 0
        %1385 = vmatpush1.bf16.msra.mxu0 %v1184
        %1386 = vmatprep.subr.bf16.mxu0 0
        %1387 = vmatpush1.bf16.msra.mxu0 %v1185
        %1388 = vmatprep.subr.bf16.mxu0 0
        %1389 = vmatpush1.bf16.msra.mxu0 %v1186
        %1390 = vmatprep.subr.bf16.mxu0 0
        %1391 = vmatpush1.bf16.msra.mxu0 %v1187
        %1392 = vmatprep.subr.bf16.mxu0 0
        %1393 = vmatpush1.bf16.msra.mxu0 %v1188
        %1394 = vmatprep.subr.bf16.mxu0 0
        %1395 = vmatpush1.bf16.msra.mxu0 %v1189
        %1396 = vmatprep.subr.bf16.mxu0 0
        %1397 = vmatpush1.bf16.msra.mxu0 %v1190
        %1398 = vmatprep.subr.bf16.mxu0 0
        %1399 = vmatpush1.bf16.msra.mxu0 %v1191
        %1400 = vmatprep.subr.bf16.mxu0 0
        %1401 = vmatpush1.bf16.msra.mxu0 %v1192
        %1402 = vmatprep.mubr.bf16.mxu0 %v696
        %1403 = vmatmul.mubr.bf16.gmra.mrb[0].mxu0 %v695
        %v1404 = vpop.f32.mrb[0].mxu0
        %v1405 = vadd.f32 %v1340, %v1404
        %v1406 = vpop.f32.mrb[0].mxu0
        %v1407 = vpop.f32.mrb[0].mxu0
        %v1408 = vadd.f32 %v1343, %v1407
        %v1409 = vpop.f32.mrb[0].mxu0
        %1410 = vmatprep.mubr.bf16.mxu0 %v705
        %1411 = vmatmul.mubr.bf16.gmra.mrb[0].mxu0 %v704
        %v1412 = vpop.f32.mrb[0].mxu0
        %v1413 = vadd.f32 %v1348, %v1412
        %v1414 = vpop.f32.mrb[0].mxu0
        %v1415 = vpop.f32.mrb[0].mxu0
        %v1416 = vadd.f32 %v1351, %v1415
        %v1417 = vpop.f32.mrb[0].mxu0
        %1418 = vmatprep.mubr.bf16.mxu0 %v714
        %1419 = vmatmul.mubr.bf16.gmra.mrb[0].mxu0 %v713
        %v1420 = vpop.f32.mrb[0].mxu0
        %v1421 = vadd.f32 %v1356, %v1420
        %v1422 = vpop.f32.mrb[0].mxu0
        %v1423 = vpop.f32.mrb[0].mxu0
        %v1424 = vadd.f32 %v1359, %v1423
        %v1425 = vpop.f32.mrb[0].mxu0
        %1426 = vmatprep.mubr.bf16.mxu0 %v723
        %1427 = vmatmul.mubr.bf16.gmra.mrb[0].mxu0 %v722
        %v1428 = vpop.f32.mrb[0].mxu0
        %v1429 = vadd.f32 %v1364, %v1428
        %v1430 = vpop.f32.mrb[0].mxu0
        %v1431 = vpop.f32.mrb[0].mxu0
        %v1432 = vadd.f32 %v1367, %v1431
        %v1433 = vpop.f32.mrb[0].mxu0
        %1434 = vdwg.mxu0
        %1435 = vmatprep.subr.bf16.mxu0 0
        %1436 = vmatpush1.bf16.msra.mxu0 %v1193
        %1437 = vmatprep.subr.bf16.mxu0 0
        %1438 = vmatpush1.bf16.msra.mxu0 %v1194
        %1439 = vmatprep.subr.bf16.mxu0 0
        %1440 = vmatpush1.bf16.msra.mxu0 %v1195
        %1441 = vmatprep.subr.bf16.mxu0 0
        %1442 = vmatpush1.bf16.msra.mxu0 %v1196
        %1443 = vmatprep.subr.bf16.mxu0 0
        %1444 = vmatpush1.bf16.msra.mxu0 %v1197
        %1445 = vmatprep.subr.bf16.mxu0 0
        %1446 = vmatpush1.bf16.msra.mxu0 %v1198
        %1447 = vmatprep.subr.bf16.mxu0 0
        %1448 = vmatpush1.bf16.msra.mxu0 %v1199
        %1449 = vmatprep.subr.bf16.mxu0 0
        %1450 = vmatpush1.bf16.msra.mxu0 %v1200
        %1451 = vmatprep.subr.bf16.mxu0 0
        %1452 = vmatpush1.bf16.msra.mxu0 %v1201
        %1453 = vmatprep.subr.bf16.mxu0 0
        %1454 = vmatpush1.bf16.msra.mxu0 %v1202
        %1455 = vmatprep.subr.bf16.mxu0 0
        %1456 = vmatpush1.bf16.msra.mxu0 %v1203
        %1457 = vmatprep.subr.bf16.mxu0 0
        %1458 = vmatpush1.bf16.msra.mxu0 %v1204
        %1459 = vmatprep.subr.bf16.mxu0 0
        %1460 = vmatpush1.bf16.msra.mxu0 %v1205
        %1461 = vmatprep.subr.bf16.mxu0 0
        %1462 = vmatpush1.bf16.msra.mxu0 %v1206
        %1463 = vmatprep.subr.bf16.mxu0 0
        %1464 = vmatpush1.bf16.msra.mxu0 %v1207
        %1465 = vmatprep.subr.bf16.mxu0 0
        %1466 = vmatpush1.bf16.msra.mxu0 %v1208
        %1467 = vmatprep.mubr.bf16.mxu0 %v698
        %1468 = vmatmul.mubr.bf16.gmra.mrb[0].mxu0 %v697
        %v1469 = vpop.f32.mrb[0].mxu0
        %v1470 = vadd.f32 %v1405, %v1469
        %v1471 = vpop.f32.mrb[0].mxu0
        %v1472 = vpop.f32.mrb[0].mxu0
        %v1473 = vadd.f32 %v1408, %v1472
        %v1474 = vpop.f32.mrb[0].mxu0
        %1475 = vmatprep.mubr.bf16.mxu0 %v707
        %1476 = vmatmul.mubr.bf16.gmra.mrb[0].mxu0 %v706
        %v1477 = vpop.f32.mrb[0].mxu0
        %v1478 = vadd.f32 %v1413, %v1477
        %v1479 = vpop.f32.mrb[0].mxu0
        %v1480 = vpop.f32.mrb[0].mxu0
        %v1481 = vadd.f32 %v1416, %v1480
        %v1482 = vpop.f32.mrb[0].mxu0
        %1483 = vmatprep.mubr.bf16.mxu0 %v716
        %1484 = vmatmul.mubr.bf16.gmra.mrb[0].mxu0 %v715
        %v1485 = vpop.f32.mrb[0].mxu0
        %v1486 = vadd.f32 %v1421, %v1485
        %v1487 = vpop.f32.mrb[0].mxu0
        %v1488 = vpop.f32.mrb[0].mxu0
        %v1489 = vadd.f32 %v1424, %v1488
        %v1490 = vpop.f32.mrb[0].mxu0
        %1491 = vmatprep.mubr.bf16.mxu0 %v725
        %1492 = vmatmul.mubr.bf16.gmra.mrb[0].mxu0 %v724
        %v1493 = vpop.f32.mrb[0].mxu0
        %v1494 = vadd.f32 %v1429, %v1493
        %v1495 = vpop.f32.mrb[0].mxu0
        %v1496 = vpop.f32.mrb[0].mxu0
        %v1497 = vadd.f32 %v1432, %v1496
        %v1498 = vpop.f32.mrb[0].mxu0
        %1499 = vdwg.mxu0
        %1500 = vmatprep.subr.bf16.mxu0 0
        %1501 = vmatpush1.bf16.msra.mxu0 %v1209
        %1502 = vmatprep.subr.bf16.mxu0 0
        %1503 = vmatpush1.bf16.msra.mxu0 %v1210
        %1504 = vmatprep.subr.bf16.mxu0 0
        %1505 = vmatpush1.bf16.msra.mxu0 %v1211
        %1506 = vmatprep.subr.bf16.mxu0 0
        %1507 = vmatpush1.bf16.msra.mxu0 %v1212
        %1508 = vmatprep.subr.bf16.mxu0 0
        %1509 = vmatpush1.bf16.msra.mxu0 %v1213
        %1510 = vmatprep.subr.bf16.mxu0 0
        %1511 = vmatpush1.bf16.msra.mxu0 %v1214
        %1512 = vmatprep.subr.bf16.mxu0 0
        %1513 = vmatpush1.bf16.msra.mxu0 %v1215
        %1514 = vmatprep.subr.bf16.mxu0 0
        %1515 = vmatpush1.bf16.msra.mxu0 %v1216
        %1516 = vmatprep.subr.bf16.mxu0 0
        %1517 = vmatpush1.bf16.msra.mxu0 %v1217
        %1518 = vmatprep.subr.bf16.mxu0 0
        %1519 = vmatpush1.bf16.msra.mxu0 %v1218
        %1520 = vmatprep.subr.bf16.mxu0 0
        %1521 = vmatpush1.bf16.msra.mxu0 %v1219
        %1522 = vmatprep.subr.bf16.mxu0 0
        %1523 = vmatpush1.bf16.msra.mxu0 %v1220
        %1524 = vmatprep.subr.bf16.mxu0 0
        %1525 = vmatpush1.bf16.msra.mxu0 %v1221
        %1526 = vmatprep.subr.bf16.mxu0 0
        %1527 = vmatpush1.bf16.msra.mxu0 %v1222
        %1528 = vmatprep.subr.bf16.mxu0 0
        %1529 = vmatpush1.bf16.msra.mxu0 %v1223
        %1530 = vmatprep.subr.bf16.mxu0 0
        %1531 = vmatpush1.bf16.msra.mxu0 %v1224
        %1532 = vmatprep.mubr.bf16.mxu0 %v700
        %1533 = vmatmul.mubr.bf16.gmra.mrb[0].mxu0 %v699
        %v1534 = vpop.f32.mrb[0].mxu0
        %v1535 = vadd.f32 %v1470, %v1534
        %v1536 = vpop.f32.mrb[0].mxu0
        %v1537 = vpop.f32.mrb[0].mxu0
        %v1538 = vadd.f32 %v1473, %v1537
        %v1539 = vpop.f32.mrb[0].mxu0
        %1540 = vmatprep.mubr.bf16.mxu0 %v709
        %1541 = vmatmul.mubr.bf16.gmra.mrb[0].mxu0 %v708
        %v1542 = vpop.f32.mrb[0].mxu0
        %v1543 = vadd.f32 %v1478, %v1542
        %v1544 = vpop.f32.mrb[0].mxu0
        %v1545 = vpop.f32.mrb[0].mxu0
        %v1546 = vadd.f32 %v1481, %v1545
        %v1547 = vpop.f32.mrb[0].mxu0
        %1548 = vmatprep.mubr.bf16.mxu0 %v718
        %1549 = vmatmul.mubr.bf16.gmra.mrb[0].mxu0 %v717
        %v1550 = vpop.f32.mrb[0].mxu0
        %v1551 = vadd.f32 %v1486, %v1550
        %v1552 = vpop.f32.mrb[0].mxu0
        %v1553 = vpop.f32.mrb[0].mxu0
        %v1554 = vadd.f32 %v1489, %v1553
        %v1555 = vpop.f32.mrb[0].mxu0
        %1556 = vmatprep.mubr.bf16.mxu0 %v727
        %1557 = vmatmul.mubr.bf16.gmra.mrb[0].mxu0 %v726
        %v1558 = vpop.f32.mrb[0].mxu0
        %v1559 = vadd.f32 %v1494, %v1558
        %v1560 = vpop.f32.mrb[0].mxu0
        %v1561 = vpop.f32.mrb[0].mxu0
        %v1562 = vadd.f32 %v1497, %v1561
        %v1563 = vpop.f32.mrb[0].mxu0
        %1564 = vdwg.mxu0
        %1565 = vmatprep.subr.bf16.mxu0 0
        %1566 = vmatpush1.bf16.msra.mxu0 %v1225
        %1567 = vmatprep.subr.bf16.mxu0 0
        %1568 = vmatpush1.bf16.msra.mxu0 %v1226
        %1569 = vmatprep.subr.bf16.mxu0 0
        %1570 = vmatpush1.bf16.msra.mxu0 %v1227
        %1571 = vmatprep.subr.bf16.mxu0 0
        %1572 = vmatpush1.bf16.msra.mxu0 %v1228
        %1573 = vmatprep.subr.bf16.mxu0 0
        %1574 = vmatpush1.bf16.msra.mxu0 %v1229
        %1575 = vmatprep.subr.bf16.mxu0 0
        %1576 = vmatpush1.bf16.msra.mxu0 %v1230
        %1577 = vmatprep.subr.bf16.mxu0 0
        %1578 = vmatpush1.bf16.msra.mxu0 %v1231
        %1579 = vmatprep.subr.bf16.mxu0 0
        %1580 = vmatpush1.bf16.msra.mxu0 %v1232
        %1581 = vmatprep.subr.bf16.mxu0 0
        %1582 = vmatpush1.bf16.msra.mxu0 0
        %1583 = vmatprep.subr.bf16.mxu0 0
        %1584 = vmatpush1.bf16.msra.mxu0 0
        %1585 = vmatprep.subr.bf16.mxu0 0
        %1586 = vmatpush1.bf16.msra.mxu0 0
        %1587 = vmatprep.subr.bf16.mxu0 0
        %1588 = vmatpush1.bf16.msra.mxu0 0
        %1589 = vmatprep.subr.bf16.mxu0 0
        %1590 = vmatpush1.bf16.msra.mxu0 0
        %1591 = vmatprep.subr.bf16.mxu0 0
        %1592 = vmatpush1.bf16.msra.mxu0 0
        %1593 = vmatprep.subr.bf16.mxu0 0
        %1594 = vmatpush1.bf16.msra.mxu0 0
        %1595 = vmatprep.subr.bf16.mxu0 0
        %1596 = vmatpush1.bf16.msra.mxu0 0
        %1597 = vmatprep.mubr.bf16.mxu0 0
        %1598 = vmatmul.mubr.bf16.gmra.mrb[0].mxu0 %v701
        %v1599 = vpop.f32.mrb[0].mxu0
        %v1600 = vadd.f32 %v1535, %v1599
        %v1601 = vpop.f32.mrb[0].mxu0
        %v1602 = vpop.f32.mrb[0].mxu0
        %v1603 = vadd.f32 %v1538, %v1602
        %v1604 = vpop.f32.mrb[0].mxu0
        %1605 = vmatprep.mubr.bf16.mxu0 0
        %1606 = vmatmul.mubr.bf16.gmra.mrb[0].mxu0 %v710
        %v1607 = vpop.f32.mrb[0].mxu0
        %v1608 = vadd.f32 %v1543, %v1607
        %v1609 = vpop.f32.mrb[0].mxu0
        %v1610 = vpop.f32.mrb[0].mxu0
        %v1611 = vadd.f32 %v1546, %v1610
        %v1612 = vpop.f32.mrb[0].mxu0
        %1613 = vmatprep.mubr.bf16.mxu0 0
        %1614 = vmatmul.mubr.bf16.gmra.mrb[0].mxu0 %v719
        %v1615 = vpop.f32.mrb[0].mxu0
        %v1616 = vadd.f32 %v1551, %v1615
        %v1617 = vpop.f32.mrb[0].mxu0
        %v1618 = vpop.f32.mrb[0].mxu0
        %v1619 = vadd.f32 %v1554, %v1618
        %v1620 = vpop.f32.mrb[0].mxu0
        %1621 = vmatprep.mubr.bf16.mxu0 0
        %1622 = vmatmul.mubr.bf16.gmra.mrb[0].mxu0 %v728
        %v1623 = vpop.f32.mrb[0].mxu0
        %v1624 = vadd.f32 %v1559, %v1623
        %v1625 = vpop.f32.mrb[0].mxu0
        %v1626 = vpop.f32.mrb[0].mxu0
        %v1627 = vadd.f32 %v1562, %v1626
        %v1628 = vpop.f32.mrb[0].mxu0
        %1629 = vdwg.mxu0
        %v1630 = vld [vmem:[%s2] sm:$0x1]
        %v1632 = vlaneseq
        %v1633 = vshrl.u32 %v1632, 7
        %v1634 = vsub.s32 0, %v1633
        %v1635 = vrot.slane %v1630, %v1634
        %v1637 = vmul.f32 %v1600, %v1635
        %v1638 = vmul.f32 %v1603, %v1635
        %v1639 = vmul.f32 %v1608, %v1635
        %v1640 = vmul.f32 %v1611, %v1635
        %v1641 = vmul.f32 %v1616, %v1635
        %v1642 = vmul.f32 %v1619, %v1635
        %v1643 = vmul.f32 %v1624, %v1635
        %v1644 = vmul.f32 %v1627, %v1635
        %v1645 = vld [vmem:[%s3] sm:$0x1]
        %v1647 = vlaneseq
        %v1648 = vshrl.u32 %v1647, 7
        %v1649 = vsub.s32 0, %v1648
        %v1650 = vrot.slane %v1645, %v1649
        %v1652 = vadd.f32 %v1637, %v1650
        %v1653 = vadd.f32 %v1638, %v1650
        %v1654 = vadd.f32 %v1639, %v1650
        %v1655 = vadd.f32 %v1640, %v1650
        %v1656 = vadd.f32 %v1641, %v1650
        %v1657 = vadd.f32 %v1642, %v1650
        %v1658 = vadd.f32 %v1643, %v1650
        %v1659 = vadd.f32 %v1644, %v1650
        %v1660 = vmax.f32 %v1652, 0.0
        %v1661 = vmax.f32 %v1653, 0.0
        %v1662 = vmax.f32 %v1654, 0.0
        %v1663 = vmax.f32 %v1655, 0.0
        %v1664 = vmax.f32 %v1656, 0.0
        %v1665 = vmax.f32 %v1657, 0.0
        %v1666 = vmax.f32 %v1658, 0.0
        %v1667 = vmax.f32 %v1659, 0.0
        %1668 = vst [vmem:[#allocation3] sm:$0xff] 0.0
        %1669 = vst [vmem:[#allocation3 + $0x8] sm:$0x3] 0.0
        %1670 = vst [vmem:[#allocation3 + $0x10] sm:$0xff] 0.0
        %1671 = vst [vmem:[#allocation3 + $0x18] sm:$0x3] 0.0
        %1672 = vst [vmem:[#allocation3 + $0x20] sm:$0xff] 0.0
        %1673 = vst [vmem:[#allocation3 + $0x28] sm:$0x3] 0.0
        %1674 = vst [vmem:[#allocation3 + $0x30] sm:$0xff] 0.0
        %1675 = vst [vmem:[#allocation3 + $0x38] sm:$0x3] 0.0
        %1676 = vst [vmem:[#allocation3 + $0x40] sm:$0xff] 0.0
        %1677 = vst [vmem:[#allocation3 + $0x48] sm:$0x3] 0.0
        %1678 = vst [vmem:[#allocation3 + $0x50] sm:$0xff] 0.0
        %1679 = vst [vmem:[#allocation3 + $0x58] sm:$0x3] 0.0
        %1680 = vst [vmem:[#allocation3 + $0x60] sm:$0xff] 0.0
        %1681 = vst [vmem:[#allocation3 + $0x68] sm:$0x3] 0.0
        %1682 = vst [vmem:[#allocation3 + $0x70] sm:$0xff] 0.0
        %1683 = vst [vmem:[#allocation3 + $0x78] sm:$0x3] 0.0
        %1684 = vst [vmem:[#allocation3 + $0x80] sm:$0xff] 0.0
        %1685 = vst [vmem:[#allocation3 + $0x88] sm:$0x3] 0.0
        %1686 = vst [vmem:[#allocation3 + $0x90] sm:$0xff] 0.0
        %1687 = vst [vmem:[#allocation3 + $0x98] sm:$0x3] 0.0
        %s1688 = scalar_lea.vmem [#allocation3], 16
        %1689 = vst.msk [vmem:[%s1688 + $0x1] sm:$0xff] %vm446, %v1660
        %1690 = vst.msk [vmem:[%s1688 + $0x11] sm:$0xff] %vm446, %v1661
        %1691 = vst.msk [vmem:[%s1688 + $0x21] sm:$0xff] %vm446, %v1662
        %1692 = vst.msk [vmem:[%s1688 + $0x31] sm:$0xff] %vm446, %v1663
        %1693 = vst.msk [vmem:[%s1688 + $0x41] sm:$0xff] %vm446, %v1664
        %1694 = vst.msk [vmem:[%s1688 + $0x51] sm:$0xff] %vm446, %v1665
        %1695 = vst.msk [vmem:[%s1688 + $0x61] sm:$0xff] %vm446, %v1666
        %1696 = vst.msk [vmem:[%s1688 + $0x71] sm:$0xff] %vm446, %v1667
        %v1697 = vld [vmem:[#allocation3] sm:$0xff]
        %v1698 = vld [vmem:[#allocation3 + $0x10] sm:$0xff]
        %v1699 = vld [vmem:[#allocation3 + $0x20] sm:$0xff]
        %v1700 = vld [vmem:[#allocation3 + $0x30] sm:$0xff]
        %v1701 = vld [vmem:[#allocation3 + $0x40] sm:$0xff]
        %v1702 = vld [vmem:[#allocation3 + $0x50] sm:$0xff]
        %v1703 = vld [vmem:[#allocation3 + $0x60] sm:$0xff]
        %v1704 = vld [vmem:[#allocation3 + $0x70] sm:$0xff]
        %v1705 = vpack.c.bf16 %v1698, %v1697
        %v1706 = vpack.c.bf16 %v1700, %v1699
        %v1707 = vpack.c.bf16 %v1702, %v1701
        %v1708 = vpack.c.bf16 %v1704, %v1703
        %1709 = vst [vmem:[#allocation6] sm:$0xff] %v1705
        %1710 = vst [vmem:[#allocation6 + $0x48] sm:$0xff] %v1706
        %1711 = vst [vmem:[#allocation6 + $0x90] sm:$0xff] %v1707
        %1712 = vst [vmem:[#allocation6 + $0xd8] sm:$0xff] %v1708
        %v1713 = vld [vmem:[#allocation3 + $0x1] sm:$0xff]
        %v1714 = vld [vmem:[#allocation3 + $0x11] sm:$0xff]
        %v1715 = vld [vmem:[#allocation3 + $0x21] sm:$0xff]
        %v1716 = vld [vmem:[#allocation3 + $0x31] sm:$0xff]
        %v1717 = vld [vmem:[#allocation3 + $0x41] sm:$0xff]
        %v1718 = vld [vmem:[#allocation3 + $0x51] sm:$0xff]
        %v1719 = vld [vmem:[#allocation3 + $0x61] sm:$0xff]
        %v1720 = vld [vmem:[#allocation3 + $0x71] sm:$0xff]
        %v1721 = vpack.c.bf16 %v1714, %v1713
        %v1722 = vpack.c.bf16 %v1716, %v1715
        %v1723 = vpack.c.bf16 %v1718, %v1717
        %v1724 = vpack.c.bf16 %v1720, %v1719
        %1725 = vst [vmem:[#allocation6 + $0x8] sm:$0xff] %v1721
        %1726 = vst [vmem:[#allocation6 + $0x50] sm:$0xff] %v1722
        %1727 = vst [vmem:[#allocation6 + $0x98] sm:$0xff] %v1723
        %1728 = vst [vmem:[#allocation6 + $0xe0] sm:$0xff] %v1724
        %v1729 = vld [vmem:[#allocation3 + $0x2] sm:$0xff]
        %v1730 = vld [vmem:[#allocation3 + $0x12] sm:$0xff]
        %v1731 = vld [vmem:[#allocation3 + $0x22] sm:$0xff]
        %v1732 = vld [vmem:[#allocation3 + $0x32] sm:$0xff]
        %v1733 = vld [vmem:[#allocation3 + $0x42] sm:$0xff]
        %v1734 = vld [vmem:[#allocation3 + $0x52] sm:$0xff]
        %v1735 = vld [vmem:[#allocation3 + $0x62] sm:$0xff]
        %v1736 = vld [vmem:[#allocation3 + $0x72] sm:$0xff]
        %v1737 = vpack.c.bf16 %v1730, %v1729
        %v1738 = vpack.c.bf16 %v1732, %v1731
        %v1739 = vpack.c.bf16 %v1734, %v1733
        %v1740 = vpack.c.bf16 %v1736, %v1735
        %1741 = vst [vmem:[#allocation6 + $0x10] sm:$0xff] %v1737
        %1742 = vst [vmem:[#allocation6 + $0x58] sm:$0xff] %v1738
        %1743 = vst [vmem:[#allocation6 + $0xa0] sm:$0xff] %v1739
        %1744 = vst [vmem:[#allocation6 + $0xe8] sm:$0xff] %v1740
        %v1745 = vld [vmem:[%s1688] sm:$0xff]
        %v1746 = vld [vmem:[%s1688 + $0x10] sm:$0xff]
        %v1747 = vld [vmem:[%s1688 + $0x20] sm:$0xff]
        %v1748 = vld [vmem:[%s1688 + $0x30] sm:$0xff]
        %v1749 = vld [vmem:[%s1688 + $0x40] sm:$0xff]
        %v1750 = vld [vmem:[%s1688 + $0x50] sm:$0xff]
        %v1751 = vld [vmem:[%s1688 + $0x60] sm:$0xff]
        %v1752 = vld [vmem:[%s1688 + $0x70] sm:$0xff]
        %v1753 = vpack.c.bf16 %v1746, %v1745
        %v1754 = vpack.c.bf16 %v1748, %v1747
        %v1755 = vpack.c.bf16 %v1750, %v1749
        %v1756 = vpack.c.bf16 %v1752, %v1751
        %1757 = vst [vmem:[#allocation6 + $0x18] sm:$0xff] %v1753
        %1758 = vst [vmem:[#allocation6 + $0x60] sm:$0xff] %v1754
        %1759 = vst [vmem:[#allocation6 + $0xa8] sm:$0xff] %v1755
        %1760 = vst [vmem:[#allocation6 + $0xf0] sm:$0xff] %v1756
        %v1761 = vld [vmem:[%s1688 + $0x1] sm:$0xff]
        %v1762 = vld [vmem:[%s1688 + $0x11] sm:$0xff]
        %v1763 = vld [vmem:[%s1688 + $0x21] sm:$0xff]
        %v1764 = vld [vmem:[%s1688 + $0x31] sm:$0xff]
        %v1765 = vld [vmem:[%s1688 + $0x41] sm:$0xff]
        %v1766 = vld [vmem:[%s1688 + $0x51] sm:$0xff]
        %v1767 = vld [vmem:[%s1688 + $0x61] sm:$0xff]
        %v1768 = vld [vmem:[%s1688 + $0x71] sm:$0xff]
        %v1769 = vpack.c.bf16 %v1762, %v1761
        %v1770 = vpack.c.bf16 %v1764, %v1763
        %v1771 = vpack.c.bf16 %v1766, %v1765
        %v1772 = vpack.c.bf16 %v1768, %v1767
        %1773 = vst [vmem:[#allocation6 + $0x20] sm:$0xff] %v1769
        %1774 = vst [vmem:[#allocation6 + $0x68] sm:$0xff] %v1770
        %1775 = vst [vmem:[#allocation6 + $0xb0] sm:$0xff] %v1771
        %1776 = vst [vmem:[#allocation6 + $0xf8] sm:$0xff] %v1772
        %v1777 = vld [vmem:[%s1688 + $0x2] sm:$0xff]
        %v1778 = vld [vmem:[%s1688 + $0x12] sm:$0xff]
        %v1779 = vld [vmem:[%s1688 + $0x22] sm:$0xff]
        %v1780 = vld [vmem:[%s1688 + $0x32] sm:$0xff]
        %v1781 = vld [vmem:[%s1688 + $0x42] sm:$0xff]
        %v1782 = vld [vmem:[%s1688 + $0x52] sm:$0xff]
        %v1783 = vld [vmem:[%s1688 + $0x62] sm:$0xff]
        %v1784 = vld [vmem:[%s1688 + $0x72] sm:$0xff]
        %v1785 = vpack.c.bf16 %v1778, %v1777
        %v1786 = vpack.c.bf16 %v1780, %v1779
        %v1787 = vpack.c.bf16 %v1782, %v1781
        %v1788 = vpack.c.bf16 %v1784, %v1783
        %1789 = vst [vmem:[#allocation6 + $0x28] sm:$0xff] %v1785
        %1790 = vst [vmem:[#allocation6 + $0x70] sm:$0xff] %v1786
        %1791 = vst [vmem:[#allocation6 + $0xb8] sm:$0xff] %v1787
        %1792 = vst [vmem:[#allocation6 + $0x100] sm:$0xff] %v1788
        %s1793 = scalar_lea.vmem [#allocation3], 32
        %v1794 = vld [vmem:[%s1793] sm:$0xff]
        %v1795 = vld [vmem:[%s1793 + $0x10] sm:$0xff]
        %v1796 = vld [vmem:[%s1793 + $0x20] sm:$0xff]
        %v1797 = vld [vmem:[%s1793 + $0x30] sm:$0xff]
        %v1798 = vld [vmem:[%s1793 + $0x40] sm:$0xff]
        %v1799 = vld [vmem:[%s1793 + $0x50] sm:$0xff]
        %v1800 = vld [vmem:[%s1793 + $0x60] sm:$0xff]
        %v1801 = vld [vmem:[%s1793 + $0x70] sm:$0xff]
        %v1802 = vpack.c.bf16 %v1795, %v1794
        %v1803 = vpack.c.bf16 %v1797, %v1796
        %v1804 = vpack.c.bf16 %v1799, %v1798
        %v1805 = vpack.c.bf16 %v1801, %v1800
        %1806 = vst [vmem:[#allocation6 + $0x30] sm:$0xff] %v1802
        %1807 = vst [vmem:[#allocation6 + $0x78] sm:$0xff] %v1803
        %1808 = vst [vmem:[#allocation6 + $0xc0] sm:$0xff] %v1804
        %1809 = vst [vmem:[#allocation6 + $0x108] sm:$0xff] %v1805
        %v1810 = vld [vmem:[%s1793 + $0x1] sm:$0xff]
        %v1811 = vld [vmem:[%s1793 + $0x11] sm:$0xff]
        %v1812 = vld [vmem:[%s1793 + $0x21] sm:$0xff]
        %v1813 = vld [vmem:[%s1793 + $0x31] sm:$0xff]
        %v1814 = vld [vmem:[%s1793 + $0x41] sm:$0xff]
        %v1815 = vld [vmem:[%s1793 + $0x51] sm:$0xff]
        %v1816 = vld [vmem:[%s1793 + $0x61] sm:$0xff]
        %v1817 = vld [vmem:[%s1793 + $0x71] sm:$0xff]
        %v1818 = vpack.c.bf16 %v1811, %v1810
        %v1819 = vpack.c.bf16 %v1813, %v1812
        %v1820 = vpack.c.bf16 %v1815, %v1814
        %v1821 = vpack.c.bf16 %v1817, %v1816
        %1822 = vst [vmem:[#allocation6 + $0x38] sm:$0xff] %v1818
        %1823 = vst [vmem:[#allocation6 + $0x80] sm:$0xff] %v1819
        %1824 = vst [vmem:[#allocation6 + $0xc8] sm:$0xff] %v1820
        %1825 = vst [vmem:[#allocation6 + $0x110] sm:$0xff] %v1821
        %v1826 = vld [vmem:[%s1793 + $0x2] sm:$0xff]
        %v1827 = vld [vmem:[%s1793 + $0x12] sm:$0xff]
        %v1828 = vld [vmem:[%s1793 + $0x22] sm:$0xff]
        %v1829 = vld [vmem:[%s1793 + $0x32] sm:$0xff]
        %v1830 = vld [vmem:[%s1793 + $0x42] sm:$0xff]
        %v1831 = vld [vmem:[%s1793 + $0x52] sm:$0xff]
        %v1832 = vld [vmem:[%s1793 + $0x62] sm:$0xff]
        %v1833 = vld [vmem:[%s1793 + $0x72] sm:$0xff]
        %v1834 = vpack.c.bf16 %v1827, %v1826
        %v1835 = vpack.c.bf16 %v1829, %v1828
        %v1836 = vpack.c.bf16 %v1831, %v1830
        %v1837 = vpack.c.bf16 %v1833, %v1832
        %1838 = vst [vmem:[#allocation6 + $0x40] sm:$0xff] %v1834
        %1839 = vst [vmem:[#allocation6 + $0x88] sm:$0xff] %v1835
        %1840 = vst [vmem:[#allocation6 + $0xd0] sm:$0xff] %v1836
        %1841 = vst [vmem:[#allocation6 + $0x118] sm:$0xff] %v1837
        %v1842 = vld [vmem:[#allocation6] sm:$0xff]
        %v1843 = vld [vmem:[#allocation6 + $0x8] sm:$0xff]
        %v1844 = vld [vmem:[#allocation6 + $0x10] sm:$0xff]
        %v1845 = vld [vmem:[#allocation6 + $0x18] sm:$0xff]
        %v1846 = vld [vmem:[#allocation6 + $0x20] sm:$0xff]
        %v1847 = vld [vmem:[#allocation6 + $0x28] sm:$0xff]
        %v1848 = vld [vmem:[#allocation6 + $0x30] sm:$0xff]
        %v1849 = vld [vmem:[#allocation6 + $0x38] sm:$0xff]
        %v1850 = vld [vmem:[#allocation6 + $0x40] sm:$0xff]
        %v1851 = vld [vmem:[#allocation6 + $0x48] sm:$0xff]
        %v1852 = vld [vmem:[#allocation6 + $0x50] sm:$0xff]
        %v1853 = vld [vmem:[#allocation6 + $0x58] sm:$0xff]
        %v1854 = vld [vmem:[#allocation6 + $0x60] sm:$0xff]
        %v1855 = vld [vmem:[#allocation6 + $0x68] sm:$0xff]
        %v1856 = vld [vmem:[#allocation6 + $0x70] sm:$0xff]
        %v1857 = vld [vmem:[#allocation6 + $0x78] sm:$0xff]
        %v1858 = vld [vmem:[#allocation6 + $0x80] sm:$0xff]
        %v1859 = vld [vmem:[#allocation6 + $0x88] sm:$0xff]
        %v1860 = vld [vmem:[#allocation6 + $0x90] sm:$0xff]
        %v1861 = vld [vmem:[#allocation6 + $0x98] sm:$0xff]
        %v1862 = vld [vmem:[#allocation6 + $0xa0] sm:$0xff]
        %v1863 = vld [vmem:[#allocation6 + $0xa8] sm:$0xff]
        %v1864 = vld [vmem:[#allocation6 + $0xb0] sm:$0xff]
        %v1865 = vld [vmem:[#allocation6 + $0xb8] sm:$0xff]
        %v1866 = vld [vmem:[#allocation6 + $0xc0] sm:$0xff]
        %v1867 = vld [vmem:[#allocation6 + $0xc8] sm:$0xff]
        %v1868 = vld [vmem:[#allocation6 + $0xd0] sm:$0xff]
        %v1869 = vld [vmem:[#allocation6 + $0xd8] sm:$0xff]
        %v1870 = vld [vmem:[#allocation6 + $0xe0] sm:$0xff]
        %v1871 = vld [vmem:[#allocation6 + $0xe8] sm:$0xff]
        %v1872 = vld [vmem:[#allocation6 + $0xf0] sm:$0xff]
        %v1873 = vld [vmem:[#allocation6 + $0xf8] sm:$0xff]
        %v1874 = vld [vmem:[#allocation6 + $0x100] sm:$0xff]
        %v1875 = vld [vmem:[#allocation6 + $0x108] sm:$0xff]
        %v1876 = vld [vmem:[#allocation6 + $0x110] sm:$0xff]
        %v1877 = vld [vmem:[#allocation6 + $0x118] sm:$0xff]
        %v1878 = vld [vmem:[%s4] sm:$0xf]
        %v1879 = vld [vmem:[%s4 + $0x4] sm:$0xf]
        %v1880 = vld [vmem:[%s4 + $0x8] sm:$0xf]
        %v1881 = vld [vmem:[%s4 + $0xc] sm:$0xf]
        %v1882 = vld [vmem:[%s4 + $0x10] sm:$0xf]
        %v1883 = vld [vmem:[%s4 + $0x14] sm:$0xf]
        %v1884 = vld [vmem:[%s4 + $0x18] sm:$0xf]
        %v1885 = vld [vmem:[%s4 + $0x1c] sm:$0xf]
        %v1886 = vld [vmem:[%s4 + $0x20] sm:$0xf]
        %v1887 = vld [vmem:[%s4 + $0x24] sm:$0xf]
        %v1888 = vld [vmem:[%s4 + $0x28] sm:$0xf]
        %v1889 = vld [vmem:[%s4 + $0x2c] sm:$0xf]
        %v1890 = vld [vmem:[%s4 + $0x30] sm:$0xf]
        %v1891 = vld [vmem:[%s4 + $0x34] sm:$0xf]
        %v1892 = vld [vmem:[%s4 + $0x38] sm:$0xf]
        %v1893 = vld [vmem:[%s4 + $0x3c] sm:$0xf]
        %v1894 = vld [vmem:[%s4 + $0x40] sm:$0xf]
        %v1895 = vld [vmem:[%s4 + $0x44] sm:$0xf]
        %v1896 = vld [vmem:[%s4 + $0x48] sm:$0xf]
        %v1897 = vld [vmem:[%s4 + $0x4c] sm:$0xf]
        %v1898 = vld [vmem:[%s4 + $0x50] sm:$0xf]
        %v1899 = vld [vmem:[%s4 + $0x54] sm:$0xf]
        %v1900 = vld [vmem:[%s4 + $0x58] sm:$0xf]
        %v1901 = vld [vmem:[%s4 + $0x5c] sm:$0xf]
        %v1902 = vld [vmem:[%s4 + $0x60] sm:$0xf]
        %v1903 = vld [vmem:[%s4 + $0x64] sm:$0xf]
        %v1904 = vld [vmem:[%s4 + $0x68] sm:$0xf]
        %v1905 = vld [vmem:[%s4 + $0x6c] sm:$0xf]
        %v1906 = vld [vmem:[%s4 + $0x70] sm:$0xf]
        %v1907 = vld [vmem:[%s4 + $0x74] sm:$0xf]
        %v1908 = vld [vmem:[%s4 + $0x78] sm:$0xf]
        %v1909 = vld [vmem:[%s4 + $0x7c] sm:$0xf]
        %v1910 = vld [vmem:[%s4 + $0x80] sm:$0xf]
        %v1911 = vld [vmem:[%s4 + $0x84] sm:$0xf]
        %v1912 = vld [vmem:[%s4 + $0x88] sm:$0xf]
        %v1913 = vld [vmem:[%s4 + $0x8c] sm:$0xf]
        %v1914 = vld [vmem:[%s4 + $0x90] sm:$0xf]
        %v1915 = vld [vmem:[%s4 + $0x94] sm:$0xf]
        %v1916 = vld [vmem:[%s4 + $0x98] sm:$0xf]
        %v1917 = vld [vmem:[%s4 + $0x9c] sm:$0xf]
        %v1918 = vld [vmem:[%s4 + $0xa0] sm:$0xf]
        %v1919 = vld [vmem:[%s4 + $0xa4] sm:$0xf]
        %v1920 = vld [vmem:[%s4 + $0xa8] sm:$0xf]
        %v1921 = vld [vmem:[%s4 + $0xac] sm:$0xf]
        %v1922 = vld [vmem:[%s4 + $0xb0] sm:$0xf]
        %v1923 = vld [vmem:[%s4 + $0xb4] sm:$0xf]
        %v1924 = vld [vmem:[%s4 + $0xb8] sm:$0xf]
        %v1925 = vld [vmem:[%s4 + $0xbc] sm:$0xf]
        %v1926 = vld [vmem:[%s4 + $0xc0] sm:$0xf]
        %v1927 = vld [vmem:[%s4 + $0xc4] sm:$0xf]
        %v1928 = vld [vmem:[%s4 + $0xc8] sm:$0xf]
        %v1929 = vld [vmem:[%s4 + $0xcc] sm:$0xf]
        %v1930 = vld [vmem:[%s4 + $0xd0] sm:$0xf]
        %v1931 = vld [vmem:[%s4 + $0xd4] sm:$0xf]
        %v1932 = vld [vmem:[%s4 + $0xd8] sm:$0xf]
        %v1933 = vld [vmem:[%s4 + $0xdc] sm:$0xf]
        %v1934 = vld [vmem:[%s4 + $0xe0] sm:$0xf]
        %v1935 = vld [vmem:[%s4 + $0xe4] sm:$0xf]
        %v1936 = vld [vmem:[%s4 + $0xe8] sm:$0xf]
        %v1937 = vld [vmem:[%s4 + $0xec] sm:$0xf]
        %v1938 = vld [vmem:[%s4 + $0xf0] sm:$0xf]
        %v1939 = vld [vmem:[%s4 + $0xf4] sm:$0xf]
        %v1940 = vld [vmem:[%s4 + $0xf8] sm:$0xf]
        %v1941 = vld [vmem:[%s4 + $0xfc] sm:$0xf]
        %v1942 = vld [vmem:[%s4 + $0x100] sm:$0xf]
        %v1943 = vld [vmem:[%s4 + $0x104] sm:$0xf]
        %v1944 = vld [vmem:[%s4 + $0x108] sm:$0xf]
        %v1945 = vld [vmem:[%s4 + $0x10c] sm:$0xf]
        %v1946 = vld [vmem:[%s4 + $0x110] sm:$0xf]
        %v1947 = vld [vmem:[%s4 + $0x114] sm:$0xf]
        %v1948 = vld [vmem:[%s4 + $0x118] sm:$0xf]
        %v1949 = vld [vmem:[%s4 + $0x11c] sm:$0xf]
        %v1950 = vld [vmem:[%s4 + $0x120] sm:$0xf]
        %v1951 = vld [vmem:[%s4 + $0x124] sm:$0xf]
        %v1952 = vld [vmem:[%s4 + $0x128] sm:$0xf]
        %v1953 = vld [vmem:[%s4 + $0x12c] sm:$0xf]
        %v1954 = vld [vmem:[%s4 + $0x130] sm:$0xf]
        %v1955 = vld [vmem:[%s4 + $0x134] sm:$0xf]
        %v1956 = vld [vmem:[%s4 + $0x138] sm:$0xf]
        %v1957 = vld [vmem:[%s4 + $0x13c] sm:$0xf]
        %v1958 = vld [vmem:[%s4 + $0x140] sm:$0xf]
        %v1959 = vld [vmem:[%s4 + $0x144] sm:$0xf]
        %v1960 = vld [vmem:[%s4 + $0x148] sm:$0xf]
        %v1961 = vld [vmem:[%s4 + $0x14c] sm:$0xf]
        %v1962 = vld [vmem:[%s4 + $0x150] sm:$0xf]
        %v1963 = vld [vmem:[%s4 + $0x154] sm:$0xf]
        %v1964 = vld [vmem:[%s4 + $0x158] sm:$0xf]
        %v1965 = vld [vmem:[%s4 + $0x15c] sm:$0xf]
        %v1966 = vld [vmem:[%s4 + $0x160] sm:$0xf]
        %v1967 = vld [vmem:[%s4 + $0x164] sm:$0xf]
        %v1968 = vld [vmem:[%s4 + $0x168] sm:$0xf]
        %v1969 = vld [vmem:[%s4 + $0x16c] sm:$0xf]
        %v1970 = vld [vmem:[%s4 + $0x170] sm:$0xf]
        %v1971 = vld [vmem:[%s4 + $0x174] sm:$0xf]
        %v1972 = vld [vmem:[%s4 + $0x178] sm:$0xf]
        %v1973 = vld [vmem:[%s4 + $0x17c] sm:$0xf]
        %v1974 = vld [vmem:[%s4 + $0x180] sm:$0xf]
        %v1975 = vld [vmem:[%s4 + $0x184] sm:$0xf]
        %v1976 = vld [vmem:[%s4 + $0x188] sm:$0xf]
        %v1977 = vld [vmem:[%s4 + $0x18c] sm:$0xf]
        %v1978 = vld [vmem:[%s4 + $0x190] sm:$0xf]
        %v1979 = vld [vmem:[%s4 + $0x194] sm:$0xf]
        %v1980 = vld [vmem:[%s4 + $0x198] sm:$0xf]
        %v1981 = vld [vmem:[%s4 + $0x19c] sm:$0xf]
        %v1982 = vld [vmem:[%s4 + $0x1a0] sm:$0xf]
        %v1983 = vld [vmem:[%s4 + $0x1a4] sm:$0xf]
        %v1984 = vld [vmem:[%s4 + $0x1a8] sm:$0xf]
        %v1985 = vld [vmem:[%s4 + $0x1ac] sm:$0xf]
        %v1986 = vld [vmem:[%s4 + $0x1b0] sm:$0xf]
        %v1987 = vld [vmem:[%s4 + $0x1b4] sm:$0xf]
        %v1988 = vld [vmem:[%s4 + $0x1b8] sm:$0xf]
        %v1989 = vld [vmem:[%s4 + $0x1bc] sm:$0xf]
        %v1990 = vld [vmem:[%s4 + $0x1c0] sm:$0xf]
        %v1991 = vld [vmem:[%s4 + $0x1c4] sm:$0xf]
        %v1992 = vld [vmem:[%s4 + $0x1c8] sm:$0xf]
        %v1993 = vld [vmem:[%s4 + $0x1cc] sm:$0xf]
        %v1994 = vld [vmem:[%s4 + $0x1d0] sm:$0xf]
        %v1995 = vld [vmem:[%s4 + $0x1d4] sm:$0xf]
        %v1996 = vld [vmem:[%s4 + $0x1d8] sm:$0xf]
        %v1997 = vld [vmem:[%s4 + $0x1dc] sm:$0xf]
        %v1998 = vld [vmem:[%s4 + $0x1e0] sm:$0xf]
        %v1999 = vld [vmem:[%s4 + $0x1e4] sm:$0xf]
        %v2000 = vld [vmem:[%s4 + $0x1e8] sm:$0xf]
        %v2001 = vld [vmem:[%s4 + $0x1ec] sm:$0xf]
        %v2002 = vld [vmem:[%s4 + $0x1f0] sm:$0xf]
        %v2003 = vld [vmem:[%s4 + $0x1f4] sm:$0xf]
        %v2004 = vld [vmem:[%s4 + $0x1f8] sm:$0xf]
        %v2005 = vld [vmem:[%s4 + $0x1fc] sm:$0xf]
        %v2006 = vld [vmem:[%s4 + $0x200] sm:$0xf]
        %v2007 = vld [vmem:[%s4 + $0x204] sm:$0xf]
        %v2008 = vld [vmem:[%s4 + $0x208] sm:$0xf]
        %v2009 = vld [vmem:[%s4 + $0x20c] sm:$0xf]
        %v2010 = vld [vmem:[%s4 + $0x210] sm:$0xf]
        %v2011 = vld [vmem:[%s4 + $0x214] sm:$0xf]
        %v2012 = vld [vmem:[%s4 + $0x218] sm:$0xf]
        %v2013 = vld [vmem:[%s4 + $0x21c] sm:$0xf]
        %v2014 = vld [vmem:[%s4 + $0x220] sm:$0xf]
        %v2015 = vld [vmem:[%s4 + $0x224] sm:$0xf]
        %v2016 = vld [vmem:[%s4 + $0x228] sm:$0xf]
        %v2017 = vld [vmem:[%s4 + $0x22c] sm:$0xf]
        %v2018 = vld [vmem:[%s4 + $0x230] sm:$0xf]
        %v2019 = vld [vmem:[%s4 + $0x234] sm:$0xf]
        %v2020 = vld [vmem:[%s4 + $0x238] sm:$0xf]
        %v2021 = vld [vmem:[%s4 + $0x23c] sm:$0xf]
        %v2166 = vunpack.c.l.b16 %v1878
        %v2167 = vunpack.c.l.b16 %v1879
        %v2168 = vunpack.c.l.b16 %v1880
        %v2169 = vunpack.c.l.b16 %v1881
        %v2170 = vunpack.c.l.b16 %v1882
        %v2171 = vunpack.c.l.b16 %v1883
        %v2172 = vunpack.c.l.b16 %v1884
        %v2173 = vunpack.c.l.b16 %v1885
        %v2174 = vunpack.c.l.b16 %v1886
        %v2175 = vunpack.c.l.b16 %v1887
        %v2176 = vunpack.c.l.b16 %v1888
        %v2177 = vunpack.c.l.b16 %v1889
        %v2178 = vunpack.c.l.b16 %v1890
        %v2179 = vunpack.c.l.b16 %v1891
        %v2180 = vunpack.c.l.b16 %v1892
        %v2181 = vunpack.c.l.b16 %v1893
        %v2182 = vunpack.c.l.b16 %v1894
        %v2183 = vunpack.c.l.b16 %v1895
        %v2184 = vunpack.c.l.b16 %v1896
        %v2185 = vunpack.c.l.b16 %v1897
        %v2186 = vunpack.c.l.b16 %v1898
        %v2187 = vunpack.c.l.b16 %v1899
        %v2188 = vunpack.c.l.b16 %v1900
        %v2189 = vunpack.c.l.b16 %v1901
        %v2190 = vunpack.c.l.b16 %v1902
        %v2191 = vunpack.c.l.b16 %v1903
        %v2192 = vunpack.c.l.b16 %v1904
        %v2193 = vunpack.c.l.b16 %v1905
        %v2194 = vunpack.c.l.b16 %v1906
        %v2195 = vunpack.c.l.b16 %v1907
        %v2196 = vunpack.c.l.b16 %v1908
        %v2197 = vunpack.c.l.b16 %v1909
        %v2198 = vunpack.c.l.b16 %v1910
        %v2199 = vunpack.c.l.b16 %v1911
        %v2200 = vunpack.c.l.b16 %v1912
        %v2201 = vunpack.c.l.b16 %v1913
        %v2202 = vunpack.c.l.b16 %v1914
        %v2203 = vunpack.c.l.b16 %v1915
        %v2204 = vunpack.c.l.b16 %v1916
        %v2205 = vunpack.c.l.b16 %v1917
        %v2206 = vunpack.c.l.b16 %v1918
        %v2207 = vunpack.c.l.b16 %v1919
        %v2208 = vunpack.c.l.b16 %v1920
        %v2209 = vunpack.c.l.b16 %v1921
        %v2210 = vunpack.c.l.b16 %v1922
        %v2211 = vunpack.c.l.b16 %v1923
        %v2212 = vunpack.c.l.b16 %v1924
        %v2213 = vunpack.c.l.b16 %v1925
        %v2214 = vunpack.c.l.b16 %v1926
        %v2215 = vunpack.c.l.b16 %v1927
        %v2216 = vunpack.c.l.b16 %v1928
        %v2217 = vunpack.c.l.b16 %v1929
        %v2218 = vunpack.c.l.b16 %v1930
        %v2219 = vunpack.c.l.b16 %v1931
        %v2220 = vunpack.c.l.b16 %v1932
        %v2221 = vunpack.c.l.b16 %v1933
        %v2222 = vunpack.c.l.b16 %v1934
        %v2223 = vunpack.c.l.b16 %v1935
        %v2224 = vunpack.c.l.b16 %v1936
        %v2225 = vunpack.c.l.b16 %v1937
        %v2226 = vunpack.c.l.b16 %v1938
        %v2227 = vunpack.c.l.b16 %v1939
        %v2228 = vunpack.c.l.b16 %v1940
        %v2229 = vunpack.c.l.b16 %v1941
        %v2230 = vunpack.c.l.b16 %v1942
        %v2231 = vunpack.c.l.b16 %v1943
        %v2232 = vunpack.c.l.b16 %v1944
        %v2233 = vunpack.c.l.b16 %v1945
        %v2234 = vunpack.c.l.b16 %v1946
        %v2235 = vunpack.c.l.b16 %v1947
        %v2236 = vunpack.c.l.b16 %v1948
        %v2237 = vunpack.c.l.b16 %v1949
        %v2238 = vunpack.c.l.b16 %v1950
        %v2239 = vunpack.c.l.b16 %v1951
        %v2240 = vunpack.c.l.b16 %v1952
        %v2241 = vunpack.c.l.b16 %v1953
        %v2242 = vunpack.c.l.b16 %v1954
        %v2243 = vunpack.c.l.b16 %v1955
        %v2244 = vunpack.c.l.b16 %v1956
        %v2245 = vunpack.c.l.b16 %v1957
        %v2246 = vunpack.c.l.b16 %v1958
        %v2247 = vunpack.c.l.b16 %v1959
        %v2248 = vunpack.c.l.b16 %v1960
        %v2249 = vunpack.c.l.b16 %v1961
        %v2250 = vunpack.c.l.b16 %v1962
        %v2251 = vunpack.c.l.b16 %v1963
        %v2252 = vunpack.c.l.b16 %v1964
        %v2253 = vunpack.c.l.b16 %v1965
        %v2254 = vunpack.c.l.b16 %v1966
        %v2255 = vunpack.c.l.b16 %v1967
        %v2256 = vunpack.c.l.b16 %v1968
        %v2257 = vunpack.c.l.b16 %v1969
        %v2258 = vunpack.c.l.b16 %v1970
        %v2259 = vunpack.c.l.b16 %v1971
        %v2260 = vunpack.c.l.b16 %v1972
        %v2261 = vunpack.c.l.b16 %v1973
        %v2262 = vunpack.c.l.b16 %v1974
        %v2263 = vunpack.c.l.b16 %v1975
        %v2264 = vunpack.c.l.b16 %v1976
        %v2265 = vunpack.c.l.b16 %v1977
        %v2266 = vunpack.c.l.b16 %v1978
        %v2267 = vunpack.c.l.b16 %v1979
        %v2268 = vunpack.c.l.b16 %v1980
        %v2269 = vunpack.c.l.b16 %v1981
        %v2270 = vunpack.c.l.b16 %v1982
        %v2271 = vunpack.c.l.b16 %v1983
        %v2272 = vunpack.c.l.b16 %v1984
        %v2273 = vunpack.c.l.b16 %v1985
        %v2274 = vunpack.c.l.b16 %v1986
        %v2275 = vunpack.c.l.b16 %v1987
        %v2276 = vunpack.c.l.b16 %v1988
        %v2277 = vunpack.c.l.b16 %v1989
        %v2278 = vunpack.c.l.b16 %v1990
        %v2279 = vunpack.c.l.b16 %v1991
        %v2280 = vunpack.c.l.b16 %v1992
        %v2281 = vunpack.c.l.b16 %v1993
        %v2282 = vunpack.c.l.b16 %v1994
        %v2283 = vunpack.c.l.b16 %v1995
        %v2284 = vunpack.c.l.b16 %v1996
        %v2285 = vunpack.c.l.b16 %v1997
        %v2286 = vunpack.c.l.b16 %v1998
        %v2287 = vunpack.c.l.b16 %v1999
        %v2288 = vunpack.c.l.b16 %v2000
        %v2289 = vunpack.c.l.b16 %v2001
        %v2290 = vunpack.c.l.b16 %v2002
        %v2291 = vunpack.c.l.b16 %v2003
        %v2292 = vunpack.c.l.b16 %v2004
        %v2293 = vunpack.c.l.b16 %v2005
        %v2294 = vunpack.c.l.b16 %v2006
        %v2295 = vunpack.c.l.b16 %v2007
        %v2296 = vunpack.c.l.b16 %v2008
        %v2297 = vunpack.c.l.b16 %v2009
        %v2298 = vunpack.c.l.b16 %v2010
        %v2299 = vunpack.c.l.b16 %v2011
        %v2300 = vunpack.c.l.b16 %v2012
        %v2301 = vunpack.c.l.b16 %v2013
        %v2302 = vunpack.c.l.b16 %v2014
        %v2303 = vunpack.c.l.b16 %v2015
        %v2304 = vunpack.c.l.b16 %v2016
        %v2305 = vunpack.c.l.b16 %v2017
        %v2306 = vunpack.c.l.b16 %v2018
        %v2307 = vunpack.c.l.b16 %v2019
        %v2308 = vunpack.c.l.b16 %v2020
        %v2309 = vunpack.c.l.b16 %v2021
        %v2310 = vpack.c.b16 %v2167, %v2166
        %v2311 = vpack.c.b16 %v2169, %v2168
        %v2312 = vpack.c.b16 %v2171, %v2170
        %v2313 = vpack.c.b16 %v2173, %v2172
        %v2314 = vpack.c.b16 %v2175, %v2174
        %v2315 = vpack.c.b16 %v2177, %v2176
        %v2316 = vpack.c.b16 %v2179, %v2178
        %v2317 = vpack.c.b16 %v2181, %v2180
        %v2318 = vpack.c.b16 %v2183, %v2182
        %v2319 = vpack.c.b16 %v2185, %v2184
        %v2320 = vpack.c.b16 %v2187, %v2186
        %v2321 = vpack.c.b16 %v2189, %v2188
        %v2322 = vpack.c.b16 %v2191, %v2190
        %v2323 = vpack.c.b16 %v2193, %v2192
        %v2324 = vpack.c.b16 %v2195, %v2194
        %v2325 = vpack.c.b16 %v2197, %v2196
        %v2326 = vpack.c.b16 %v2199, %v2198
        %v2327 = vpack.c.b16 %v2201, %v2200
        %v2328 = vpack.c.b16 %v2203, %v2202
        %v2329 = vpack.c.b16 %v2205, %v2204
        %v2330 = vpack.c.b16 %v2207, %v2206
        %v2331 = vpack.c.b16 %v2209, %v2208
        %v2332 = vpack.c.b16 %v2211, %v2210
        %v2333 = vpack.c.b16 %v2213, %v2212
        %v2334 = vpack.c.b16 %v2215, %v2214
        %v2335 = vpack.c.b16 %v2217, %v2216
        %v2336 = vpack.c.b16 %v2219, %v2218
        %v2337 = vpack.c.b16 %v2221, %v2220
        %v2338 = vpack.c.b16 %v2223, %v2222
        %v2339 = vpack.c.b16 %v2225, %v2224
        %v2340 = vpack.c.b16 %v2227, %v2226
        %v2341 = vpack.c.b16 %v2229, %v2228
        %v2342 = vpack.c.b16 %v2231, %v2230
        %v2343 = vpack.c.b16 %v2233, %v2232
        %v2344 = vpack.c.b16 %v2235, %v2234
        %v2345 = vpack.c.b16 %v2237, %v2236
        %v2346 = vpack.c.b16 %v2239, %v2238
        %v2347 = vpack.c.b16 %v2241, %v2240
        %v2348 = vpack.c.b16 %v2243, %v2242
        %v2349 = vpack.c.b16 %v2245, %v2244
        %v2350 = vpack.c.b16 %v2247, %v2246
        %v2351 = vpack.c.b16 %v2249, %v2248
        %v2352 = vpack.c.b16 %v2251, %v2250
        %v2353 = vpack.c.b16 %v2253, %v2252
        %v2354 = vpack.c.b16 %v2255, %v2254
        %v2355 = vpack.c.b16 %v2257, %v2256
        %v2356 = vpack.c.b16 %v2259, %v2258
        %v2357 = vpack.c.b16 %v2261, %v2260
        %v2358 = vpack.c.b16 %v2263, %v2262
        %v2359 = vpack.c.b16 %v2265, %v2264
        %v2360 = vpack.c.b16 %v2267, %v2266
        %v2361 = vpack.c.b16 %v2269, %v2268
        %v2362 = vpack.c.b16 %v2271, %v2270
        %v2363 = vpack.c.b16 %v2273, %v2272
        %v2364 = vpack.c.b16 %v2275, %v2274
        %v2365 = vpack.c.b16 %v2277, %v2276
        %v2366 = vpack.c.b16 %v2279, %v2278
        %v2367 = vpack.c.b16 %v2281, %v2280
        %v2368 = vpack.c.b16 %v2283, %v2282
        %v2369 = vpack.c.b16 %v2285, %v2284
        %v2370 = vpack.c.b16 %v2287, %v2286
        %v2371 = vpack.c.b16 %v2289, %v2288
        %v2372 = vpack.c.b16 %v2291, %v2290
        %v2373 = vpack.c.b16 %v2293, %v2292
        %v2374 = vpack.c.b16 %v2295, %v2294
        %v2375 = vpack.c.b16 %v2297, %v2296
        %v2376 = vpack.c.b16 %v2299, %v2298
        %v2377 = vpack.c.b16 %v2301, %v2300
        %v2378 = vpack.c.b16 %v2303, %v2302
        %v2379 = vpack.c.b16 %v2305, %v2304
        %v2380 = vpack.c.b16 %v2307, %v2306
        %v2381 = vpack.c.b16 %v2309, %v2308
        %2454 = vmatprep.subr.bf16.mxu0 0
        %2455 = vmatpush1.bf16.msra.mxu0 %v2310
        %2456 = vmatprep.subr.bf16.mxu0 0
        %2457 = vmatpush1.bf16.msra.mxu0 %v2311
        %2458 = vmatprep.subr.bf16.mxu0 0
        %2459 = vmatpush1.bf16.msra.mxu0 %v2312
        %2460 = vmatprep.subr.bf16.mxu0 0
        %2461 = vmatpush1.bf16.msra.mxu0 %v2313
        %2462 = vmatprep.subr.bf16.mxu0 0
        %2463 = vmatpush1.bf16.msra.mxu0 %v2314
        %2464 = vmatprep.subr.bf16.mxu0 0
        %2465 = vmatpush1.bf16.msra.mxu0 %v2315
        %2466 = vmatprep.subr.bf16.mxu0 0
        %2467 = vmatpush1.bf16.msra.mxu0 %v2316
        %2468 = vmatprep.subr.bf16.mxu0 0
        %2469 = vmatpush1.bf16.msra.mxu0 %v2317
        %2470 = vmatprep.subr.bf16.mxu0 0
        %2471 = vmatpush1.bf16.msra.mxu0 %v2318
        %2472 = vmatprep.subr.bf16.mxu0 0
        %2473 = vmatpush1.bf16.msra.mxu0 %v2319
        %2474 = vmatprep.subr.bf16.mxu0 0
        %2475 = vmatpush1.bf16.msra.mxu0 %v2320
        %2476 = vmatprep.subr.bf16.mxu0 0
        %2477 = vmatpush1.bf16.msra.mxu0 %v2321
        %2478 = vmatprep.subr.bf16.mxu0 0
        %2479 = vmatpush1.bf16.msra.mxu0 %v2322
        %2480 = vmatprep.subr.bf16.mxu0 0
        %2481 = vmatpush1.bf16.msra.mxu0 %v2323
        %2482 = vmatprep.subr.bf16.mxu0 0
        %2483 = vmatpush1.bf16.msra.mxu0 %v2324
        %2484 = vmatprep.subr.bf16.mxu0 0
        %2485 = vmatpush1.bf16.msra.mxu0 %v2325
        %2486 = vmatprep.mubr.bf16.mxu0 %v1843
        %2487 = vmatmul.mubr.bf16.gmra.mrb[0].mxu0 %v1842
        %v2488 = vpop.f32.mrb[0].mxu0
        %v2489 = vadd.f32 0.0, %v2488
        %v2490 = vpop.f32.mrb[0].mxu0
        %v2491 = vpop.f32.mrb[0].mxu0
        %v2492 = vadd.f32 0.0, %v2491
        %v2493 = vpop.f32.mrb[0].mxu0
        %2494 = vmatprep.mubr.bf16.mxu0 %v1852
        %2495 = vmatmul.mubr.bf16.gmra.mrb[0].mxu0 %v1851
        %v2496 = vpop.f32.mrb[0].mxu0
        %v2497 = vadd.f32 0.0, %v2496
        %v2498 = vpop.f32.mrb[0].mxu0
        %v2499 = vpop.f32.mrb[0].mxu0
        %v2500 = vadd.f32 0.0, %v2499
        %v2501 = vpop.f32.mrb[0].mxu0
        %2502 = vmatprep.mubr.bf16.mxu0 %v1861
        %2503 = vmatmul.mubr.bf16.gmra.mrb[0].mxu0 %v1860
        %v2504 = vpop.f32.mrb[0].mxu0
        %v2505 = vadd.f32 0.0, %v2504
        %v2506 = vpop.f32.mrb[0].mxu0
        %v2507 = vpop.f32.mrb[0].mxu0
        %v2508 = vadd.f32 0.0, %v2507
        %v2509 = vpop.f32.mrb[0].mxu0
        %2510 = vmatprep.mubr.bf16.mxu0 %v1870
        %2511 = vmatmul.mubr.bf16.gmra.mrb[0].mxu0 %v1869
        %v2512 = vpop.f32.mrb[0].mxu0
        %v2513 = vadd.f32 0.0, %v2512
        %v2514 = vpop.f32.mrb[0].mxu0
        %v2515 = vpop.f32.mrb[0].mxu0
        %v2516 = vadd.f32 0.0, %v2515
        %v2517 = vpop.f32.mrb[0].mxu0
        %2518 = vdwg.mxu0
        %2519 = vmatprep.subr.bf16.mxu0 0
        %2520 = vmatpush1.bf16.msra.mxu0 %v2326
        %2521 = vmatprep.subr.bf16.mxu0 0
        %2522 = vmatpush1.bf16.msra.mxu0 %v2327
        %2523 = vmatprep.subr.bf16.mxu0 0
        %2524 = vmatpush1.bf16.msra.mxu0 %v2328
        %2525 = vmatprep.subr.bf16.mxu0 0
        %2526 = vmatpush1.bf16.msra.mxu0 %v2329
        %2527 = vmatprep.subr.bf16.mxu0 0
        %2528 = vmatpush1.bf16.msra.mxu0 %v2330
        %2529 = vmatprep.subr.bf16.mxu0 0
        %2530 = vmatpush1.bf16.msra.mxu0 %v2331
        %2531 = vmatprep.subr.bf16.mxu0 0
        %2532 = vmatpush1.bf16.msra.mxu0 %v2332
        %2533 = vmatprep.subr.bf16.mxu0 0
        %2534 = vmatpush1.bf16.msra.mxu0 %v2333
        %2535 = vmatprep.subr.bf16.mxu0 0
        %2536 = vmatpush1.bf16.msra.mxu0 %v2334
        %2537 = vmatprep.subr.bf16.mxu0 0
        %2538 = vmatpush1.bf16.msra.mxu0 %v2335
        %2539 = vmatprep.subr.bf16.mxu0 0
        %2540 = vmatpush1.bf16.msra.mxu0 %v2336
        %2541 = vmatprep.subr.bf16.mxu0 0
        %2542 = vmatpush1.bf16.msra.mxu0 %v2337
        %2543 = vmatprep.subr.bf16.mxu0 0
        %2544 = vmatpush1.bf16.msra.mxu0 %v2338
        %2545 = vmatprep.subr.bf16.mxu0 0
        %2546 = vmatpush1.bf16.msra.mxu0 %v2339
        %2547 = vmatprep.subr.bf16.mxu0 0
        %2548 = vmatpush1.bf16.msra.mxu0 %v2340
        %2549 = vmatprep.subr.bf16.mxu0 0
        %2550 = vmatpush1.bf16.msra.mxu0 %v2341
        %2551 = vmatprep.mubr.bf16.mxu0 %v1845
        %2552 = vmatmul.mubr.bf16.gmra.mrb[0].mxu0 %v1844
        %v2553 = vpop.f32.mrb[0].mxu0
        %v2554 = vadd.f32 %v2489, %v2553
        %v2555 = vpop.f32.mrb[0].mxu0
        %v2556 = vpop.f32.mrb[0].mxu0
        %v2557 = vadd.f32 %v2492, %v2556
        %v2558 = vpop.f32.mrb[0].mxu0
        %2559 = vmatprep.mubr.bf16.mxu0 %v1854
        %2560 = vmatmul.mubr.bf16.gmra.mrb[0].mxu0 %v1853
        %v2561 = vpop.f32.mrb[0].mxu0
        %v2562 = vadd.f32 %v2497, %v2561
        %v2563 = vpop.f32.mrb[0].mxu0
        %v2564 = vpop.f32.mrb[0].mxu0
        %v2565 = vadd.f32 %v2500, %v2564
        %v2566 = vpop.f32.mrb[0].mxu0
        %2567 = vmatprep.mubr.bf16.mxu0 %v1863
        %2568 = vmatmul.mubr.bf16.gmra.mrb[0].mxu0 %v1862
        %v2569 = vpop.f32.mrb[0].mxu0
        %v2570 = vadd.f32 %v2505, %v2569
        %v2571 = vpop.f32.mrb[0].mxu0
        %v2572 = vpop.f32.mrb[0].mxu0
        %v2573 = vadd.f32 %v2508, %v2572
        %v2574 = vpop.f32.mrb[0].mxu0
        %2575 = vmatprep.mubr.bf16.mxu0 %v1872
        %2576 = vmatmul.mubr.bf16.gmra.mrb[0].mxu0 %v1871
        %v2577 = vpop.f32.mrb[0].mxu0
        %v2578 = vadd.f32 %v2513, %v2577
        %v2579 = vpop.f32.mrb[0].mxu0
        %v2580 = vpop.f32.mrb[0].mxu0
        %v2581 = vadd.f32 %v2516, %v2580
        %v2582 = vpop.f32.mrb[0].mxu0
        %2583 = vdwg.mxu0
        %2584 = vmatprep.subr.bf16.mxu0 0
        %2585 = vmatpush1.bf16.msra.mxu0 %v2342
        %2586 = vmatprep.subr.bf16.mxu0 0
        %2587 = vmatpush1.bf16.msra.mxu0 %v2343
        %2588 = vmatprep.subr.bf16.mxu0 0
        %2589 = vmatpush1.bf16.msra.mxu0 %v2344
        %2590 = vmatprep.subr.bf16.mxu0 0
        %2591 = vmatpush1.bf16.msra.mxu0 %v2345
        %2592 = vmatprep.subr.bf16.mxu0 0
        %2593 = vmatpush1.bf16.msra.mxu0 %v2346
        %2594 = vmatprep.subr.bf16.mxu0 0
        %2595 = vmatpush1.bf16.msra.mxu0 %v2347
        %2596 = vmatprep.subr.bf16.mxu0 0
        %2597 = vmatpush1.bf16.msra.mxu0 %v2348
        %2598 = vmatprep.subr.bf16.mxu0 0
        %2599 = vmatpush1.bf16.msra.mxu0 %v2349
        %2600 = vmatprep.subr.bf16.mxu0 0
        %2601 = vmatpush1.bf16.msra.mxu0 %v2350
        %2602 = vmatprep.subr.bf16.mxu0 0
        %2603 = vmatpush1.bf16.msra.mxu0 %v2351
        %2604 = vmatprep.subr.bf16.mxu0 0
        %2605 = vmatpush1.bf16.msra.mxu0 %v2352
        %2606 = vmatprep.subr.bf16.mxu0 0
        %2607 = vmatpush1.bf16.msra.mxu0 %v2353
        %2608 = vmatprep.subr.bf16.mxu0 0
        %2609 = vmatpush1.bf16.msra.mxu0 %v2354
        %2610 = vmatprep.subr.bf16.mxu0 0
        %2611 = vmatpush1.bf16.msra.mxu0 %v2355
        %2612 = vmatprep.subr.bf16.mxu0 0
        %2613 = vmatpush1.bf16.msra.mxu0 %v2356
        %2614 = vmatprep.subr.bf16.mxu0 0
        %2615 = vmatpush1.bf16.msra.mxu0 %v2357
        %2616 = vmatprep.mubr.bf16.mxu0 %v1847
        %2617 = vmatmul.mubr.bf16.gmra.mrb[0].mxu0 %v1846
        %v2618 = vpop.f32.mrb[0].mxu0
        %v2619 = vadd.f32 %v2554, %v2618
        %v2620 = vpop.f32.mrb[0].mxu0
        %v2621 = vpop.f32.mrb[0].mxu0
        %v2622 = vadd.f32 %v2557, %v2621
        %v2623 = vpop.f32.mrb[0].mxu0
        %2624 = vmatprep.mubr.bf16.mxu0 %v1856
        %2625 = vmatmul.mubr.bf16.gmra.mrb[0].mxu0 %v1855
        %v2626 = vpop.f32.mrb[0].mxu0
        %v2627 = vadd.f32 %v2562, %v2626
        %v2628 = vpop.f32.mrb[0].mxu0
        %v2629 = vpop.f32.mrb[0].mxu0
        %v2630 = vadd.f32 %v2565, %v2629
        %v2631 = vpop.f32.mrb[0].mxu0
        %2632 = vmatprep.mubr.bf16.mxu0 %v1865
        %2633 = vmatmul.mubr.bf16.gmra.mrb[0].mxu0 %v1864
        %v2634 = vpop.f32.mrb[0].mxu0
        %v2635 = vadd.f32 %v2570, %v2634
        %v2636 = vpop.f32.mrb[0].mxu0
        %v2637 = vpop.f32.mrb[0].mxu0
        %v2638 = vadd.f32 %v2573, %v2637
        %v2639 = vpop.f32.mrb[0].mxu0
        %2640 = vmatprep.mubr.bf16.mxu0 %v1874
        %2641 = vmatmul.mubr.bf16.gmra.mrb[0].mxu0 %v1873
        %v2642 = vpop.f32.mrb[0].mxu0
        %v2643 = vadd.f32 %v2578, %v2642
        %v2644 = vpop.f32.mrb[0].mxu0
        %v2645 = vpop.f32.mrb[0].mxu0
        %v2646 = vadd.f32 %v2581, %v2645
        %v2647 = vpop.f32.mrb[0].mxu0
        %2648 = vdwg.mxu0
        %2649 = vmatprep.subr.bf16.mxu0 0
        %2650 = vmatpush1.bf16.msra.mxu0 %v2358
        %2651 = vmatprep.subr.bf16.mxu0 0
        %2652 = vmatpush1.bf16.msra.mxu0 %v2359
        %2653 = vmatprep.subr.bf16.mxu0 0
        %2654 = vmatpush1.bf16.msra.mxu0 %v2360
        %2655 = vmatprep.subr.bf16.mxu0 0
        %2656 = vmatpush1.bf16.msra.mxu0 %v2361
        %2657 = vmatprep.subr.bf16.mxu0 0
        %2658 = vmatpush1.bf16.msra.mxu0 %v2362
        %2659 = vmatprep.subr.bf16.mxu0 0
        %2660 = vmatpush1.bf16.msra.mxu0 %v2363
        %2661 = vmatprep.subr.bf16.mxu0 0
        %2662 = vmatpush1.bf16.msra.mxu0 %v2364
        %2663 = vmatprep.subr.bf16.mxu0 0
        %2664 = vmatpush1.bf16.msra.mxu0 %v2365
        %2665 = vmatprep.subr.bf16.mxu0 0
        %2666 = vmatpush1.bf16.msra.mxu0 %v2366
        %2667 = vmatprep.subr.bf16.mxu0 0
        %2668 = vmatpush1.bf16.msra.mxu0 %v2367
        %2669 = vmatprep.subr.bf16.mxu0 0
        %2670 = vmatpush1.bf16.msra.mxu0 %v2368
        %2671 = vmatprep.subr.bf16.mxu0 0
        %2672 = vmatpush1.bf16.msra.mxu0 %v2369
        %2673 = vmatprep.subr.bf16.mxu0 0
        %2674 = vmatpush1.bf16.msra.mxu0 %v2370
        %2675 = vmatprep.subr.bf16.mxu0 0
        %2676 = vmatpush1.bf16.msra.mxu0 %v2371
        %2677 = vmatprep.subr.bf16.mxu0 0
        %2678 = vmatpush1.bf16.msra.mxu0 %v2372
        %2679 = vmatprep.subr.bf16.mxu0 0
        %2680 = vmatpush1.bf16.msra.mxu0 %v2373
        %2681 = vmatprep.mubr.bf16.mxu0 %v1849
        %2682 = vmatmul.mubr.bf16.gmra.mrb[0].mxu0 %v1848
        %v2683 = vpop.f32.mrb[0].mxu0
        %v2684 = vadd.f32 %v2619, %v2683
        %v2685 = vpop.f32.mrb[0].mxu0
        %v2686 = vpop.f32.mrb[0].mxu0
        %v2687 = vadd.f32 %v2622, %v2686
        %v2688 = vpop.f32.mrb[0].mxu0
        %2689 = vmatprep.mubr.bf16.mxu0 %v1858
        %2690 = vmatmul.mubr.bf16.gmra.mrb[0].mxu0 %v1857
        %v2691 = vpop.f32.mrb[0].mxu0
        %v2692 = vadd.f32 %v2627, %v2691
        %v2693 = vpop.f32.mrb[0].mxu0
        %v2694 = vpop.f32.mrb[0].mxu0
        %v2695 = vadd.f32 %v2630, %v2694
        %v2696 = vpop.f32.mrb[0].mxu0
        %2697 = vmatprep.mubr.bf16.mxu0 %v1867
        %2698 = vmatmul.mubr.bf16.gmra.mrb[0].mxu0 %v1866
        %v2699 = vpop.f32.mrb[0].mxu0
        %v2700 = vadd.f32 %v2635, %v2699
        %v2701 = vpop.f32.mrb[0].mxu0
        %v2702 = vpop.f32.mrb[0].mxu0
        %v2703 = vadd.f32 %v2638, %v2702
        %v2704 = vpop.f32.mrb[0].mxu0
        %2705 = vmatprep.mubr.bf16.mxu0 %v1876
        %2706 = vmatmul.mubr.bf16.gmra.mrb[0].mxu0 %v1875
        %v2707 = vpop.f32.mrb[0].mxu0
        %v2708 = vadd.f32 %v2643, %v2707
        %v2709 = vpop.f32.mrb[0].mxu0
        %v2710 = vpop.f32.mrb[0].mxu0
        %v2711 = vadd.f32 %v2646, %v2710
        %v2712 = vpop.f32.mrb[0].mxu0
        %2713 = vdwg.mxu0
        %2714 = vmatprep.subr.bf16.mxu0 0
        %2715 = vmatpush1.bf16.msra.mxu0 %v2374
        %2716 = vmatprep.subr.bf16.mxu0 0
        %2717 = vmatpush1.bf16.msra.mxu0 %v2375
        %2718 = vmatprep.subr.bf16.mxu0 0
        %2719 = vmatpush1.bf16.msra.mxu0 %v2376
        %2720 = vmatprep.subr.bf16.mxu0 0
        %2721 = vmatpush1.bf16.msra.mxu0 %v2377
        %2722 = vmatprep.subr.bf16.mxu0 0
        %2723 = vmatpush1.bf16.msra.mxu0 %v2378
        %2724 = vmatprep.subr.bf16.mxu0 0
        %2725 = vmatpush1.bf16.msra.mxu0 %v2379
        %2726 = vmatprep.subr.bf16.mxu0 0
        %2727 = vmatpush1.bf16.msra.mxu0 %v2380
        %2728 = vmatprep.subr.bf16.mxu0 0
        %2729 = vmatpush1.bf16.msra.mxu0 %v2381
        %2730 = vmatprep.subr.bf16.mxu0 0
        %2731 = vmatpush1.bf16.msra.mxu0 0
        %2732 = vmatprep.subr.bf16.mxu0 0
        %2733 = vmatpush1.bf16.msra.mxu0 0
        %2734 = vmatprep.subr.bf16.mxu0 0
        %2735 = vmatpush1.bf16.msra.mxu0 0
        %2736 = vmatprep.subr.bf16.mxu0 0
        %2737 = vmatpush1.bf16.msra.mxu0 0
        %2738 = vmatprep.subr.bf16.mxu0 0
        %2739 = vmatpush1.bf16.msra.mxu0 0
        %2740 = vmatprep.subr.bf16.mxu0 0
        %2741 = vmatpush1.bf16.msra.mxu0 0
        %2742 = vmatprep.subr.bf16.mxu0 0
        %2743 = vmatpush1.bf16.msra.mxu0 0
        %2744 = vmatprep.subr.bf16.mxu0 0
        %2745 = vmatpush1.bf16.msra.mxu0 0
        %2746 = vmatprep.mubr.bf16.mxu0 0
        %2747 = vmatmul.mubr.bf16.gmra.mrb[0].mxu0 %v1850
        %v2748 = vpop.f32.mrb[0].mxu0
        %v2749 = vadd.f32 %v2684, %v2748
        %v2750 = vpop.f32.mrb[0].mxu0
        %v2751 = vpop.f32.mrb[0].mxu0
        %v2752 = vadd.f32 %v2687, %v2751
        %v2753 = vpop.f32.mrb[0].mxu0
        %2754 = vmatprep.mubr.bf16.mxu0 0
        %2755 = vmatmul.mubr.bf16.gmra.mrb[0].mxu0 %v1859
        %v2756 = vpop.f32.mrb[0].mxu0
        %v2757 = vadd.f32 %v2692, %v2756
        %v2758 = vpop.f32.mrb[0].mxu0
        %v2759 = vpop.f32.mrb[0].mxu0
        %v2760 = vadd.f32 %v2695, %v2759
        %v2761 = vpop.f32.mrb[0].mxu0
        %2762 = vmatprep.mubr.bf16.mxu0 0
        %2763 = vmatmul.mubr.bf16.gmra.mrb[0].mxu0 %v1868
        %v2764 = vpop.f32.mrb[0].mxu0
        %v2765 = vadd.f32 %v2700, %v2764
        %v2766 = vpop.f32.mrb[0].mxu0
        %v2767 = vpop.f32.mrb[0].mxu0
        %v2768 = vadd.f32 %v2703, %v2767
        %v2769 = vpop.f32.mrb[0].mxu0
        %2770 = vmatprep.mubr.bf16.mxu0 0
        %2771 = vmatmul.mubr.bf16.gmra.mrb[0].mxu0 %v1877
        %v2772 = vpop.f32.mrb[0].mxu0
        %v2773 = vadd.f32 %v2708, %v2772
        %v2774 = vpop.f32.mrb[0].mxu0
        %v2775 = vpop.f32.mrb[0].mxu0
        %v2776 = vadd.f32 %v2711, %v2775
        %v2777 = vpop.f32.mrb[0].mxu0
        %2778 = vdwg.mxu0
        %v2779 = vld [vmem:[%s5] sm:$0x1]
        %v2781 = vlaneseq
        %v2782 = vshrl.u32 %v2781, 7
        %v2783 = vsub.s32 0, %v2782
        %v2784 = vrot.slane %v2779, %v2783
        %v2786 = vmul.f32 %v2749, %v2784
        %v2787 = vmul.f32 %v2752, %v2784
        %v2788 = vmul.f32 %v2757, %v2784
        %v2789 = vmul.f32 %v2760, %v2784
        %v2790 = vmul.f32 %v2765, %v2784
        %v2791 = vmul.f32 %v2768, %v2784
        %v2792 = vmul.f32 %v2773, %v2784
        %v2793 = vmul.f32 %v2776, %v2784
        %v2794 = vld [vmem:[%s6] sm:$0x1]
        %v2796 = vlaneseq
        %v2797 = vshrl.u32 %v2796, 7
        %v2798 = vsub.s32 0, %v2797
        %v2799 = vrot.slane %v2794, %v2798
        %v2801 = vadd.f32 %v2786, %v2799
        %v2802 = vadd.f32 %v2787, %v2799
        %v2803 = vadd.f32 %v2788, %v2799
        %v2804 = vadd.f32 %v2789, %v2799
        %v2805 = vadd.f32 %v2790, %v2799
        %v2806 = vadd.f32 %v2791, %v2799
        %v2807 = vadd.f32 %v2792, %v2799
        %v2808 = vadd.f32 %v2793, %v2799
        %v2809 = vmax.f32 %v2801, 0.0
        %v2810 = vmax.f32 %v2802, 0.0
        %v2811 = vmax.f32 %v2803, 0.0
        %v2812 = vmax.f32 %v2804, 0.0
        %v2813 = vmax.f32 %v2805, 0.0
        %v2814 = vmax.f32 %v2806, 0.0
        %v2815 = vmax.f32 %v2807, 0.0
        %v2816 = vmax.f32 %v2808, 0.0
        %2817 = vst [vmem:[#allocation4] sm:$0xff] 0.0
        %2818 = vst [vmem:[#allocation4 + $0x8] sm:$0x3] 0.0
        %2819 = vst [vmem:[#allocation4 + $0x10] sm:$0xff] 0.0
        %2820 = vst [vmem:[#allocation4 + $0x18] sm:$0x3] 0.0
        %2821 = vst [vmem:[#allocation4 + $0x20] sm:$0xff] 0.0
        %2822 = vst [vmem:[#allocation4 + $0x28] sm:$0x3] 0.0
        %2823 = vst [vmem:[#allocation4 + $0x30] sm:$0xff] 0.0
        %2824 = vst [vmem:[#allocation4 + $0x38] sm:$0x3] 0.0
        %2825 = vst [vmem:[#allocation4 + $0x40] sm:$0xff] 0.0
        %2826 = vst [vmem:[#allocation4 + $0x48] sm:$0x3] 0.0
        %2827 = vst [vmem:[#allocation4 + $0x50] sm:$0xff] 0.0
        %2828 = vst [vmem:[#allocation4 + $0x58] sm:$0x3] 0.0
        %2829 = vst [vmem:[#allocation4 + $0x60] sm:$0xff] 0.0
        %2830 = vst [vmem:[#allocation4 + $0x68] sm:$0x3] 0.0
        %2831 = vst [vmem:[#allocation4 + $0x70] sm:$0xff] 0.0
        %2832 = vst [vmem:[#allocation4 + $0x78] sm:$0x3] 0.0
        %2833 = vst [vmem:[#allocation4 + $0x80] sm:$0xff] 0.0
        %2834 = vst [vmem:[#allocation4 + $0x88] sm:$0x3] 0.0
        %2835 = vst [vmem:[#allocation4 + $0x90] sm:$0xff] 0.0
        %2836 = vst [vmem:[#allocation4 + $0x98] sm:$0x3] 0.0
        %s2837 = scalar_lea.vmem [#allocation4], 16
        %2838 = vst.msk [vmem:[%s2837 + $0x1] sm:$0xff] %vm446, %v2809
        %2839 = vst.msk [vmem:[%s2837 + $0x11] sm:$0xff] %vm446, %v2810
        %2840 = vst.msk [vmem:[%s2837 + $0x21] sm:$0xff] %vm446, %v2811
        %2841 = vst.msk [vmem:[%s2837 + $0x31] sm:$0xff] %vm446, %v2812
        %2842 = vst.msk [vmem:[%s2837 + $0x41] sm:$0xff] %vm446, %v2813
        %2843 = vst.msk [vmem:[%s2837 + $0x51] sm:$0xff] %vm446, %v2814
        %2844 = vst.msk [vmem:[%s2837 + $0x61] sm:$0xff] %vm446, %v2815
        %2845 = vst.msk [vmem:[%s2837 + $0x71] sm:$0xff] %vm446, %v2816
        %v2846 = vld [vmem:[#allocation4] sm:$0xff]
        %v2847 = vld [vmem:[#allocation4 + $0x10] sm:$0xff]
        %v2848 = vld [vmem:[#allocation4 + $0x20] sm:$0xff]
        %v2849 = vld [vmem:[#allocation4 + $0x30] sm:$0xff]
        %v2850 = vld [vmem:[#allocation4 + $0x40] sm:$0xff]
        %v2851 = vld [vmem:[#allocation4 + $0x50] sm:$0xff]
        %v2852 = vld [vmem:[#allocation4 + $0x60] sm:$0xff]
        %v2853 = vld [vmem:[#allocation4 + $0x70] sm:$0xff]
        %v2854 = vpack.c.bf16 %v2847, %v2846
        %v2855 = vpack.c.bf16 %v2849, %v2848
        %v2856 = vpack.c.bf16 %v2851, %v2850
        %v2857 = vpack.c.bf16 %v2853, %v2852
        %2858 = vst [vmem:[#allocation6] sm:$0xff] %v2854
        %2859 = vst [vmem:[#allocation6 + $0x48] sm:$0xff] %v2855
        %2860 = vst [vmem:[#allocation6 + $0x90] sm:$0xff] %v2856
        %2861 = vst [vmem:[#allocation6 + $0xd8] sm:$0xff] %v2857
        %v2862 = vld [vmem:[#allocation4 + $0x1] sm:$0xff]
        %v2863 = vld [vmem:[#allocation4 + $0x11] sm:$0xff]
        %v2864 = vld [vmem:[#allocation4 + $0x21] sm:$0xff]
        %v2865 = vld [vmem:[#allocation4 + $0x31] sm:$0xff]
        %v2866 = vld [vmem:[#allocation4 + $0x41] sm:$0xff]
        %v2867 = vld [vmem:[#allocation4 + $0x51] sm:$0xff]
        %v2868 = vld [vmem:[#allocation4 + $0x61] sm:$0xff]
        %v2869 = vld [vmem:[#allocation4 + $0x71] sm:$0xff]
        %v2870 = vpack.c.bf16 %v2863, %v2862
        %v2871 = vpack.c.bf16 %v2865, %v2864
        %v2872 = vpack.c.bf16 %v2867, %v2866
        %v2873 = vpack.c.bf16 %v2869, %v2868
        %2874 = vst [vmem:[#allocation6 + $0x8] sm:$0xff] %v2870
        %2875 = vst [vmem:[#allocation6 + $0x50] sm:$0xff] %v2871
        %2876 = vst [vmem:[#allocation6 + $0x98] sm:$0xff] %v2872
        %2877 = vst [vmem:[#allocation6 + $0xe0] sm:$0xff] %v2873
        %v2878 = vld [vmem:[#allocation4 + $0x2] sm:$0xff]
        %v2879 = vld [vmem:[#allocation4 + $0x12] sm:$0xff]
        %v2880 = vld [vmem:[#allocation4 + $0x22] sm:$0xff]
        %v2881 = vld [vmem:[#allocation4 + $0x32] sm:$0xff]
        %v2882 = vld [vmem:[#allocation4 + $0x42] sm:$0xff]
        %v2883 = vld [vmem:[#allocation4 + $0x52] sm:$0xff]
        %v2884 = vld [vmem:[#allocation4 + $0x62] sm:$0xff]
        %v2885 = vld [vmem:[#allocation4 + $0x72] sm:$0xff]
        %v2886 = vpack.c.bf16 %v2879, %v2878
        %v2887 = vpack.c.bf16 %v2881, %v2880
        %v2888 = vpack.c.bf16 %v2883, %v2882
        %v2889 = vpack.c.bf16 %v2885, %v2884
        %2890 = vst [vmem:[#allocation6 + $0x10] sm:$0xff] %v2886
        %2891 = vst [vmem:[#allocation6 + $0x58] sm:$0xff] %v2887
        %2892 = vst [vmem:[#allocation6 + $0xa0] sm:$0xff] %v2888
        %2893 = vst [vmem:[#allocation6 + $0xe8] sm:$0xff] %v2889
        %v2894 = vld [vmem:[%s2837] sm:$0xff]
        %v2895 = vld [vmem:[%s2837 + $0x10] sm:$0xff]
        %v2896 = vld [vmem:[%s2837 + $0x20] sm:$0xff]
        %v2897 = vld [vmem:[%s2837 + $0x30] sm:$0xff]
        %v2898 = vld [vmem:[%s2837 + $0x40] sm:$0xff]
        %v2899 = vld [vmem:[%s2837 + $0x50] sm:$0xff]
        %v2900 = vld [vmem:[%s2837 + $0x60] sm:$0xff]
        %v2901 = vld [vmem:[%s2837 + $0x70] sm:$0xff]
        %v2902 = vpack.c.bf16 %v2895, %v2894
        %v2903 = vpack.c.bf16 %v2897, %v2896
        %v2904 = vpack.c.bf16 %v2899, %v2898
        %v2905 = vpack.c.bf16 %v2901, %v2900
        %2906 = vst [vmem:[#allocation6 + $0x18] sm:$0xff] %v2902
        %2907 = vst [vmem:[#allocation6 + $0x60] sm:$0xff] %v2903
        %2908 = vst [vmem:[#allocation6 + $0xa8] sm:$0xff] %v2904
        %2909 = vst [vmem:[#allocation6 + $0xf0] sm:$0xff] %v2905
        %v2910 = vld [vmem:[%s2837 + $0x1] sm:$0xff]
        %v2911 = vld [vmem:[%s2837 + $0x11] sm:$0xff]
        %v2912 = vld [vmem:[%s2837 + $0x21] sm:$0xff]
        %v2913 = vld [vmem:[%s2837 + $0x31] sm:$0xff]
        %v2914 = vld [vmem:[%s2837 + $0x41] sm:$0xff]
        %v2915 = vld [vmem:[%s2837 + $0x51] sm:$0xff]
        %v2916 = vld [vmem:[%s2837 + $0x61] sm:$0xff]
        %v2917 = vld [vmem:[%s2837 + $0x71] sm:$0xff]
        %v2918 = vpack.c.bf16 %v2911, %v2910
        %v2919 = vpack.c.bf16 %v2913, %v2912
        %v2920 = vpack.c.bf16 %v2915, %v2914
        %v2921 = vpack.c.bf16 %v2917, %v2916
        %2922 = vst [vmem:[#allocation6 + $0x20] sm:$0xff] %v2918
        %2923 = vst [vmem:[#allocation6 + $0x68] sm:$0xff] %v2919
        %2924 = vst [vmem:[#allocation6 + $0xb0] sm:$0xff] %v2920
        %2925 = vst [vmem:[#allocation6 + $0xf8] sm:$0xff] %v2921
        %v2926 = vld [vmem:[%s2837 + $0x2] sm:$0xff]
        %v2927 = vld [vmem:[%s2837 + $0x12] sm:$0xff]
        %v2928 = vld [vmem:[%s2837 + $0x22] sm:$0xff]
        %v2929 = vld [vmem:[%s2837 + $0x32] sm:$0xff]
        %v2930 = vld [vmem:[%s2837 + $0x42] sm:$0xff]
        %v2931 = vld [vmem:[%s2837 + $0x52] sm:$0xff]
        %v2932 = vld [vmem:[%s2837 + $0x62] sm:$0xff]
        %v2933 = vld [vmem:[%s2837 + $0x72] sm:$0xff]
        %v2934 = vpack.c.bf16 %v2927, %v2926
        %v2935 = vpack.c.bf16 %v2929, %v2928
        %v2936 = vpack.c.bf16 %v2931, %v2930
        %v2937 = vpack.c.bf16 %v2933, %v2932
        %2938 = vst [vmem:[#allocation6 + $0x28] sm:$0xff] %v2934
        %2939 = vst [vmem:[#allocation6 + $0x70] sm:$0xff] %v2935
        %2940 = vst [vmem:[#allocation6 + $0xb8] sm:$0xff] %v2936
        %2941 = vst [vmem:[#allocation6 + $0x100] sm:$0xff] %v2937
        %s2942 = scalar_lea.vmem [#allocation4], 32
        %v2943 = vld [vmem:[%s2942] sm:$0xff]
        %v2944 = vld [vmem:[%s2942 + $0x10] sm:$0xff]
        %v2945 = vld [vmem:[%s2942 + $0x20] sm:$0xff]
        %v2946 = vld [vmem:[%s2942 + $0x30] sm:$0xff]
        %v2947 = vld [vmem:[%s2942 + $0x40] sm:$0xff]
        %v2948 = vld [vmem:[%s2942 + $0x50] sm:$0xff]
        %v2949 = vld [vmem:[%s2942 + $0x60] sm:$0xff]
        %v2950 = vld [vmem:[%s2942 + $0x70] sm:$0xff]
        %v2951 = vpack.c.bf16 %v2944, %v2943
        %v2952 = vpack.c.bf16 %v2946, %v2945
        %v2953 = vpack.c.bf16 %v2948, %v2947
        %v2954 = vpack.c.bf16 %v2950, %v2949
        %2955 = vst [vmem:[#allocation6 + $0x30] sm:$0xff] %v2951
        %2956 = vst [vmem:[#allocation6 + $0x78] sm:$0xff] %v2952
        %2957 = vst [vmem:[#allocation6 + $0xc0] sm:$0xff] %v2953
        %2958 = vst [vmem:[#allocation6 + $0x108] sm:$0xff] %v2954
        %v2959 = vld [vmem:[%s2942 + $0x1] sm:$0xff]
        %v2960 = vld [vmem:[%s2942 + $0x11] sm:$0xff]
        %v2961 = vld [vmem:[%s2942 + $0x21] sm:$0xff]
        %v2962 = vld [vmem:[%s2942 + $0x31] sm:$0xff]
        %v2963 = vld [vmem:[%s2942 + $0x41] sm:$0xff]
        %v2964 = vld [vmem:[%s2942 + $0x51] sm:$0xff]
        %v2965 = vld [vmem:[%s2942 + $0x61] sm:$0xff]
        %v2966 = vld [vmem:[%s2942 + $0x71] sm:$0xff]
        %v2967 = vpack.c.bf16 %v2960, %v2959
        %v2968 = vpack.c.bf16 %v2962, %v2961
        %v2969 = vpack.c.bf16 %v2964, %v2963
        %v2970 = vpack.c.bf16 %v2966, %v2965
        %2971 = vst [vmem:[#allocation6 + $0x38] sm:$0xff] %v2967
        %2972 = vst [vmem:[#allocation6 + $0x80] sm:$0xff] %v2968
        %2973 = vst [vmem:[#allocation6 + $0xc8] sm:$0xff] %v2969
        %2974 = vst [vmem:[#allocation6 + $0x110] sm:$0xff] %v2970
        %v2975 = vld [vmem:[%s2942 + $0x2] sm:$0xff]
        %v2976 = vld [vmem:[%s2942 + $0x12] sm:$0xff]
        %v2977 = vld [vmem:[%s2942 + $0x22] sm:$0xff]
        %v2978 = vld [vmem:[%s2942 + $0x32] sm:$0xff]
        %v2979 = vld [vmem:[%s2942 + $0x42] sm:$0xff]
        %v2980 = vld [vmem:[%s2942 + $0x52] sm:$0xff]
        %v2981 = vld [vmem:[%s2942 + $0x62] sm:$0xff]
        %v2982 = vld [vmem:[%s2942 + $0x72] sm:$0xff]
        %v2983 = vpack.c.bf16 %v2976, %v2975
        %v2984 = vpack.c.bf16 %v2978, %v2977
        %v2985 = vpack.c.bf16 %v2980, %v2979
        %v2986 = vpack.c.bf16 %v2982, %v2981
        %2987 = vst [vmem:[#allocation6 + $0x40] sm:$0xff] %v2983
        %2988 = vst [vmem:[#allocation6 + $0x88] sm:$0xff] %v2984
        %2989 = vst [vmem:[#allocation6 + $0xd0] sm:$0xff] %v2985
        %2990 = vst [vmem:[#allocation6 + $0x118] sm:$0xff] %v2986
        %v2991 = vld [vmem:[#allocation6] sm:$0xff]
        %v2992 = vld [vmem:[#allocation6 + $0x8] sm:$0xff]
        %v2993 = vld [vmem:[#allocation6 + $0x10] sm:$0xff]
        %v2994 = vld [vmem:[#allocation6 + $0x18] sm:$0xff]
        %v2995 = vld [vmem:[#allocation6 + $0x20] sm:$0xff]
        %v2996 = vld [vmem:[#allocation6 + $0x28] sm:$0xff]
        %v2997 = vld [vmem:[#allocation6 + $0x30] sm:$0xff]
        %v2998 = vld [vmem:[#allocation6 + $0x38] sm:$0xff]
        %v2999 = vld [vmem:[#allocation6 + $0x40] sm:$0xff]
        %v3000 = vld [vmem:[#allocation6 + $0x48] sm:$0xff]
        %v3001 = vld [vmem:[#allocation6 + $0x50] sm:$0xff]
        %v3002 = vld [vmem:[#allocation6 + $0x58] sm:$0xff]
        %v3003 = vld [vmem:[#allocation6 + $0x60] sm:$0xff]
        %v3004 = vld [vmem:[#allocation6 + $0x68] sm:$0xff]
        %v3005 = vld [vmem:[#allocation6 + $0x70] sm:$0xff]
        %v3006 = vld [vmem:[#allocation6 + $0x78] sm:$0xff]
        %v3007 = vld [vmem:[#allocation6 + $0x80] sm:$0xff]
        %v3008 = vld [vmem:[#allocation6 + $0x88] sm:$0xff]
        %v3009 = vld [vmem:[#allocation6 + $0x90] sm:$0xff]
        %v3010 = vld [vmem:[#allocation6 + $0x98] sm:$0xff]
        %v3011 = vld [vmem:[#allocation6 + $0xa0] sm:$0xff]
        %v3012 = vld [vmem:[#allocation6 + $0xa8] sm:$0xff]
        %v3013 = vld [vmem:[#allocation6 + $0xb0] sm:$0xff]
        %v3014 = vld [vmem:[#allocation6 + $0xb8] sm:$0xff]
        %v3015 = vld [vmem:[#allocation6 + $0xc0] sm:$0xff]
        %v3016 = vld [vmem:[#allocation6 + $0xc8] sm:$0xff]
        %v3017 = vld [vmem:[#allocation6 + $0xd0] sm:$0xff]
        %v3018 = vld [vmem:[#allocation6 + $0xd8] sm:$0xff]
        %v3019 = vld [vmem:[#allocation6 + $0xe0] sm:$0xff]
        %v3020 = vld [vmem:[#allocation6 + $0xe8] sm:$0xff]
        %v3021 = vld [vmem:[#allocation6 + $0xf0] sm:$0xff]
        %v3022 = vld [vmem:[#allocation6 + $0xf8] sm:$0xff]
        %v3023 = vld [vmem:[#allocation6 + $0x100] sm:$0xff]
        %v3024 = vld [vmem:[#allocation6 + $0x108] sm:$0xff]
        %v3025 = vld [vmem:[#allocation6 + $0x110] sm:$0xff]
        %v3026 = vld [vmem:[#allocation6 + $0x118] sm:$0xff]
        %v3027 = vld [vmem:[%s7] sm:$0xf]
        %v3028 = vld [vmem:[%s7 + $0x4] sm:$0xf]
        %v3029 = vld [vmem:[%s7 + $0x8] sm:$0xf]
        %v3030 = vld [vmem:[%s7 + $0xc] sm:$0xf]
        %v3031 = vld [vmem:[%s7 + $0x10] sm:$0xf]
        %v3032 = vld [vmem:[%s7 + $0x14] sm:$0xf]
        %v3033 = vld [vmem:[%s7 + $0x18] sm:$0xf]
        %v3034 = vld [vmem:[%s7 + $0x1c] sm:$0xf]
        %v3035 = vld [vmem:[%s7 + $0x20] sm:$0xf]
        %v3036 = vld [vmem:[%s7 + $0x24] sm:$0xf]
        %v3037 = vld [vmem:[%s7 + $0x28] sm:$0xf]
        %v3038 = vld [vmem:[%s7 + $0x2c] sm:$0xf]
        %v3039 = vld [vmem:[%s7 + $0x30] sm:$0xf]
        %v3040 = vld [vmem:[%s7 + $0x34] sm:$0xf]
        %v3041 = vld [vmem:[%s7 + $0x38] sm:$0xf]
        %v3042 = vld [vmem:[%s7 + $0x3c] sm:$0xf]
        %v3043 = vld [vmem:[%s7 + $0x40] sm:$0xf]
        %v3044 = vld [vmem:[%s7 + $0x44] sm:$0xf]
        %v3045 = vld [vmem:[%s7 + $0x48] sm:$0xf]
        %v3046 = vld [vmem:[%s7 + $0x4c] sm:$0xf]
        %v3047 = vld [vmem:[%s7 + $0x50] sm:$0xf]
        %v3048 = vld [vmem:[%s7 + $0x54] sm:$0xf]
        %v3049 = vld [vmem:[%s7 + $0x58] sm:$0xf]
        %v3050 = vld [vmem:[%s7 + $0x5c] sm:$0xf]
        %v3051 = vld [vmem:[%s7 + $0x60] sm:$0xf]
        %v3052 = vld [vmem:[%s7 + $0x64] sm:$0xf]
        %v3053 = vld [vmem:[%s7 + $0x68] sm:$0xf]
        %v3054 = vld [vmem:[%s7 + $0x6c] sm:$0xf]
        %v3055 = vld [vmem:[%s7 + $0x70] sm:$0xf]
        %v3056 = vld [vmem:[%s7 + $0x74] sm:$0xf]
        %v3057 = vld [vmem:[%s7 + $0x78] sm:$0xf]
        %v3058 = vld [vmem:[%s7 + $0x7c] sm:$0xf]
        %v3059 = vld [vmem:[%s7 + $0x80] sm:$0xf]
        %v3060 = vld [vmem:[%s7 + $0x84] sm:$0xf]
        %v3061 = vld [vmem:[%s7 + $0x88] sm:$0xf]
        %v3062 = vld [vmem:[%s7 + $0x8c] sm:$0xf]
        %v3063 = vld [vmem:[%s7 + $0x90] sm:$0xf]
        %v3064 = vld [vmem:[%s7 + $0x94] sm:$0xf]
        %v3065 = vld [vmem:[%s7 + $0x98] sm:$0xf]
        %v3066 = vld [vmem:[%s7 + $0x9c] sm:$0xf]
        %v3067 = vld [vmem:[%s7 + $0xa0] sm:$0xf]
        %v3068 = vld [vmem:[%s7 + $0xa4] sm:$0xf]
        %v3069 = vld [vmem:[%s7 + $0xa8] sm:$0xf]
        %v3070 = vld [vmem:[%s7 + $0xac] sm:$0xf]
        %v3071 = vld [vmem:[%s7 + $0xb0] sm:$0xf]
        %v3072 = vld [vmem:[%s7 + $0xb4] sm:$0xf]
        %v3073 = vld [vmem:[%s7 + $0xb8] sm:$0xf]
        %v3074 = vld [vmem:[%s7 + $0xbc] sm:$0xf]
        %v3075 = vld [vmem:[%s7 + $0xc0] sm:$0xf]
        %v3076 = vld [vmem:[%s7 + $0xc4] sm:$0xf]
        %v3077 = vld [vmem:[%s7 + $0xc8] sm:$0xf]
        %v3078 = vld [vmem:[%s7 + $0xcc] sm:$0xf]
        %v3079 = vld [vmem:[%s7 + $0xd0] sm:$0xf]
        %v3080 = vld [vmem:[%s7 + $0xd4] sm:$0xf]
        %v3081 = vld [vmem:[%s7 + $0xd8] sm:$0xf]
        %v3082 = vld [vmem:[%s7 + $0xdc] sm:$0xf]
        %v3083 = vld [vmem:[%s7 + $0xe0] sm:$0xf]
        %v3084 = vld [vmem:[%s7 + $0xe4] sm:$0xf]
        %v3085 = vld [vmem:[%s7 + $0xe8] sm:$0xf]
        %v3086 = vld [vmem:[%s7 + $0xec] sm:$0xf]
        %v3087 = vld [vmem:[%s7 + $0xf0] sm:$0xf]
        %v3088 = vld [vmem:[%s7 + $0xf4] sm:$0xf]
        %v3089 = vld [vmem:[%s7 + $0xf8] sm:$0xf]
        %v3090 = vld [vmem:[%s7 + $0xfc] sm:$0xf]
        %v3091 = vld [vmem:[%s7 + $0x100] sm:$0xf]
        %v3092 = vld [vmem:[%s7 + $0x104] sm:$0xf]
        %v3093 = vld [vmem:[%s7 + $0x108] sm:$0xf]
        %v3094 = vld [vmem:[%s7 + $0x10c] sm:$0xf]
        %v3095 = vld [vmem:[%s7 + $0x110] sm:$0xf]
        %v3096 = vld [vmem:[%s7 + $0x114] sm:$0xf]
        %v3097 = vld [vmem:[%s7 + $0x118] sm:$0xf]
        %v3098 = vld [vmem:[%s7 + $0x11c] sm:$0xf]
        %v3099 = vld [vmem:[%s7 + $0x120] sm:$0xf]
        %v3100 = vld [vmem:[%s7 + $0x124] sm:$0xf]
        %v3101 = vld [vmem:[%s7 + $0x128] sm:$0xf]
        %v3102 = vld [vmem:[%s7 + $0x12c] sm:$0xf]
        %v3103 = vld [vmem:[%s7 + $0x130] sm:$0xf]
        %v3104 = vld [vmem:[%s7 + $0x134] sm:$0xf]
        %v3105 = vld [vmem:[%s7 + $0x138] sm:$0xf]
        %v3106 = vld [vmem:[%s7 + $0x13c] sm:$0xf]
        %v3107 = vld [vmem:[%s7 + $0x140] sm:$0xf]
        %v3108 = vld [vmem:[%s7 + $0x144] sm:$0xf]
        %v3109 = vld [vmem:[%s7 + $0x148] sm:$0xf]
        %v3110 = vld [vmem:[%s7 + $0x14c] sm:$0xf]
        %v3111 = vld [vmem:[%s7 + $0x150] sm:$0xf]
        %v3112 = vld [vmem:[%s7 + $0x154] sm:$0xf]
        %v3113 = vld [vmem:[%s7 + $0x158] sm:$0xf]
        %v3114 = vld [vmem:[%s7 + $0x15c] sm:$0xf]
        %v3115 = vld [vmem:[%s7 + $0x160] sm:$0xf]
        %v3116 = vld [vmem:[%s7 + $0x164] sm:$0xf]
        %v3117 = vld [vmem:[%s7 + $0x168] sm:$0xf]
        %v3118 = vld [vmem:[%s7 + $0x16c] sm:$0xf]
        %v3119 = vld [vmem:[%s7 + $0x170] sm:$0xf]
        %v3120 = vld [vmem:[%s7 + $0x174] sm:$0xf]
        %v3121 = vld [vmem:[%s7 + $0x178] sm:$0xf]
        %v3122 = vld [vmem:[%s7 + $0x17c] sm:$0xf]
        %v3123 = vld [vmem:[%s7 + $0x180] sm:$0xf]
        %v3124 = vld [vmem:[%s7 + $0x184] sm:$0xf]
        %v3125 = vld [vmem:[%s7 + $0x188] sm:$0xf]
        %v3126 = vld [vmem:[%s7 + $0x18c] sm:$0xf]
        %v3127 = vld [vmem:[%s7 + $0x190] sm:$0xf]
        %v3128 = vld [vmem:[%s7 + $0x194] sm:$0xf]
        %v3129 = vld [vmem:[%s7 + $0x198] sm:$0xf]
        %v3130 = vld [vmem:[%s7 + $0x19c] sm:$0xf]
        %v3131 = vld [vmem:[%s7 + $0x1a0] sm:$0xf]
        %v3132 = vld [vmem:[%s7 + $0x1a4] sm:$0xf]
        %v3133 = vld [vmem:[%s7 + $0x1a8] sm:$0xf]
        %v3134 = vld [vmem:[%s7 + $0x1ac] sm:$0xf]
        %v3135 = vld [vmem:[%s7 + $0x1b0] sm:$0xf]
        %v3136 = vld [vmem:[%s7 + $0x1b4] sm:$0xf]
        %v3137 = vld [vmem:[%s7 + $0x1b8] sm:$0xf]
        %v3138 = vld [vmem:[%s7 + $0x1bc] sm:$0xf]
        %v3139 = vld [vmem:[%s7 + $0x1c0] sm:$0xf]
        %v3140 = vld [vmem:[%s7 + $0x1c4] sm:$0xf]
        %v3141 = vld [vmem:[%s7 + $0x1c8] sm:$0xf]
        %v3142 = vld [vmem:[%s7 + $0x1cc] sm:$0xf]
        %v3143 = vld [vmem:[%s7 + $0x1d0] sm:$0xf]
        %v3144 = vld [vmem:[%s7 + $0x1d4] sm:$0xf]
        %v3145 = vld [vmem:[%s7 + $0x1d8] sm:$0xf]
        %v3146 = vld [vmem:[%s7 + $0x1dc] sm:$0xf]
        %v3147 = vld [vmem:[%s7 + $0x1e0] sm:$0xf]
        %v3148 = vld [vmem:[%s7 + $0x1e4] sm:$0xf]
        %v3149 = vld [vmem:[%s7 + $0x1e8] sm:$0xf]
        %v3150 = vld [vmem:[%s7 + $0x1ec] sm:$0xf]
        %v3151 = vld [vmem:[%s7 + $0x1f0] sm:$0xf]
        %v3152 = vld [vmem:[%s7 + $0x1f4] sm:$0xf]
        %v3153 = vld [vmem:[%s7 + $0x1f8] sm:$0xf]
        %v3154 = vld [vmem:[%s7 + $0x1fc] sm:$0xf]
        %v3155 = vld [vmem:[%s7 + $0x200] sm:$0xf]
        %v3156 = vld [vmem:[%s7 + $0x204] sm:$0xf]
        %v3157 = vld [vmem:[%s7 + $0x208] sm:$0xf]
        %v3158 = vld [vmem:[%s7 + $0x20c] sm:$0xf]
        %v3159 = vld [vmem:[%s7 + $0x210] sm:$0xf]
        %v3160 = vld [vmem:[%s7 + $0x214] sm:$0xf]
        %v3161 = vld [vmem:[%s7 + $0x218] sm:$0xf]
        %v3162 = vld [vmem:[%s7 + $0x21c] sm:$0xf]
        %v3163 = vld [vmem:[%s7 + $0x220] sm:$0xf]
        %v3164 = vld [vmem:[%s7 + $0x224] sm:$0xf]
        %v3165 = vld [vmem:[%s7 + $0x228] sm:$0xf]
        %v3166 = vld [vmem:[%s7 + $0x22c] sm:$0xf]
        %v3167 = vld [vmem:[%s7 + $0x230] sm:$0xf]
        %v3168 = vld [vmem:[%s7 + $0x234] sm:$0xf]
        %v3169 = vld [vmem:[%s7 + $0x238] sm:$0xf]
        %v3170 = vld [vmem:[%s7 + $0x23c] sm:$0xf]
        %v3315 = vunpack.c.l.b16 %v3027
        %v3316 = vunpack.c.l.b16 %v3028
        %v3317 = vunpack.c.l.b16 %v3029
        %v3318 = vunpack.c.l.b16 %v3030
        %v3319 = vunpack.c.l.b16 %v3031
        %v3320 = vunpack.c.l.b16 %v3032
        %v3321 = vunpack.c.l.b16 %v3033
        %v3322 = vunpack.c.l.b16 %v3034
        %v3323 = vunpack.c.l.b16 %v3035
        %v3324 = vunpack.c.l.b16 %v3036
        %v3325 = vunpack.c.l.b16 %v3037
        %v3326 = vunpack.c.l.b16 %v3038
        %v3327 = vunpack.c.l.b16 %v3039
        %v3328 = vunpack.c.l.b16 %v3040
        %v3329 = vunpack.c.l.b16 %v3041
        %v3330 = vunpack.c.l.b16 %v3042
        %v3331 = vunpack.c.l.b16 %v3043
        %v3332 = vunpack.c.l.b16 %v3044
        %v3333 = vunpack.c.l.b16 %v3045
        %v3334 = vunpack.c.l.b16 %v3046
        %v3335 = vunpack.c.l.b16 %v3047
        %v3336 = vunpack.c.l.b16 %v3048
        %v3337 = vunpack.c.l.b16 %v3049
        %v3338 = vunpack.c.l.b16 %v3050
        %v3339 = vunpack.c.l.b16 %v3051
        %v3340 = vunpack.c.l.b16 %v3052
        %v3341 = vunpack.c.l.b16 %v3053
        %v3342 = vunpack.c.l.b16 %v3054
        %v3343 = vunpack.c.l.b16 %v3055
        %v3344 = vunpack.c.l.b16 %v3056
        %v3345 = vunpack.c.l.b16 %v3057
        %v3346 = vunpack.c.l.b16 %v3058
        %v3347 = vunpack.c.l.b16 %v3059
        %v3348 = vunpack.c.l.b16 %v3060
        %v3349 = vunpack.c.l.b16 %v3061
        %v3350 = vunpack.c.l.b16 %v3062
        %v3351 = vunpack.c.l.b16 %v3063
        %v3352 = vunpack.c.l.b16 %v3064
        %v3353 = vunpack.c.l.b16 %v3065
        %v3354 = vunpack.c.l.b16 %v3066
        %v3355 = vunpack.c.l.b16 %v3067
        %v3356 = vunpack.c.l.b16 %v3068
        %v3357 = vunpack.c.l.b16 %v3069
        %v3358 = vunpack.c.l.b16 %v3070
        %v3359 = vunpack.c.l.b16 %v3071
        %v3360 = vunpack.c.l.b16 %v3072
        %v3361 = vunpack.c.l.b16 %v3073
        %v3362 = vunpack.c.l.b16 %v3074
        %v3363 = vunpack.c.l.b16 %v3075
        %v3364 = vunpack.c.l.b16 %v3076
        %v3365 = vunpack.c.l.b16 %v3077
        %v3366 = vunpack.c.l.b16 %v3078
        %v3367 = vunpack.c.l.b16 %v3079
        %v3368 = vunpack.c.l.b16 %v3080
        %v3369 = vunpack.c.l.b16 %v3081
        %v3370 = vunpack.c.l.b16 %v3082
        %v3371 = vunpack.c.l.b16 %v3083
        %v3372 = vunpack.c.l.b16 %v3084
        %v3373 = vunpack.c.l.b16 %v3085
        %v3374 = vunpack.c.l.b16 %v3086
        %v3375 = vunpack.c.l.b16 %v3087
        %v3376 = vunpack.c.l.b16 %v3088
        %v3377 = vunpack.c.l.b16 %v3089
        %v3378 = vunpack.c.l.b16 %v3090
        %v3379 = vunpack.c.l.b16 %v3091
        %v3380 = vunpack.c.l.b16 %v3092
        %v3381 = vunpack.c.l.b16 %v3093
        %v3382 = vunpack.c.l.b16 %v3094
        %v3383 = vunpack.c.l.b16 %v3095
        %v3384 = vunpack.c.l.b16 %v3096
        %v3385 = vunpack.c.l.b16 %v3097
        %v3386 = vunpack.c.l.b16 %v3098
        %v3387 = vunpack.c.l.b16 %v3099
        %v3388 = vunpack.c.l.b16 %v3100
        %v3389 = vunpack.c.l.b16 %v3101
        %v3390 = vunpack.c.l.b16 %v3102
        %v3391 = vunpack.c.l.b16 %v3103
        %v3392 = vunpack.c.l.b16 %v3104
        %v3393 = vunpack.c.l.b16 %v3105
        %v3394 = vunpack.c.l.b16 %v3106
        %v3395 = vunpack.c.l.b16 %v3107
        %v3396 = vunpack.c.l.b16 %v3108
        %v3397 = vunpack.c.l.b16 %v3109
        %v3398 = vunpack.c.l.b16 %v3110
        %v3399 = vunpack.c.l.b16 %v3111
        %v3400 = vunpack.c.l.b16 %v3112
        %v3401 = vunpack.c.l.b16 %v3113
        %v3402 = vunpack.c.l.b16 %v3114
        %v3403 = vunpack.c.l.b16 %v3115
        %v3404 = vunpack.c.l.b16 %v3116
        %v3405 = vunpack.c.l.b16 %v3117
        %v3406 = vunpack.c.l.b16 %v3118
        %v3407 = vunpack.c.l.b16 %v3119
        %v3408 = vunpack.c.l.b16 %v3120
        %v3409 = vunpack.c.l.b16 %v3121
        %v3410 = vunpack.c.l.b16 %v3122
        %v3411 = vunpack.c.l.b16 %v3123
        %v3412 = vunpack.c.l.b16 %v3124
        %v3413 = vunpack.c.l.b16 %v3125
        %v3414 = vunpack.c.l.b16 %v3126
        %v3415 = vunpack.c.l.b16 %v3127
        %v3416 = vunpack.c.l.b16 %v3128
        %v3417 = vunpack.c.l.b16 %v3129
        %v3418 = vunpack.c.l.b16 %v3130
        %v3419 = vunpack.c.l.b16 %v3131
        %v3420 = vunpack.c.l.b16 %v3132
        %v3421 = vunpack.c.l.b16 %v3133
        %v3422 = vunpack.c.l.b16 %v3134
        %v3423 = vunpack.c.l.b16 %v3135
        %v3424 = vunpack.c.l.b16 %v3136
        %v3425 = vunpack.c.l.b16 %v3137
        %v3426 = vunpack.c.l.b16 %v3138
        %v3427 = vunpack.c.l.b16 %v3139
        %v3428 = vunpack.c.l.b16 %v3140
        %v3429 = vunpack.c.l.b16 %v3141
        %v3430 = vunpack.c.l.b16 %v3142
        %v3431 = vunpack.c.l.b16 %v3143
        %v3432 = vunpack.c.l.b16 %v3144
        %v3433 = vunpack.c.l.b16 %v3145
        %v3434 = vunpack.c.l.b16 %v3146
        %v3435 = vunpack.c.l.b16 %v3147
        %v3436 = vunpack.c.l.b16 %v3148
        %v3437 = vunpack.c.l.b16 %v3149
        %v3438 = vunpack.c.l.b16 %v3150
        %v3439 = vunpack.c.l.b16 %v3151
        %v3440 = vunpack.c.l.b16 %v3152
        %v3441 = vunpack.c.l.b16 %v3153
        %v3442 = vunpack.c.l.b16 %v3154
        %v3443 = vunpack.c.l.b16 %v3155
        %v3444 = vunpack.c.l.b16 %v3156
        %v3445 = vunpack.c.l.b16 %v3157
        %v3446 = vunpack.c.l.b16 %v3158
        %v3447 = vunpack.c.l.b16 %v3159
        %v3448 = vunpack.c.l.b16 %v3160
        %v3449 = vunpack.c.l.b16 %v3161
        %v3450 = vunpack.c.l.b16 %v3162
        %v3451 = vunpack.c.l.b16 %v3163
        %v3452 = vunpack.c.l.b16 %v3164
        %v3453 = vunpack.c.l.b16 %v3165
        %v3454 = vunpack.c.l.b16 %v3166
        %v3455 = vunpack.c.l.b16 %v3167
        %v3456 = vunpack.c.l.b16 %v3168
        %v3457 = vunpack.c.l.b16 %v3169
        %v3458 = vunpack.c.l.b16 %v3170
        %v3459 = vpack.c.b16 %v3316, %v3315
        %v3460 = vpack.c.b16 %v3318, %v3317
        %v3461 = vpack.c.b16 %v3320, %v3319
        %v3462 = vpack.c.b16 %v3322, %v3321
        %v3463 = vpack.c.b16 %v3324, %v3323
        %v3464 = vpack.c.b16 %v3326, %v3325
        %v3465 = vpack.c.b16 %v3328, %v3327
        %v3466 = vpack.c.b16 %v3330, %v3329
        %v3467 = vpack.c.b16 %v3332, %v3331
        %v3468 = vpack.c.b16 %v3334, %v3333
        %v3469 = vpack.c.b16 %v3336, %v3335
        %v3470 = vpack.c.b16 %v3338, %v3337
        %v3471 = vpack.c.b16 %v3340, %v3339
        %v3472 = vpack.c.b16 %v3342, %v3341
        %v3473 = vpack.c.b16 %v3344, %v3343
        %v3474 = vpack.c.b16 %v3346, %v3345
        %v3475 = vpack.c.b16 %v3348, %v3347
        %v3476 = vpack.c.b16 %v3350, %v3349
        %v3477 = vpack.c.b16 %v3352, %v3351
        %v3478 = vpack.c.b16 %v3354, %v3353
        %v3479 = vpack.c.b16 %v3356, %v3355
        %v3480 = vpack.c.b16 %v3358, %v3357
        %v3481 = vpack.c.b16 %v3360, %v3359
        %v3482 = vpack.c.b16 %v3362, %v3361
        %v3483 = vpack.c.b16 %v3364, %v3363
        %v3484 = vpack.c.b16 %v3366, %v3365
        %v3485 = vpack.c.b16 %v3368, %v3367
        %v3486 = vpack.c.b16 %v3370, %v3369
        %v3487 = vpack.c.b16 %v3372, %v3371
        %v3488 = vpack.c.b16 %v3374, %v3373
        %v3489 = vpack.c.b16 %v3376, %v3375
        %v3490 = vpack.c.b16 %v3378, %v3377
        %v3491 = vpack.c.b16 %v3380, %v3379
        %v3492 = vpack.c.b16 %v3382, %v3381
        %v3493 = vpack.c.b16 %v3384, %v3383
        %v3494 = vpack.c.b16 %v3386, %v3385
        %v3495 = vpack.c.b16 %v3388, %v3387
        %v3496 = vpack.c.b16 %v3390, %v3389
        %v3497 = vpack.c.b16 %v3392, %v3391
        %v3498 = vpack.c.b16 %v3394, %v3393
        %v3499 = vpack.c.b16 %v3396, %v3395
        %v3500 = vpack.c.b16 %v3398, %v3397
        %v3501 = vpack.c.b16 %v3400, %v3399
        %v3502 = vpack.c.b16 %v3402, %v3401
        %v3503 = vpack.c.b16 %v3404, %v3403
        %v3504 = vpack.c.b16 %v3406, %v3405
        %v3505 = vpack.c.b16 %v3408, %v3407
        %v3506 = vpack.c.b16 %v3410, %v3409
        %v3507 = vpack.c.b16 %v3412, %v3411
        %v3508 = vpack.c.b16 %v3414, %v3413
        %v3509 = vpack.c.b16 %v3416, %v3415
        %v3510 = vpack.c.b16 %v3418, %v3417
        %v3511 = vpack.c.b16 %v3420, %v3419
        %v3512 = vpack.c.b16 %v3422, %v3421
        %v3513 = vpack.c.b16 %v3424, %v3423
        %v3514 = vpack.c.b16 %v3426, %v3425
        %v3515 = vpack.c.b16 %v3428, %v3427
        %v3516 = vpack.c.b16 %v3430, %v3429
        %v3517 = vpack.c.b16 %v3432, %v3431
        %v3518 = vpack.c.b16 %v3434, %v3433
        %v3519 = vpack.c.b16 %v3436, %v3435
        %v3520 = vpack.c.b16 %v3438, %v3437
        %v3521 = vpack.c.b16 %v3440, %v3439
        %v3522 = vpack.c.b16 %v3442, %v3441
        %v3523 = vpack.c.b16 %v3444, %v3443
        %v3524 = vpack.c.b16 %v3446, %v3445
        %v3525 = vpack.c.b16 %v3448, %v3447
        %v3526 = vpack.c.b16 %v3450, %v3449
        %v3527 = vpack.c.b16 %v3452, %v3451
        %v3528 = vpack.c.b16 %v3454, %v3453
        %v3529 = vpack.c.b16 %v3456, %v3455
        %v3530 = vpack.c.b16 %v3458, %v3457
        %3603 = vmatprep.subr.bf16.mxu0 0
        %3604 = vmatpush1.bf16.msra.mxu0 %v3459
        %3605 = vmatprep.subr.bf16.mxu0 0
        %3606 = vmatpush1.bf16.msra.mxu0 %v3460
        %3607 = vmatprep.subr.bf16.mxu0 0
        %3608 = vmatpush1.bf16.msra.mxu0 %v3461
        %3609 = vmatprep.subr.bf16.mxu0 0
        %3610 = vmatpush1.bf16.msra.mxu0 %v3462
        %3611 = vmatprep.subr.bf16.mxu0 0
        %3612 = vmatpush1.bf16.msra.mxu0 %v3463
        %3613 = vmatprep.subr.bf16.mxu0 0
        %3614 = vmatpush1.bf16.msra.mxu0 %v3464
        %3615 = vmatprep.subr.bf16.mxu0 0
        %3616 = vmatpush1.bf16.msra.mxu0 %v3465
        %3617 = vmatprep.subr.bf16.mxu0 0
        %3618 = vmatpush1.bf16.msra.mxu0 %v3466
        %3619 = vmatprep.subr.bf16.mxu0 0
        %3620 = vmatpush1.bf16.msra.mxu0 %v3467
        %3621 = vmatprep.subr.bf16.mxu0 0
        %3622 = vmatpush1.bf16.msra.mxu0 %v3468
        %3623 = vmatprep.subr.bf16.mxu0 0
        %3624 = vmatpush1.bf16.msra.mxu0 %v3469
        %3625 = vmatprep.subr.bf16.mxu0 0
        %3626 = vmatpush1.bf16.msra.mxu0 %v3470
        %3627 = vmatprep.subr.bf16.mxu0 0
        %3628 = vmatpush1.bf16.msra.mxu0 %v3471
        %3629 = vmatprep.subr.bf16.mxu0 0
        %3630 = vmatpush1.bf16.msra.mxu0 %v3472
        %3631 = vmatprep.subr.bf16.mxu0 0
        %3632 = vmatpush1.bf16.msra.mxu0 %v3473
        %3633 = vmatprep.subr.bf16.mxu0 0
        %3634 = vmatpush1.bf16.msra.mxu0 %v3474
        %3635 = vmatprep.mubr.bf16.mxu0 %v2992
        %3636 = vmatmul.mubr.bf16.gmra.mrb[0].mxu0 %v2991
        %v3637 = vpop.f32.mrb[0].mxu0
        %v3638 = vadd.f32 0.0, %v3637
        %v3639 = vpop.f32.mrb[0].mxu0
        %v3640 = vpop.f32.mrb[0].mxu0
        %v3641 = vadd.f32 0.0, %v3640
        %v3642 = vpop.f32.mrb[0].mxu0
        %3643 = vmatprep.mubr.bf16.mxu0 %v3001
        %3644 = vmatmul.mubr.bf16.gmra.mrb[0].mxu0 %v3000
        %v3645 = vpop.f32.mrb[0].mxu0
        %v3646 = vadd.f32 0.0, %v3645
        %v3647 = vpop.f32.mrb[0].mxu0
        %v3648 = vpop.f32.mrb[0].mxu0
        %v3649 = vadd.f32 0.0, %v3648
        %v3650 = vpop.f32.mrb[0].mxu0
        %3651 = vmatprep.mubr.bf16.mxu0 %v3010
        %3652 = vmatmul.mubr.bf16.gmra.mrb[0].mxu0 %v3009
        %v3653 = vpop.f32.mrb[0].mxu0
        %v3654 = vadd.f32 0.0, %v3653
        %v3655 = vpop.f32.mrb[0].mxu0
        %v3656 = vpop.f32.mrb[0].mxu0
        %v3657 = vadd.f32 0.0, %v3656
        %v3658 = vpop.f32.mrb[0].mxu0
        %3659 = vmatprep.mubr.bf16.mxu0 %v3019
        %3660 = vmatmul.mubr.bf16.gmra.mrb[0].mxu0 %v3018
        %v3661 = vpop.f32.mrb[0].mxu0
        %v3662 = vadd.f32 0.0, %v3661
        %v3663 = vpop.f32.mrb[0].mxu0
        %v3664 = vpop.f32.mrb[0].mxu0
        %v3665 = vadd.f32 0.0, %v3664
        %v3666 = vpop.f32.mrb[0].mxu0
        %3667 = vdwg.mxu0
        %3668 = vmatprep.subr.bf16.mxu0 0
        %3669 = vmatpush1.bf16.msra.mxu0 %v3475
        %3670 = vmatprep.subr.bf16.mxu0 0
        %3671 = vmatpush1.bf16.msra.mxu0 %v3476
        %3672 = vmatprep.subr.bf16.mxu0 0
        %3673 = vmatpush1.bf16.msra.mxu0 %v3477
        %3674 = vmatprep.subr.bf16.mxu0 0
        %3675 = vmatpush1.bf16.msra.mxu0 %v3478
        %3676 = vmatprep.subr.bf16.mxu0 0
        %3677 = vmatpush1.bf16.msra.mxu0 %v3479
        %3678 = vmatprep.subr.bf16.mxu0 0
        %3679 = vmatpush1.bf16.msra.mxu0 %v3480
        %3680 = vmatprep.subr.bf16.mxu0 0
        %3681 = vmatpush1.bf16.msra.mxu0 %v3481
        %3682 = vmatprep.subr.bf16.mxu0 0
        %3683 = vmatpush1.bf16.msra.mxu0 %v3482
        %3684 = vmatprep.subr.bf16.mxu0 0
        %3685 = vmatpush1.bf16.msra.mxu0 %v3483
        %3686 = vmatprep.subr.bf16.mxu0 0
        %3687 = vmatpush1.bf16.msra.mxu0 %v3484
        %3688 = vmatprep.subr.bf16.mxu0 0
        %3689 = vmatpush1.bf16.msra.mxu0 %v3485
        %3690 = vmatprep.subr.bf16.mxu0 0
        %3691 = vmatpush1.bf16.msra.mxu0 %v3486
        %3692 = vmatprep.subr.bf16.mxu0 0
        %3693 = vmatpush1.bf16.msra.mxu0 %v3487
        %3694 = vmatprep.subr.bf16.mxu0 0
        %3695 = vmatpush1.bf16.msra.mxu0 %v3488
        %3696 = vmatprep.subr.bf16.mxu0 0
        %3697 = vmatpush1.bf16.msra.mxu0 %v3489
        %3698 = vmatprep.subr.bf16.mxu0 0
        %3699 = vmatpush1.bf16.msra.mxu0 %v3490
        %3700 = vmatprep.mubr.bf16.mxu0 %v2994
        %3701 = vmatmul.mubr.bf16.gmra.mrb[0].mxu0 %v2993
        %v3702 = vpop.f32.mrb[0].mxu0
        %v3703 = vadd.f32 %v3638, %v3702
        %v3704 = vpop.f32.mrb[0].mxu0
        %v3705 = vpop.f32.mrb[0].mxu0
        %v3706 = vadd.f32 %v3641, %v3705
        %v3707 = vpop.f32.mrb[0].mxu0
        %3708 = vmatprep.mubr.bf16.mxu0 %v3003
        %3709 = vmatmul.mubr.bf16.gmra.mrb[0].mxu0 %v3002
        %v3710 = vpop.f32.mrb[0].mxu0
        %v3711 = vadd.f32 %v3646, %v3710
        %v3712 = vpop.f32.mrb[0].mxu0
        %v3713 = vpop.f32.mrb[0].mxu0
        %v3714 = vadd.f32 %v3649, %v3713
        %v3715 = vpop.f32.mrb[0].mxu0
        %3716 = vmatprep.mubr.bf16.mxu0 %v3012
        %3717 = vmatmul.mubr.bf16.gmra.mrb[0].mxu0 %v3011
        %v3718 = vpop.f32.mrb[0].mxu0
        %v3719 = vadd.f32 %v3654, %v3718
        %v3720 = vpop.f32.mrb[0].mxu0
        %v3721 = vpop.f32.mrb[0].mxu0
        %v3722 = vadd.f32 %v3657, %v3721
        %v3723 = vpop.f32.mrb[0].mxu0
        %3724 = vmatprep.mubr.bf16.mxu0 %v3021
        %3725 = vmatmul.mubr.bf16.gmra.mrb[0].mxu0 %v3020
        %v3726 = vpop.f32.mrb[0].mxu0
        %v3727 = vadd.f32 %v3662, %v3726
        %v3728 = vpop.f32.mrb[0].mxu0
        %v3729 = vpop.f32.mrb[0].mxu0
        %v3730 = vadd.f32 %v3665, %v3729
        %v3731 = vpop.f32.mrb[0].mxu0
        %3732 = vdwg.mxu0
        %3733 = vmatprep.subr.bf16.mxu0 0
        %3734 = vmatpush1.bf16.msra.mxu0 %v3491
        %3735 = vmatprep.subr.bf16.mxu0 0
        %3736 = vmatpush1.bf16.msra.mxu0 %v3492
        %3737 = vmatprep.subr.bf16.mxu0 0
        %3738 = vmatpush1.bf16.msra.mxu0 %v3493
        %3739 = vmatprep.subr.bf16.mxu0 0
        %3740 = vmatpush1.bf16.msra.mxu0 %v3494
        %3741 = vmatprep.subr.bf16.mxu0 0
        %3742 = vmatpush1.bf16.msra.mxu0 %v3495
        %3743 = vmatprep.subr.bf16.mxu0 0
        %3744 = vmatpush1.bf16.msra.mxu0 %v3496
        %3745 = vmatprep.subr.bf16.mxu0 0
        %3746 = vmatpush1.bf16.msra.mxu0 %v3497
        %3747 = vmatprep.subr.bf16.mxu0 0
        %3748 = vmatpush1.bf16.msra.mxu0 %v3498
        %3749 = vmatprep.subr.bf16.mxu0 0
        %3750 = vmatpush1.bf16.msra.mxu0 %v3499
        %3751 = vmatprep.subr.bf16.mxu0 0
        %3752 = vmatpush1.bf16.msra.mxu0 %v3500
        %3753 = vmatprep.subr.bf16.mxu0 0
        %3754 = vmatpush1.bf16.msra.mxu0 %v3501
        %3755 = vmatprep.subr.bf16.mxu0 0
        %3756 = vmatpush1.bf16.msra.mxu0 %v3502
        %3757 = vmatprep.subr.bf16.mxu0 0
        %3758 = vmatpush1.bf16.msra.mxu0 %v3503
        %3759 = vmatprep.subr.bf16.mxu0 0
        %3760 = vmatpush1.bf16.msra.mxu0 %v3504
        %3761 = vmatprep.subr.bf16.mxu0 0
        %3762 = vmatpush1.bf16.msra.mxu0 %v3505
        %3763 = vmatprep.subr.bf16.mxu0 0
        %3764 = vmatpush1.bf16.msra.mxu0 %v3506
        %3765 = vmatprep.mubr.bf16.mxu0 %v2996
        %3766 = vmatmul.mubr.bf16.gmra.mrb[0].mxu0 %v2995
        %v3767 = vpop.f32.mrb[0].mxu0
        %v3768 = vadd.f32 %v3703, %v3767
        %v3769 = vpop.f32.mrb[0].mxu0
        %v3770 = vpop.f32.mrb[0].mxu0
        %v3771 = vadd.f32 %v3706, %v3770
        %v3772 = vpop.f32.mrb[0].mxu0
        %3773 = vmatprep.mubr.bf16.mxu0 %v3005
        %3774 = vmatmul.mubr.bf16.gmra.mrb[0].mxu0 %v3004
        %v3775 = vpop.f32.mrb[0].mxu0
        %v3776 = vadd.f32 %v3711, %v3775
        %v3777 = vpop.f32.mrb[0].mxu0
        %v3778 = vpop.f32.mrb[0].mxu0
        %v3779 = vadd.f32 %v3714, %v3778
        %v3780 = vpop.f32.mrb[0].mxu0
        %3781 = vmatprep.mubr.bf16.mxu0 %v3014
        %3782 = vmatmul.mubr.bf16.gmra.mrb[0].mxu0 %v3013
        %v3783 = vpop.f32.mrb[0].mxu0
        %v3784 = vadd.f32 %v3719, %v3783
        %v3785 = vpop.f32.mrb[0].mxu0
        %v3786 = vpop.f32.mrb[0].mxu0
        %v3787 = vadd.f32 %v3722, %v3786
        %v3788 = vpop.f32.mrb[0].mxu0
        %3789 = vmatprep.mubr.bf16.mxu0 %v3023
        %3790 = vmatmul.mubr.bf16.gmra.mrb[0].mxu0 %v3022
        %v3791 = vpop.f32.mrb[0].mxu0
        %v3792 = vadd.f32 %v3727, %v3791
        %v3793 = vpop.f32.mrb[0].mxu0
        %v3794 = vpop.f32.mrb[0].mxu0
        %v3795 = vadd.f32 %v3730, %v3794
        %v3796 = vpop.f32.mrb[0].mxu0
        %3797 = vdwg.mxu0
        %3798 = vmatprep.subr.bf16.mxu0 0
        %3799 = vmatpush1.bf16.msra.mxu0 %v3507
        %3800 = vmatprep.subr.bf16.mxu0 0
        %3801 = vmatpush1.bf16.msra.mxu0 %v3508
        %3802 = vmatprep.subr.bf16.mxu0 0
        %3803 = vmatpush1.bf16.msra.mxu0 %v3509
        %3804 = vmatprep.subr.bf16.mxu0 0
        %3805 = vmatpush1.bf16.msra.mxu0 %v3510
        %3806 = vmatprep.subr.bf16.mxu0 0
        %3807 = vmatpush1.bf16.msra.mxu0 %v3511
        %3808 = vmatprep.subr.bf16.mxu0 0
        %3809 = vmatpush1.bf16.msra.mxu0 %v3512
        %3810 = vmatprep.subr.bf16.mxu0 0
        %3811 = vmatpush1.bf16.msra.mxu0 %v3513
        %3812 = vmatprep.subr.bf16.mxu0 0
        %3813 = vmatpush1.bf16.msra.mxu0 %v3514
        %3814 = vmatprep.subr.bf16.mxu0 0
        %3815 = vmatpush1.bf16.msra.mxu0 %v3515
        %3816 = vmatprep.subr.bf16.mxu0 0
        %3817 = vmatpush1.bf16.msra.mxu0 %v3516
        %3818 = vmatprep.subr.bf16.mxu0 0
        %3819 = vmatpush1.bf16.msra.mxu0 %v3517
        %3820 = vmatprep.subr.bf16.mxu0 0
        %3821 = vmatpush1.bf16.msra.mxu0 %v3518
        %3822 = vmatprep.subr.bf16.mxu0 0
        %3823 = vmatpush1.bf16.msra.mxu0 %v3519
        %3824 = vmatprep.subr.bf16.mxu0 0
        %3825 = vmatpush1.bf16.msra.mxu0 %v3520
        %3826 = vmatprep.subr.bf16.mxu0 0
        %3827 = vmatpush1.bf16.msra.mxu0 %v3521
        %3828 = vmatprep.subr.bf16.mxu0 0
        %3829 = vmatpush1.bf16.msra.mxu0 %v3522
        %3830 = vmatprep.mubr.bf16.mxu0 %v2998
        %3831 = vmatmul.mubr.bf16.gmra.mrb[0].mxu0 %v2997
        %v3832 = vpop.f32.mrb[0].mxu0
        %v3833 = vadd.f32 %v3768, %v3832
        %v3834 = vpop.f32.mrb[0].mxu0
        %v3835 = vpop.f32.mrb[0].mxu0
        %v3836 = vadd.f32 %v3771, %v3835
        %v3837 = vpop.f32.mrb[0].mxu0
        %3838 = vmatprep.mubr.bf16.mxu0 %v3007
        %3839 = vmatmul.mubr.bf16.gmra.mrb[0].mxu0 %v3006
        %v3840 = vpop.f32.mrb[0].mxu0
        %v3841 = vadd.f32 %v3776, %v3840
        %v3842 = vpop.f32.mrb[0].mxu0
        %v3843 = vpop.f32.mrb[0].mxu0
        %v3844 = vadd.f32 %v3779, %v3843
        %v3845 = vpop.f32.mrb[0].mxu0
        %3846 = vmatprep.mubr.bf16.mxu0 %v3016
        %3847 = vmatmul.mubr.bf16.gmra.mrb[0].mxu0 %v3015
        %v3848 = vpop.f32.mrb[0].mxu0
        %v3849 = vadd.f32 %v3784, %v3848
        %v3850 = vpop.f32.mrb[0].mxu0
        %v3851 = vpop.f32.mrb[0].mxu0
        %v3852 = vadd.f32 %v3787, %v3851
        %v3853 = vpop.f32.mrb[0].mxu0
        %3854 = vmatprep.mubr.bf16.mxu0 %v3025
        %3855 = vmatmul.mubr.bf16.gmra.mrb[0].mxu0 %v3024
        %v3856 = vpop.f32.mrb[0].mxu0
        %v3857 = vadd.f32 %v3792, %v3856
        %v3858 = vpop.f32.mrb[0].mxu0
        %v3859 = vpop.f32.mrb[0].mxu0
        %v3860 = vadd.f32 %v3795, %v3859
        %v3861 = vpop.f32.mrb[0].mxu0
        %3862 = vdwg.mxu0
        %3863 = vmatprep.subr.bf16.mxu0 0
        %3864 = vmatpush1.bf16.msra.mxu0 %v3523
        %3865 = vmatprep.subr.bf16.mxu0 0
        %3866 = vmatpush1.bf16.msra.mxu0 %v3524
        %3867 = vmatprep.subr.bf16.mxu0 0
        %3868 = vmatpush1.bf16.msra.mxu0 %v3525
        %3869 = vmatprep.subr.bf16.mxu0 0
        %3870 = vmatpush1.bf16.msra.mxu0 %v3526
        %3871 = vmatprep.subr.bf16.mxu0 0
        %3872 = vmatpush1.bf16.msra.mxu0 %v3527
        %3873 = vmatprep.subr.bf16.mxu0 0
        %3874 = vmatpush1.bf16.msra.mxu0 %v3528
        %3875 = vmatprep.subr.bf16.mxu0 0
        %3876 = vmatpush1.bf16.msra.mxu0 %v3529
        %3877 = vmatprep.subr.bf16.mxu0 0
        %3878 = vmatpush1.bf16.msra.mxu0 %v3530
        %3879 = vmatprep.subr.bf16.mxu0 0
        %3880 = vmatpush1.bf16.msra.mxu0 0
        %3881 = vmatprep.subr.bf16.mxu0 0
        %3882 = vmatpush1.bf16.msra.mxu0 0
        %3883 = vmatprep.subr.bf16.mxu0 0
        %3884 = vmatpush1.bf16.msra.mxu0 0
        %3885 = vmatprep.subr.bf16.mxu0 0
        %3886 = vmatpush1.bf16.msra.mxu0 0
        %3887 = vmatprep.subr.bf16.mxu0 0
        %3888 = vmatpush1.bf16.msra.mxu0 0
        %3889 = vmatprep.subr.bf16.mxu0 0
        %3890 = vmatpush1.bf16.msra.mxu0 0
        %3891 = vmatprep.subr.bf16.mxu0 0
        %3892 = vmatpush1.bf16.msra.mxu0 0
        %3893 = vmatprep.subr.bf16.mxu0 0
        %3894 = vmatpush1.bf16.msra.mxu0 0
        %3895 = vmatprep.mubr.bf16.mxu0 0
        %3896 = vmatmul.mubr.bf16.gmra.mrb[0].mxu0 %v2999
        %v3897 = vpop.f32.mrb[0].mxu0
        %v3898 = vadd.f32 %v3833, %v3897
        %v3899 = vpop.f32.mrb[0].mxu0
        %v3900 = vpop.f32.mrb[0].mxu0
        %v3901 = vadd.f32 %v3836, %v3900
        %v3902 = vpop.f32.mrb[0].mxu0
        %3903 = vmatprep.mubr.bf16.mxu0 0
        %3904 = vmatmul.mubr.bf16.gmra.mrb[0].mxu0 %v3008
        %v3905 = vpop.f32.mrb[0].mxu0
        %v3906 = vadd.f32 %v3841, %v3905
        %v3907 = vpop.f32.mrb[0].mxu0
        %v3908 = vpop.f32.mrb[0].mxu0
        %v3909 = vadd.f32 %v3844, %v3908
        %v3910 = vpop.f32.mrb[0].mxu0
        %3911 = vmatprep.mubr.bf16.mxu0 0
        %3912 = vmatmul.mubr.bf16.gmra.mrb[0].mxu0 %v3017
        %v3913 = vpop.f32.mrb[0].mxu0
        %v3914 = vadd.f32 %v3849, %v3913
        %v3915 = vpop.f32.mrb[0].mxu0
        %v3916 = vpop.f32.mrb[0].mxu0
        %v3917 = vadd.f32 %v3852, %v3916
        %v3918 = vpop.f32.mrb[0].mxu0
        %3919 = vmatprep.mubr.bf16.mxu0 0
        %3920 = vmatmul.mubr.bf16.gmra.mrb[0].mxu0 %v3026
        %v3921 = vpop.f32.mrb[0].mxu0
        %v3922 = vadd.f32 %v3857, %v3921
        %v3923 = vpop.f32.mrb[0].mxu0
        %v3924 = vpop.f32.mrb[0].mxu0
        %v3925 = vadd.f32 %v3860, %v3924
        %v3926 = vpop.f32.mrb[0].mxu0
        %3927 = vdwg.mxu0
        %v3928 = vld [vmem:[%s8] sm:$0x1]
        %v3930 = vlaneseq
        %v3931 = vshrl.u32 %v3930, 7
        %v3932 = vsub.s32 0, %v3931
        %v3933 = vrot.slane %v3928, %v3932
        %v3935 = vmul.f32 %v3898, %v3933
        %v3936 = vmul.f32 %v3901, %v3933
        %v3937 = vmul.f32 %v3906, %v3933
        %v3938 = vmul.f32 %v3909, %v3933
        %v3939 = vmul.f32 %v3914, %v3933
        %v3940 = vmul.f32 %v3917, %v3933
        %v3941 = vmul.f32 %v3922, %v3933
        %v3942 = vmul.f32 %v3925, %v3933
        %v3943 = vld [vmem:[%s9] sm:$0x1]
        %v3945 = vlaneseq
        %v3946 = vshrl.u32 %v3945, 7
        %v3947 = vsub.s32 0, %v3946
        %v3948 = vrot.slane %v3943, %v3947
        %v3950 = vadd.f32 %v3935, %v3948
        %v3951 = vadd.f32 %v3936, %v3948
        %v3952 = vadd.f32 %v3937, %v3948
        %v3953 = vadd.f32 %v3938, %v3948
        %v3954 = vadd.f32 %v3939, %v3948
        %v3955 = vadd.f32 %v3940, %v3948
        %v3956 = vadd.f32 %v3941, %v3948
        %v3957 = vadd.f32 %v3942, %v3948
        %v3958 = vmax.f32 %v3950, 0.0
        %v3959 = vmax.f32 %v3951, 0.0
        %v3960 = vmax.f32 %v3952, 0.0
        %v3961 = vmax.f32 %v3953, 0.0
        %v3962 = vmax.f32 %v3954, 0.0
        %v3963 = vmax.f32 %v3955, 0.0
        %v3964 = vmax.f32 %v3956, 0.0
        %v3965 = vmax.f32 %v3957, 0.0
        %vm3966 = vcmask 64512
        %3967 = vst.msk [vmem:[#allocation5] sm:$0xff] %vm3966, 0.0
        %vm3968 = vcmask 58368
        %3969 = vst.msk [vmem:[#allocation5 + $0x8] sm:$0x3] %vm3968, 0.0
        %3970 = vst.msk [vmem:[#allocation5 + $0x10] sm:$0xff] %vm3966, 0.0
        %3971 = vst.msk [vmem:[#allocation5 + $0x18] sm:$0x3] %vm3968, 0.0
        %3972 = vst.msk [vmem:[#allocation5 + $0x20] sm:$0xff] %vm3966, 0.0
        %3973 = vst.msk [vmem:[#allocation5 + $0x28] sm:$0x3] %vm3968, 0.0
        %3974 = vst.msk [vmem:[#allocation5 + $0x30] sm:$0xff] %vm3966, 0.0
        %3975 = vst.msk [vmem:[#allocation5 + $0x38] sm:$0x3] %vm3968, 0.0
        %3976 = vst.msk [vmem:[#allocation5 + $0x40] sm:$0xff] %vm3966, 0.0
        %3977 = vst.msk [vmem:[#allocation5 + $0x48] sm:$0x3] %vm3968, 0.0
        %3978 = vst.msk [vmem:[#allocation5 + $0x50] sm:$0xff] %vm3966, 0.0
        %3979 = vst.msk [vmem:[#allocation5 + $0x58] sm:$0x3] %vm3968, 0.0
        %3980 = vst.msk [vmem:[#allocation5 + $0x60] sm:$0xff] %vm3966, 0.0
        %3981 = vst.msk [vmem:[#allocation5 + $0x68] sm:$0x3] %vm3968, 0.0
        %3982 = vst.msk [vmem:[#allocation5 + $0x70] sm:$0xff] %vm3966, 0.0
        %3983 = vst.msk [vmem:[#allocation5 + $0x78] sm:$0x3] %vm3968, 0.0
        %3984 = vst.msk [vmem:[#allocation5 + $0x80] sm:$0xff] %vm3966, 0.0
        %3985 = vst.msk [vmem:[#allocation5 + $0x88] sm:$0x3] %vm3968, 0.0
        %3986 = vst.msk [vmem:[#allocation5 + $0x90] sm:$0xff] %vm3966, 0.0
        %3987 = vst.msk [vmem:[#allocation5 + $0x98] sm:$0x3] %vm3968, 0.0
        %s3988 = scalar_lea.vmem [#allocation5], 16
        %3989 = vst.msk [vmem:[%s3988 + $0x1] sm:$0xff] %vm3966, %v3958
        %3990 = vst.msk [vmem:[%s3988 + $0x11] sm:$0xff] %vm3966, %v3959
        %3991 = vst.msk [vmem:[%s3988 + $0x21] sm:$0xff] %vm3966, %v3960
        %3992 = vst.msk [vmem:[%s3988 + $0x31] sm:$0xff] %vm3966, %v3961
        %3993 = vst.msk [vmem:[%s3988 + $0x41] sm:$0xff] %vm3966, %v3962
        %3994 = vst.msk [vmem:[%s3988 + $0x51] sm:$0xff] %vm3966, %v3963
        %3995 = vst.msk [vmem:[%s3988 + $0x61] sm:$0xff] %vm3966, %v3964
        %3996 = vst.msk [vmem:[%s3988 + $0x71] sm:$0xff] %vm3966, %v3965
        %v3997 = vld [vmem:[#allocation5] ss:$2 sm:$0xf]
        %s3998 = scalar_lea.vmem [#allocation5], 32
        %v3999 = vld [vmem:[%s3998] ss:$2 sm:$0xf]
        %s4000 = scalar_lea.vmem [#allocation5], 64
        %v4001 = vld [vmem:[%s4000] ss:$2 sm:$0xf]
        %s4002 = scalar_lea.vmem [#allocation5], 96
        %v4003 = vld [vmem:[%s4002] ss:$2 sm:$0xf]
        %s4004 = scalar_lea.vmem [#allocation5], 1
        %v4005 = vld [vmem:[%s4004] ss:$2 sm:$0xf]
        %s4006 = scalar_lea.vmem [#allocation5], 33
        %v4007 = vld [vmem:[%s4006] ss:$2 sm:$0xf]
        %s4008 = scalar_lea.vmem [#allocation5], 65
        %v4009 = vld [vmem:[%s4008] ss:$2 sm:$0xf]
        %s4010 = scalar_lea.vmem [#allocation5], 97
        %v4011 = vld [vmem:[%s4010] ss:$2 sm:$0xf]
        %v4012 = vmax.f32 %v3997, %v4005
        %v4013 = vmax.f32 %v3999, %v4007
        %v4014 = vmax.f32 %v4001, %v4009
        %v4015 = vmax.f32 %v4003, %v4011
        %s4016 = scalar_lea.vmem [#allocation5], 2
        %v4017 = vld [vmem:[%s4016] ss:$2 sm:$0xf]
        %s4018 = scalar_lea.vmem [#allocation5], 34
        %v4019 = vld [vmem:[%s4018] ss:$2 sm:$0xf]
        %s4020 = scalar_lea.vmem [#allocation5], 66
        %v4021 = vld [vmem:[%s4020] ss:$2 sm:$0xf]
        %s4022 = scalar_lea.vmem [#allocation5], 98
        %v4023 = vld [vmem:[%s4022] ss:$2 sm:$0xf]
        %v4024 = vmax.f32 %v4012, %v4017
        %v4025 = vmax.f32 %v4013, %v4019
        %v4026 = vmax.f32 %v4014, %v4021
        %v4027 = vmax.f32 %v4015, %v4023
        %v4028 = vld [vmem:[%s3988] ss:$2 sm:$0xf]
        %s4029 = scalar_lea.vmem %s3988, 32 [#allocation5]
        %v4030 = vld [vmem:[%s4029] ss:$2 sm:$0xf]
        %s4031 = scalar_lea.vmem %s3988, 64 [#allocation5]
        %v4032 = vld [vmem:[%s4031] ss:$2 sm:$0xf]
        %s4033 = scalar_lea.vmem %s3988, 96 [#allocation5]
        %v4034 = vld [vmem:[%s4033] ss:$2 sm:$0xf]
        %v4035 = vmax.f32 %v4024, %v4028
        %v4036 = vmax.f32 %v4025, %v4030
        %v4037 = vmax.f32 %v4026, %v4032
        %v4038 = vmax.f32 %v4027, %v4034
        %s4039 = scalar_lea.vmem %s3988, 1 [#allocation5]
        %v4040 = vld [vmem:[%s4039] ss:$2 sm:$0xf]
        %s4041 = scalar_lea.vmem %s3988, 33 [#allocation5]
        %v4042 = vld [vmem:[%s4041] ss:$2 sm:$0xf]
        %s4043 = scalar_lea.vmem %s3988, 65 [#allocation5]
        %v4044 = vld [vmem:[%s4043] ss:$2 sm:$0xf]
        %s4045 = scalar_lea.vmem %s3988, 97 [#allocation5]
        %v4046 = vld [vmem:[%s4045] ss:$2 sm:$0xf]
        %v4047 = vmax.f32 %v4035, %v4040
        %v4048 = vmax.f32 %v4036, %v4042
        %v4049 = vmax.f32 %v4037, %v4044
        %v4050 = vmax.f32 %v4038, %v4046
        %s4051 = scalar_lea.vmem %s3988, 2 [#allocation5]
        %v4052 = vld [vmem:[%s4051] ss:$2 sm:$0xf]
        %s4053 = scalar_lea.vmem %s3988, 34 [#allocation5]
        %v4054 = vld [vmem:[%s4053] ss:$2 sm:$0xf]
        %s4055 = scalar_lea.vmem %s3988, 66 [#allocation5]
        %v4056 = vld [vmem:[%s4055] ss:$2 sm:$0xf]
        %s4057 = scalar_lea.vmem %s3988, 98 [#allocation5]
        %v4058 = vld [vmem:[%s4057] ss:$2 sm:$0xf]
        %v4059 = vmax.f32 %v4047, %v4052
        %v4060 = vmax.f32 %v4048, %v4054
        %v4061 = vmax.f32 %v4049, %v4056
        %v4062 = vmax.f32 %v4050, %v4058
        %s4063 = scalar_lea.vmem [#allocation5], 32
        %v4064 = vld [vmem:[%s4063] ss:$2 sm:$0xf]
        %s4065 = scalar_lea.vmem %s4063, 32 [#allocation5]
        %v4066 = vld [vmem:[%s4065] ss:$2 sm:$0xf]
        %s4067 = scalar_lea.vmem %s4063, 64 [#allocation5]
        %v4068 = vld [vmem:[%s4067] ss:$2 sm:$0xf]
        %s4069 = scalar_lea.vmem %s4063, 96 [#allocation5]
        %v4070 = vld [vmem:[%s4069] ss:$2 sm:$0xf]
        %v4071 = vmax.f32 %v4059, %v4064
        %v4072 = vmax.f32 %v4060, %v4066
        %v4073 = vmax.f32 %v4061, %v4068
        %v4074 = vmax.f32 %v4062, %v4070
        %s4075 = scalar_lea.vmem %s4063, 1 [#allocation5]
        %v4076 = vld [vmem:[%s4075] ss:$2 sm:$0xf]
        %s4077 = scalar_lea.vmem %s4063, 33 [#allocation5]
        %v4078 = vld [vmem:[%s4077] ss:$2 sm:$0xf]
        %s4079 = scalar_lea.vmem %s4063, 65 [#allocation5]
        %v4080 = vld [vmem:[%s4079] ss:$2 sm:$0xf]
        %s4081 = scalar_lea.vmem %s4063, 97 [#allocation5]
        %v4082 = vld [vmem:[%s4081] ss:$2 sm:$0xf]
        %v4083 = vmax.f32 %v4071, %v4076
        %v4084 = vmax.f32 %v4072, %v4078
        %v4085 = vmax.f32 %v4073, %v4080
        %v4086 = vmax.f32 %v4074, %v4082
        %s4087 = scalar_lea.vmem %s4063, 2 [#allocation5]
        %v4088 = vld [vmem:[%s4087] ss:$2 sm:$0xf]
        %s4089 = scalar_lea.vmem %s4063, 34 [#allocation5]
        %v4090 = vld [vmem:[%s4089] ss:$2 sm:$0xf]
        %s4091 = scalar_lea.vmem %s4063, 66 [#allocation5]
        %v4092 = vld [vmem:[%s4091] ss:$2 sm:$0xf]
        %s4093 = scalar_lea.vmem %s4063, 98 [#allocation5]
        %v4094 = vld [vmem:[%s4093] ss:$2 sm:$0xf]
        %v4095 = vmax.f32 %v4083, %v4088
        %v4096 = vmax.f32 %v4084, %v4090
        %v4097 = vmax.f32 %v4085, %v4092
        %v4098 = vmax.f32 %v4086, %v4094
        %vm4099 = vcmask 60416
        %4100 = vst.msk [vmem:[%s352] sm:$0xf] %vm4099, %v4095
        %4101 = vst.msk [vmem:[%s352 + $0x4] sm:$0xf] %vm4099, %v4096
        %4102 = vst.msk [vmem:[%s352 + $0x8] sm:$0xf] %vm4099, %v4097
        %4103 = vst.msk [vmem:[%s352 + $0xc] sm:$0xf] %vm4099, %v4098
        %s4104 = sand.u32 %s247, 1
        %s4105 = scalar_lea.sflag [#allocation8], %s4104
        %s4106 = sand.u32 %s247, 1
        %s4107 = smul.addr %s4106, 16
        %s4108 = scalar_lea.vmem [#allocation7], %s4107
        // Predicated region
        $region61: #{se_init_block.1} parent=59 // pred_check
          %p4109 = pneg %p257
        $region62: #{se_init_block.1} parent=59 // pred_check_branch
          %4111 = sbr.rel (%p4109) target = $region64
        $region63: #{se_init_block.1} parent=59 // pred_region
          %s4113 = ssub.s32 256, 256
          %4114 = vsyncadd %s4105, %s4113
          %s4115 = smul.addr %s24, 4
          %s4116 = smul.addr %s4115, 64
          %s4117 = scalar_lea.hbm %s10, %s4116
          %s4118 = sshll.u32 %s4108, 4
          %s4119 = int_to_ptr.vmem [resolvable:$true] %s4118
          %4124 = dma.vmem_to_hbm [thread:$0]  %s4119, 256, %s4117, %s4105, 64, 64, 4
        $region64: #{se_init_block.1} parent=59 // pred_fallthru
          _
      $region60: #{se_init_block.1} parent=5 // pred_fallthru
        _
      %p4125 = scmp.le.s32.totalorder 2, %s19
      // Predicated region
      $region65: #{se_init_block.1} parent=5 // pred_check
        %p4126 = pneg %p4125
      $region66: #{se_init_block.1} parent=5 // pred_check_branch
        %4128 = sbr.rel (%p4126) target = $region68
      $region67: #{se_init_block.1} parent=5 // pred_region
        %s4129 = ssub.s32 %s19, 2
        // Predicated region
        $region69: #{se_init_block.1} parent=67 // pred_check
          %p4130 = pneg %p263
        $region70: #{se_init_block.1} parent=67 // pred_check_branch
          %4132 = sbr.rel (%p4130) target = $region72
        $region71: #{se_init_block.1} parent=67 // pred_region
          %s4133 = sand.u32 %s248, 1
          %s4134 = scalar_lea.sflag [#allocation8], %s4133
          %s4135 = sand.u32 %s248, 1
          %s4136 = smul.addr %s4135, 16
          %s4137 = scalar_lea.vmem [#allocation7], %s4136
          %4138 = dma.done %s4134, 256
        $region72: #{se_init_block.1} parent=67 // pred_fallthru
          _
      $region68: #{se_init_block.1} parent=5 // pred_fallthru
        _
    $region6: #{se_init_block.1} parent=1 // loop_footer
      %s23 = sadd.s32 1, %s19
    $region7: #{se_init_block.1} parent=1 // loop_footer_branch
      %18 = sbr.rel target = $region3
    $region8: #{se_init_block.1} parent=1 // loop_exit
      _
    %4139 = vsyncpa [#allocation8], 1
    %s4140 = scalar_lea.sflag [#allocation8], 1
    %4141 = vsyncpa %s4140, 1

</llo_original>
